<compile_context>
chip_gen: v7x
topology: tpu7x:2x2x1
jax: 0.10.0
libtpu: 0.0.40
codegen_flags: <defaults>
</compile_context>

<pallas_src>
import jax
import jax.numpy as jnp
from jax.experimental import pallas as pl
from jax.experimental.pallas import tpu as pltpu

LRELU_SLOPE = 0.2
BN_EPS = 1e-5
LANE = 128
TILE_M_TARGET = 512                  # multiple of 8; conv1 -> 4 tiles so v7x
                                     # megacore has work; safe in 64 MiB VMEM.
VMEM_LIMIT_BYTES = 32 * 1024 * 1024  # above v5e's 16 MiB scoped default.


# ----------------------------- helpers ------------------------------------


def _round_up(x, m):
    return (x + m - 1) // m * m


def _pick_tiling(M, target=TILE_M_TARGET):
    """Tile size (multiple of 8, <= target) and M padded to a tile multiple."""
    tm = min(target, _round_up(M, 8))
    return tm, _round_up(M, tm)


def _im2col_nhwc(x, kh, kw, stride, padding):
    """x: (N, H, W, C) -> (N*Hout*Wout, kh*kw*C). K ordering is (kh, kw, C).

    Built from kh*kw strided slices + one concat (no gather, no transpose)."""
    N, H, W, C = x.shape
    Hout = (H + 2 * padding - kh) // stride + 1
    Wout = (W + 2 * padding - kw) // stride + 1
    if padding:
        x = jnp.pad(x, ((0, 0), (padding, padding), (padding, padding), (0, 0)))
    cols = []
    for dh in range(kh):
        for dw in range(kw):
            cols.append(x[:,
                          dh:dh + (Hout - 1) * stride + 1:stride,
                          dw:dw + (Wout - 1) * stride + 1:stride,
                          :])
    patches = jnp.concatenate(cols, axis=-1)          # (N, Hout, Wout, kh*kw*C)
    return patches.reshape(N * Hout * Wout, kh * kw * C), Hout, Wout


# ----------------------------- kernels ------------------------------------


def _conv_bias_lrelu_kernel(p_ref, w_ref, b_ref, o_ref):
    # (tm, K) @ (K, Cp) on the MXU, bf16 in / f32 accumulate, bf16 store.
    y = jnp.dot(p_ref[...], w_ref[...], preferred_element_type=jnp.float32)
    y = y + b_ref[...]
    o_ref[...] = jnp.where(y > 0, y, LRELU_SLOPE * y).astype(o_ref.dtype)


def _make_fused_bn_kernel(inv_m):
    """Fused Conv(no bias) + training-mode BatchNorm2d + LeakyReLU(0.2).

    Grid is (2, nt): phase 0 computes the matmul into a VMEM scratch and
    accumulates per-channel sum / sum-of-squares (last tile finalizes
    scale/shift); phase 1 applies the affine + LeakyReLU and stores bf16.
    inv_m is 1/true_M so zero-padded rows do not bias the statistics."""

    def kernel(p_ref, w_ref, g_ref, b_ref, o_ref,
               y_scr, sum_scr, sq_scr, scale_scr, shift_scr):
        phase = pl.program_id(0)
        i = pl.program_id(1)
        nt = pl.num_programs(1)

        @pl.when(phase == 0)
        def _matmul_and_stats():
            y = jnp.dot(p_ref[...], w_ref[...],
                        preferred_element_type=jnp.float32)
            y_scr[i] = y

            @pl.when(i == 0)
            def _init():
                sum_scr[...] = jnp.zeros_like(sum_scr)
                sq_scr[...] = jnp.zeros_like(sq_scr)

            sum_scr[...] += jnp.sum(y, axis=0, keepdims=True)
            sq_scr[...] += jnp.sum(y * y, axis=0, keepdims=True)

            @pl.when(i == nt - 1)
            def _finalize_stats():
                mean = sum_scr[...] * inv_m
                var = jnp.maximum(sq_scr[...] * inv_m - mean * mean, 0.0)
                scale = g_ref[...] * jax.lax.rsqrt(var + BN_EPS)
                scale_scr[...] = scale
                shift_scr[...] = b_ref[...] - mean * scale

        @pl.when(phase == 1)
        def _affine_lrelu():
            y = y_scr[i] * scale_scr[...] + shift_scr[...]
            o_ref[...] = jnp.where(y > 0, y, LRELU_SLOPE * y).astype(o_ref.dtype)

    return kernel


def _final_reduce_kernel(x_ref, w_ref, b_ref, o_ref):
    # Cout == 1 head: (M, K) * (1, K) elementwise + lane reduction + bias.
    # Avoids an MXU matmul that would use only 1 of 128 output lanes.
    x = x_ref[...].astype(jnp.float32)
    o_ref[...] = jnp.sum(x * w_ref[...], axis=-1, keepdims=True) + b_ref[...]


# --------------------------- layer wrappers --------------------------------


def _conv_bias_lrelu(patches, w_mat, bias_row, *, tm):
    Mp, K = patches.shape
    Cp = w_mat.shape[1]
    nt = Mp // tm
    return pl.pallas_call(
        _conv_bias_lrelu_kernel,
        out_shape=jax.ShapeDtypeStruct((Mp, Cp), jnp.bfloat16),
        grid_spec=pltpu.PrefetchScalarGridSpec(
            num_scalar_prefetch=0,
            grid=(nt,),
            in_specs=[
                pl.BlockSpec((tm, K), lambda i: (i, 0)),
                pl.BlockSpec((K, Cp), lambda i: (0, 0)),    # weight resident
                pl.BlockSpec((1, Cp), lambda i: (0, 0)),
            ],
            out_specs=pl.BlockSpec((tm, Cp), lambda i: (i, 0)),
        ),
        compiler_params=pltpu.CompilerParams(
            dimension_semantics=("parallel",),              # megacore shard M
            vmem_limit_bytes=VMEM_LIMIT_BYTES,
        ),
    )(patches, w_mat, bias_row)


def _conv_bn_lrelu(patches, w_mat, gamma_row, beta_row, *, m_true, tm):
    Mp, K = patches.shape
    Cp = w_mat.shape[1]
    nt = Mp // tm
    kernel = _make_fused_bn_kernel(1.0 / float(m_true))
    return pl.pallas_call(
        kernel,
        out_shape=jax.ShapeDtypeStruct((Mp, Cp), jnp.bfloat16),
        grid_spec=pltpu.PrefetchScalarGridSpec(
            num_scalar_prefetch=0,
            grid=(2, nt),                                   # (phase, tile)
            in_specs=[
                # patches: tile i in phase 0; pinned to block 0 in phase 1
                # (no re-fetch after the first phase-1 step).
                pl.BlockSpec((tm, K), lambda p, i: ((1 - p) * i, 0)),
                pl.BlockSpec((K, Cp), lambda p, i: (0, 0)),  # weight resident
                pl.BlockSpec((1, Cp), lambda p, i: (0, 0)),  # gamma
                pl.BlockSpec((1, Cp), lambda p, i: (0, 0)),  # beta
            ],
            # Output blocks only advance (and write back) during phase 1.
            out_specs=pl.BlockSpec((tm, Cp), lambda p, i: (p * i, 0)),
            scratch_shapes=[
                pltpu.VMEM((nt, tm, Cp), jnp.float32),       # y (pre-BN)
                pltpu.VMEM((1, Cp), jnp.float32),            # sum
                pltpu.VMEM((1, Cp), jnp.float32),            # sum of squares
                pltpu.VMEM((1, Cp), jnp.float32),            # scale
                pltpu.VMEM((1, Cp), jnp.float32),            # shift
            ],
        ),
        compiler_params=pltpu.CompilerParams(
            # Phase ordering + shared stats scratch across tiles -> arbitrary.
            dimension_semantics=("arbitrary", "arbitrary"),
            vmem_limit_bytes=VMEM_LIMIT_BYTES,
        ),
    )(patches, w_mat, gamma_row, beta_row)


def conv_layer(x_nhwc, weight, *, stride, padding, bias=None, gamma=None, beta=None):
    """Conv2d (+ optional bias / BatchNorm) + LeakyReLU(0.2).

    x_nhwc: (N, H, W, Cin) bf16/f32. weight: PyTorch (Cout, Cin, kh, kw).
    Returns NHWC (N, Hout, Wout, Cout) bf16."""
    N = x_nhwc.shape[0]
    Cout, Cin, kh, kw = weight.shape
    Cp = _round_up(Cout, LANE)

    patches, Hout, Wout = _im2col_nhwc(x_nhwc, kh, kw, stride, padding)
    M, K = patches.shape
    tm, Mp = _pick_tiling(M)
    if patches.dtype != jnp.bfloat16:
        patches = patches.astype(jnp.bfloat16)
    if Mp != M:
        # Zero rows: contribute exactly 0 to BN sums; sliced off afterwards.
        patches = jnp.pad(patches, ((0, Mp - M), (0, 0)))

    # (kh, kw, Cin, Cout) flatten matches the patches' K ordering; pad lanes.
    w_mat = weight.transpose(2, 3, 1, 0).reshape(K, Cout)
    w_mat = jnp.pad(w_mat, ((0, 0), (0, Cp - Cout))).astype(jnp.bfloat16)

    if gamma is not None:
        g = jnp.pad(gamma.astype(jnp.float32), (0, Cp - Cout)).reshape(1, Cp)
        b = jnp.pad(beta.astype(jnp.float32), (0, Cp - Cout)).reshape(1, Cp)
        out = _conv_bn_lrelu(patches, w_mat, g, b, m_true=M, tm=tm)
    else:
        bias_row = jnp.pad(bias.astype(jnp.float32), (0, Cp - Cout)).reshape(1, Cp)
        out = _conv_bias_lrelu(patches, w_mat, bias_row, tm=tm)

    if Mp != M:
        out = out[:M]
    out = out.reshape(N, Hout, Wout, Cp)
    return out[..., :Cout] if Cp != Cout else out


def final_conv(x_nhwc, weight, bias, *, stride=2, padding=0):
    """Final Conv2d with Cout == 1 (no activation). Returns NHWC (N,Hout,Wout,1)."""
    N = x_nhwc.shape[0]
    Cout, Cin, kh, kw = weight.shape
    patches, Hout, Wout = _im2col_nhwc(x_nhwc, kh, kw, stride, padding)
    M, K = patches.shape
    w_row = weight.transpose(2, 3, 1, 0).reshape(1, K).astype(jnp.float32)
    b = bias.reshape(1, 1).astype(jnp.float32)

    # M == N here (4x4 window == whole remaining map); whole problem in VMEM.
    # TODO(synk): tile M / emit a lane-dense (1, M) output for large batches.
    vmem = pl.BlockSpec(memory_space=pltpu.MemorySpace.VMEM)
    out = pl.pallas_call(
        _final_reduce_kernel,
        out_shape=jax.ShapeDtypeStruct((M, 1), jnp.float32),
        in_specs=[vmem, vmem, vmem],
        out_specs=vmem,
    )(patches, w_row, b)
    return out.reshape(N, Hout, Wout, 1)


# ----------------------------- model --------------------------------------


def init_params(key, channels_img, features_d, num_classes, img_size):
    """Deterministic synthetic init (DCGAN-style N(0, 0.02) weights)."""
    def nrm(k, shape, scale=0.02):
        return scale * jax.random.normal(k, shape, dtype=jnp.float32)

    ks = jax.random.split(key, 6)
    fd = features_d
    return {
        "embed": nrm(ks[0], (num_classes, img_size * img_size), 1.0),
        "conv1_w": nrm(ks[1], (fd, channels_img + 1, 4, 4)),
        "conv1_b": jnp.zeros((fd,), jnp.float32),
        "conv2_w": nrm(ks[2], (fd * 2, fd, 4, 4)),
        "bn2_g": jnp.ones((fd * 2,), jnp.float32),
        "bn2_b": jnp.zeros((fd * 2,), jnp.float32),
        "conv3_w": nrm(ks[3], (fd * 4, fd * 2, 4, 4)),
        "bn3_g": jnp.ones((fd * 4,), jnp.float32),
        "bn3_b": jnp.zeros((fd * 4,), jnp.float32),
        "conv4_w": nrm(ks[4], (fd * 8, fd * 4, 4, 4)),
        "bn4_g": jnp.ones((fd * 8,), jnp.float32),
        "bn4_b": jnp.zeros((fd * 8,), jnp.float32),
        "conv5_w": nrm(ks[5], (1, fd * 8, 4, 4)),
        "conv5_b": jnp.zeros((1,), jnp.float32),
    }


def discriminator_forward(params, x, labels, img_size):
    """x: (N, channels_img, img_size, img_size) f32; labels: (N,) int32.
    Returns (N, 1, 1, 1) f32 (PyTorch NCHW convention)."""
    N = x.shape[0]
    # Embedding lookup is a gather -> plain-JAX glue; emb row flattens as (H, W).
    emb = jnp.take(params["embed"], labels, axis=0).reshape(N, img_size, img_size, 1)
    # Convert the input to NHWC + bf16 exactly once; stay NHWC/bf16 after.
    h = jnp.concatenate([x.transpose(0, 2, 3, 1), emb], axis=-1).astype(jnp.bfloat16)

    # Layer 1: Conv(k4 s2 p1, bias) + LeakyReLU(0.2)
    h = conv_layer(h, params["conv1_w"], stride=2, padding=1, bias=params["conv1_b"])

    # Blocks 2-4: Conv(k4 s2 p1, no bias) + BatchNorm2d(train) + LeakyReLU(0.2)
    for i in (2, 3, 4):
        h = conv_layer(h, params[f"conv{i}_w"], stride=2, padding=1,
                       gamma=params[f"bn{i}_g"], beta=params[f"bn{i}_b"])

    # Final Conv(k4 s2 p0, bias, Cout=1), no activation -> (N, 1, 1, 1)
    out = final_conv(h, params["conv5_w"], params["conv5_b"], stride=2, padding=0)
    return out.transpose(0, 3, 1, 2)


if __name__ == "__main__":
    # img_size must be 64 so the stack 64->32->16->8->4->1 matches the final
    # k=4 / s=2 / p=0 conv of the reference module.
    N, CH_IMG, FEATURES_D, NUM_CLASSES, IMG_SIZE = 2, 3, 8, 4, 64

    key = jax.random.PRNGKey(0)
    k_params, k_x, k_lbl = jax.random.split(key, 3)

    params = init_params(k_params, CH_IMG, FEATURES_D, NUM_CLASSES, IMG_SIZE)
    x = jax.random.normal(k_x, (N, CH_IMG, IMG_SIZE, IMG_SIZE), dtype=jnp.float32)
    labels = jax.random.randint(k_lbl, (N,), 0, NUM_CLASSES, dtype=jnp.int32)

    fwd = jax.jit(discriminator_forward, static_argnums=(3,))
    out = jax.block_until_ready(fwd(params, x, labels, IMG_SIZE))
    assert out.shape == (N, 1, 1, 1), out.shape
    assert out.dtype == jnp.float32
    print("KERNEL_OK")
</pallas_src>

<mosaic_0001>
module attributes {stable_mosaic.version = 11 : i64} {
  func.func @_conv_bias_lrelu_kernel(%arg0: i32, %arg1: memref<512x64xbf16, #tpu.memory_space<vmem>>, %arg2: memref<64x128xbf16, #tpu.memory_space<vmem>>, %arg3: memref<1x128xf32, #tpu.memory_space<vmem>>, %arg4: memref<512x128xbf16, #tpu.memory_space<vmem>>) attributes {dimension_semantics = [#tpu.dimension_semantics<parallel>], iteration_bounds = array<i64: 4>, scalar_prefetch = 0 : i64, scratch_operands = 0 : i64, tpu.core_type = #tpu.core_type<tc>, window_params = [{transform_indices = @transform_0, window_bounds = array<i64: 512, 64>}, {pipeline_mode = #tpu.pipeline_mode<synchronous>, transform_indices = @transform_1, window_bounds = array<i64: 64, 128>}, {pipeline_mode = #tpu.pipeline_mode<synchronous>, transform_indices = @transform_2, window_bounds = array<i64: 1, 128>}, {transform_indices = @transform_3, window_bounds = array<i64: 512, 128>}]} {
    %c0 = arith.constant 0 : index
    %c0_0 = arith.constant 0 : index
    %0 = vector.load %arg1[%c0, %c0_0] : memref<512x64xbf16, #tpu.memory_space<vmem>>, vector<512x64xbf16>
    %c0_1 = arith.constant 0 : index
    %c0_2 = arith.constant 0 : index
    %1 = vector.load %arg2[%c0_1, %c0_2] : memref<64x128xbf16, #tpu.memory_space<vmem>>, vector<64x128xbf16>
    %cst = arith.constant dense<0.000000e+00> : vector<512x128xf32>
    %2 = tpu.matmul %0, %1, %cst {dimension_numbers = #tpu.dot_dimension_numbers<[1], [0], [0], [1], [0, 0, 1, 1], [], []>} : vector<512x64xbf16>, vector<64x128xbf16>, vector<512x128xf32> -> vector<512x128xf32>
    %c0_3 = arith.constant 0 : index
    %c0_4 = arith.constant 0 : index
    %3 = vector.load %arg3[%c0_3, %c0_4] : memref<1x128xf32, #tpu.memory_space<vmem>>, vector<1x128xf32>
    %4 = vector.broadcast %3 : vector<1x128xf32> to vector<512x128xf32>
    %5 = arith.addf %2, %4 : vector<512x128xf32>
    %cst_5 = arith.constant 0.000000e+00 : f32
    %6 = vector.broadcast %cst_5 : f32 to vector<512x128xf32>
    %7 = arith.cmpf ogt, %5, %6 : vector<512x128xf32>
    %cst_6 = arith.constant 2.000000e-01 : f32
    %8 = vector.broadcast %cst_6 : f32 to vector<512x128xf32>
    %9 = arith.mulf %8, %5 : vector<512x128xf32>
    %10 = arith.select %7, %5, %9 : vector<512x128xi1>, vector<512x128xf32>
    %11 = arith.truncf %10 : vector<512x128xf32> to vector<512x128xbf16>
    %c0_7 = arith.constant 0 : index
    %c0_8 = arith.constant 0 : index
    %12 = vector.load %arg4[%c0_7, %c0_8] : memref<512x128xbf16, #tpu.memory_space<vmem>>, vector<512x128xbf16>
    tpu.vector_store %arg4[%c0_7, %c0_8], %11 {strides = array<i32>} : memref<512x128xbf16, #tpu.memory_space<vmem>>, vector<512x128xbf16>,
    return
  }
  func.func @transform_0(%arg0: i32) -> (i32, i32) {
    %c0_i32 = arith.constant 0 : i32
    %c0_i32_0 = arith.constant 0 : i32
    return %arg0, %c0_i32 : i32, i32
  }
  func.func @transform_1(%arg0: i32) -> (i32, i32) {
    %c0_i32 = arith.constant 0 : i32
    %c0_i32_0 = arith.constant 0 : i32
    %c0_i32_1 = arith.constant 0 : i32
    return %c0_i32, %c0_i32_0 : i32, i32
  }
  func.func @transform_2(%arg0: i32) -> (i32, i32) {
    %c0_i32 = arith.constant 0 : i32
    %c0_i32_0 = arith.constant 0 : i32
    %c0_i32_1 = arith.constant 0 : i32
    return %c0_i32, %c0_i32_0 : i32, i32
  }
  func.func @transform_3(%arg0: i32) -> (i32, i32) {
    %c0_i32 = arith.constant 0 : i32
    %c0_i32_0 = arith.constant 0 : i32
    return %arg0, %c0_i32 : i32, i32
  }
}

module attributes {stable_mosaic.version = 11 : i64} {
  func.func @kernel(%arg0: i32, %arg1: i32, %arg2: memref<512x128xbf16, #tpu.memory_space<vmem>>, %arg3: memref<128x128xbf16, #tpu.memory_space<vmem>>, %arg4: memref<1x128xf32, #tpu.memory_space<vmem>>, %arg5: memref<1x128xf32, #tpu.memory_space<vmem>>, %arg6: memref<512x128xbf16, #tpu.memory_space<vmem>>, %arg7: memref<1x512x128xf32, #tpu.memory_space<vmem>>, %arg8: memref<1x128xf32, #tpu.memory_space<vmem>>, %arg9: memref<1x128xf32, #tpu.memory_space<vmem>>, %arg10: memref<1x128xf32, #tpu.memory_space<vmem>>, %arg11: memref<1x128xf32, #tpu.memory_space<vmem>>) attributes {dimension_semantics = [#tpu.dimension_semantics<arbitrary>, #tpu.dimension_semantics<arbitrary>], iteration_bounds = array<i64: 2, 1>, scalar_prefetch = 0 : i64, scratch_operands = 5 : i64, tpu.core_type = #tpu.core_type<tc>, window_params = [{transform_indices = @transform_0, window_bounds = array<i64: 512, 128>}, {pipeline_mode = #tpu.pipeline_mode<synchronous>, transform_indices = @transform_1, window_bounds = array<i64: 128, 128>}, {pipeline_mode = #tpu.pipeline_mode<synchronous>, transform_indices = @transform_2, window_bounds = array<i64: 1, 128>}, {pipeline_mode = #tpu.pipeline_mode<synchronous>, transform_indices = @transform_3, window_bounds = array<i64: 1, 128>}, {transform_indices = @transform_4, window_bounds = array<i64: 512, 128>}]} {
    %c0_i32 = arith.constant 0 : i32
    %0 = arith.cmpi eq, %arg0, %c0_i32 : i32
    %1 = arith.extui %0 : i1 to i32
    %c0_i32_0 = arith.constant 0 : i32
    %2 = arith.cmpi ne, %1, %c0_i32_0 : i32
    scf.if %2 {
      %c0 = arith.constant 0 : index
      %c0_2 = arith.constant 0 : index
      %6 = vector.load %arg2[%c0, %c0_2] : memref<512x128xbf16, #tpu.memory_space<vmem>>, vector<512x128xbf16>
      %c0_3 = arith.constant 0 : index
      %c0_4 = arith.constant 0 : index
      %7 = vector.load %arg3[%c0_3, %c0_4] : memref<128x128xbf16, #tpu.memory_space<vmem>>, vector<128x128xbf16>
      %cst = arith.constant dense<0.000000e+00> : vector<512x128xf32>
      %8 = tpu.matmul %6, %7, %cst {dimension_numbers = #tpu.dot_dimension_numbers<[1], [0], [0], [1], [0, 0, 1, 1], [], []>} : vector<512x128xbf16>, vector<128x128xbf16>, vector<512x128xf32> -> vector<512x128xf32>
      %9 = arith.index_cast %arg1 : i32 to index
      %c0_5 = arith.constant 0 : index
      %c0_6 = arith.constant 0 : index
      %10 = vector.load %arg7[%9, %c0_5, %c0_6] : memref<1x512x128xf32, #tpu.memory_space<vmem>>, vector<1x512x128xf32>
      %11 = vector.shape_cast %10 : vector<1x512x128xf32> to vector<512x128xf32>
      %12 = vector.shape_cast %8 : vector<512x128xf32> to vector<1x512x128xf32>
      tpu.vector_store %arg7[%9, %c0_5, %c0_6], %12 {strides = array<i32>} : memref<1x512x128xf32, #tpu.memory_space<vmem>>, vector<1x512x128xf32>,
      %c0_i32_7 = arith.constant 0 : i32
      %13 = arith.cmpi eq, %arg1, %c0_i32_7 : i32
      %14 = arith.extui %13 : i1 to i32
      %c0_i32_8 = arith.constant 0 : i32
      %15 = arith.cmpi ne, %14, %c0_i32_8 : i32
      scf.if %15 {
        %cst_21 = arith.constant 0.000000e+00 : f32
        %30 = vector.broadcast %cst_21 : f32 to vector<1x128xf32>
        %c0_22 = arith.constant 0 : index
        %c0_23 = arith.constant 0 : index
        %31 = vector.load %arg8[%c0_22, %c0_23] : memref<1x128xf32, #tpu.memory_space<vmem>>, vector<1x128xf32>
        tpu.vector_store %arg8[%c0_22, %c0_23], %30 {strides = array<i32>} : memref<1x128xf32, #tpu.memory_space<vmem>>, vector<1x128xf32>,
        %cst_24 = arith.constant 0.000000e+00 : f32
        %32 = vector.broadcast %cst_24 : f32 to vector<1x128xf32>
        %c0_25 = arith.constant 0 : index
        %c0_26 = arith.constant 0 : index
        %33 = vector.load %arg9[%c0_25, %c0_26] : memref<1x128xf32, #tpu.memory_space<vmem>>, vector<1x128xf32>
        tpu.vector_store %arg9[%c0_25, %c0_26], %32 {strides = array<i32>} : memref<1x128xf32, #tpu.memory_space<vmem>>, vector<1x128xf32>,
      } else {
      }
      %c0_9 = arith.constant 0 : index
      %c0_10 = arith.constant 0 : index
      %16 = vector.load %arg8[%c0_9, %c0_10] : memref<1x128xf32, #tpu.memory_space<vmem>>, vector<1x128xf32>
      %cst_11 = arith.constant dense<0.000000e+00> : vector<128xf32>
      %17 = vector.multi_reduction <add>, %8, %cst_11 [0] : vector<512x128xf32> to vector<128xf32>
      %18 = vector.shape_cast %17 : vector<128xf32> to vector<1x128xf32>
      %19 = arith.addf %16, %18 : vector<1x128xf32>
      %c0_12 = arith.constant 0 : index
      %c0_13 = arith.constant 0 : index
      %20 = vector.load %arg8[%c0_12, %c0_13] : memref<1x128xf32, #tpu.memory_space<vmem>>, vector<1x128xf32>
      tpu.vector_store %arg8[%c0_12, %c0_13], %19 {strides = array<i32>} : memref<1x128xf32, #tpu.memory_space<vmem>>, vector<1x128xf32>,
      %c0_14 = arith.constant 0 : index
      %c0_15 = arith.constant 0 : index
      %21 = vector.load %arg9[%c0_14, %c0_15] : memref<1x128xf32, #tpu.memory_space<vmem>>, vector<1x128xf32>
      %22 = arith.mulf %8, %8 : vector<512x128xf32>
      %cst_16 = arith.constant dense<0.000000e+00> : vector<128xf32>
      %23 = vector.multi_reduction <add>, %22, %cst_16 [0] : vector<512x128xf32> to vector<128xf32>
      %24 = vector.shape_cast %23 : vector<128xf32> to vector<1x128xf32>
      %25 = arith.addf %21, %24 : vector<1x128xf32>
      %c0_17 = arith.constant 0 : index
      %c0_18 = arith.constant 0 : index
      %26 = vector.load %arg9[%c0_17, %c0_18] : memref<1x128xf32, #tpu.memory_space<vmem>>, vector<1x128xf32>
      tpu.vector_store %arg9[%c0_17, %c0_18], %25 {strides = array<i32>} : memref<1x128xf32, #tpu.memory_space<vmem>>, vector<1x128xf32>,
      %c0_i32_19 = arith.constant 0 : i32
      %27 = arith.cmpi eq, %arg1, %c0_i32_19 : i32
      %28 = arith.extui %27 : i1 to i32
      %c0_i32_20 = arith.constant 0 : i32
      %29 = arith.cmpi ne, %28, %c0_i32_20 : i32
      scf.if %29 {
        %c0_21 = arith.constant 0 : index
        %c0_22 = arith.constant 0 : index
        %30 = vector.load %arg8[%c0_21, %c0_22] : memref<1x128xf32, #tpu.memory_space<vmem>>, vector<1x128xf32>
        %cst_23 = arith.constant 0.001953125 : f32
        %31 = vector.broadcast %cst_23 : f32 to vector<1x128xf32>
        %32 = arith.mulf %30, %31 : vector<1x128xf32>
        %c0_24 = arith.constant 0 : index
        %c0_25 = arith.constant 0 : index
        %33 = vector.load %arg9[%c0_24, %c0_25] : memref<1x128xf32, #tpu.memory_space<vmem>>, vector<1x128xf32>
        %cst_26 = arith.constant 0.001953125 : f32
        %34 = vector.broadcast %cst_26 : f32 to vector<1x128xf32>
        %35 = arith.mulf %33, %34 : vector<1x128xf32>
        %36 = arith.mulf %32, %32 : vector<1x128xf32>
        %37 = arith.subf %35, %36 : vector<1x128xf32>
        %cst_27 = arith.constant 0.000000e+00 : f32
        %38 = vector.broadcast %cst_27 : f32 to vector<1x128xf32>
        %39 = arith.maximumf %37, %38 : vector<1x128xf32>
        %c0_28 = arith.constant 0 : index
        %c0_29 = arith.constant 0 : index
        %40 = vector.load %arg4[%c0_28, %c0_29] : memref<1x128xf32, #tpu.memory_space<vmem>>, vector<1x128xf32>
        %cst_30 = arith.constant 9.99999974E-6 : f32
        %41 = vector.broadcast %cst_30 : f32 to vector<1x128xf32>
        %42 = arith.addf %39, %41 : vector<1x128xf32>
        %43 = math.rsqrt %42 : vector<1x128xf32>
        %44 = arith.mulf %40, %43 : vector<1x128xf32>
        %c0_31 = arith.constant 0 : index
        %c0_32 = arith.constant 0 : index
        %45 = vector.load %arg10[%c0_31, %c0_32] : memref<1x128xf32, #tpu.memory_space<vmem>>, vector<1x128xf32>
        tpu.vector_store %arg10[%c0_31, %c0_32], %44 {strides = array<i32>} : memref<1x128xf32, #tpu.memory_space<vmem>>, vector<1x128xf32>,
        %c0_33 = arith.constant 0 : index
        %c0_34 = arith.constant 0 : index
        %46 = vector.load %arg5[%c0_33, %c0_34] : memref<1x128xf32, #tpu.memory_space<vmem>>, vector<1x128xf32>
        %47 = arith.mulf %32, %44 : vector<1x128xf32>
        %48 = arith.subf %46, %47 : vector<1x128xf32>
        %c0_35 = arith.constant 0 : index
        %c0_36 = arith.constant 0 : index
        %49 = vector.load %arg11[%c0_35, %c0_36] : memref<1x128xf32, #tpu.memory_space<vmem>>, vector<1x128xf32>
        tpu.vector_store %arg11[%c0_35, %c0_36], %48 {strides = array<i32>} : memref<1x128xf32, #tpu.memory_space<vmem>>, vector<1x128xf32>,
      } else {
      }
    } else {
    }
    %c1_i32 = arith.constant 1 : i32
    %3 = arith.cmpi eq, %arg0, %c1_i32 : i32
    %4 = arith.extui %3 : i1 to i32
    %c0_i32_1 = arith.constant 0 : i32
    %5 = arith.cmpi ne, %4, %c0_i32_1 : i32
    scf.if %5 {
      %6 = arith.index_cast %arg1 : i32 to index
      %c0 = arith.constant 0 : index
      %c0_2 = arith.constant 0 : index
      %7 = vector.load %arg7[%6, %c0, %c0_2] : memref<1x512x128xf32, #tpu.memory_space<vmem>>, vector<1x512x128xf32>
      %8 = vector.shape_cast %7 : vector<1x512x128xf32> to vector<512x128xf32>
      %c0_3 = arith.constant 0 : index
      %c0_4 = arith.constant 0 : index
      %9 = vector.load %arg10[%c0_3, %c0_4] : memref<1x128xf32, #tpu.memory_space<vmem>>, vector<1x128xf32>
      %10 = vector.broadcast %9 : vector<1x128xf32> to vector<512x128xf32>
      %11 = arith.mulf %8, %10 : vector<512x128xf32>
      %c0_5 = arith.constant 0 : index
      %c0_6 = arith.constant 0 : index
      %12 = vector.load %arg11[%c0_5, %c0_6] : memref<1x128xf32, #tpu.memory_space<vmem>>, vector<1x128xf32>
      %13 = vector.broadcast %12 : vector<1x128xf32> to vector<512x128xf32>
      %14 = arith.addf %11, %13 : vector<512x128xf32>
      %cst = arith.constant 0.000000e+00 : f32
      %15 = vector.broadcast %cst : f32 to vector<512x128xf32>
      %16 = arith.cmpf ogt, %14, %15 : vector<512x128xf32>
      %cst_7 = arith.constant 2.000000e-01 : f32
      %17 = vector.broadcast %cst_7 : f32 to vector<512x128xf32>
      %18 = arith.mulf %17, %14 : vector<512x128xf32>
      %19 = arith.select %16, %14, %18 : vector<512x128xi1>, vector<512x128xf32>
      %20 = arith.truncf %19 : vector<512x128xf32> to vector<512x128xbf16>
      %c0_8 = arith.constant 0 : index
      %c0_9 = arith.constant 0 : index
      %21 = vector.load %arg6[%c0_8, %c0_9] : memref<512x128xbf16, #tpu.memory_space<vmem>>, vector<512x128xbf16>
      tpu.vector_store %arg6[%c0_8, %c0_9], %20 {strides = array<i32>} : memref<512x128xbf16, #tpu.memory_space<vmem>>, vector<512x128xbf16>,
    } else {
    }
    return
  }
  func.func @transform_0(%arg0: i32, %arg1: i32) -> (i32, i32) {
    %c1_i32 = arith.constant 1 : i32
    %0 = arith.subi %c1_i32, %arg0 : i32
    %1 = arith.muli %0, %arg1 : i32
    %c0_i32 = arith.constant 0 : i32
    %c0_i32_0 = arith.constant 0 : i32
    return %1, %c0_i32 : i32, i32
  }
  func.func @transform_1(%arg0: i32, %arg1: i32) -> (i32, i32) {
    %c0_i32 = arith.constant 0 : i32
    %c0_i32_0 = arith.constant 0 : i32
    %c0_i32_1 = arith.constant 0 : i32
    return %c0_i32, %c0_i32_0 : i32, i32
  }
  func.func @transform_2(%arg0: i32, %arg1: i32) -> (i32, i32) {
    %c0_i32 = arith.constant 0 : i32
    %c0_i32_0 = arith.constant 0 : i32
    %c0_i32_1 = arith.constant 0 : i32
    return %c0_i32, %c0_i32_0 : i32, i32
  }
  func.func @transform_3(%arg0: i32, %arg1: i32) -> (i32, i32) {
    %c0_i32 = arith.constant 0 : i32
    %c0_i32_0 = arith.constant 0 : i32
    %c0_i32_1 = arith.constant 0 : i32
    return %c0_i32, %c0_i32_0 : i32, i32
  }
  func.func @transform_4(%arg0: i32, %arg1: i32) -> (i32, i32) {
    %0 = arith.muli %arg0, %arg1 : i32
    %c0_i32 = arith.constant 0 : i32
    %c0_i32_0 = arith.constant 0 : i32
    return %0, %c0_i32 : i32, i32
  }
}

module attributes {stable_mosaic.version = 11 : i64} {
  func.func @kernel(%arg0: i32, %arg1: i32, %arg2: memref<128x256xbf16, #tpu.memory_space<vmem>>, %arg3: memref<256x128xbf16, #tpu.memory_space<vmem>>, %arg4: memref<1x128xf32, #tpu.memory_space<vmem>>, %arg5: memref<1x128xf32, #tpu.memory_space<vmem>>, %arg6: memref<128x128xbf16, #tpu.memory_space<vmem>>, %arg7: memref<1x128x128xf32, #tpu.memory_space<vmem>>, %arg8: memref<1x128xf32, #tpu.memory_space<vmem>>, %arg9: memref<1x128xf32, #tpu.memory_space<vmem>>, %arg10: memref<1x128xf32, #tpu.memory_space<vmem>>, %arg11: memref<1x128xf32, #tpu.memory_space<vmem>>) attributes {dimension_semantics = [#tpu.dimension_semantics<arbitrary>, #tpu.dimension_semantics<arbitrary>], iteration_bounds = array<i64: 2, 1>, scalar_prefetch = 0 : i64, scratch_operands = 5 : i64, tpu.core_type = #tpu.core_type<tc>, window_params = [{transform_indices = @transform_0, window_bounds = array<i64: 128, 256>}, {pipeline_mode = #tpu.pipeline_mode<synchronous>, transform_indices = @transform_1, window_bounds = array<i64: 256, 128>}, {pipeline_mode = #tpu.pipeline_mode<synchronous>, transform_indices = @transform_2, window_bounds = array<i64: 1, 128>}, {pipeline_mode = #tpu.pipeline_mode<synchronous>, transform_indices = @transform_3, window_bounds = array<i64: 1, 128>}, {transform_indices = @transform_4, window_bounds = array<i64: 128, 128>}]} {
    %c0_i32 = arith.constant 0 : i32
    %0 = arith.cmpi eq, %arg0, %c0_i32 : i32
    %1 = arith.extui %0 : i1 to i32
    %c0_i32_0 = arith.constant 0 : i32
    %2 = arith.cmpi ne, %1, %c0_i32_0 : i32
    scf.if %2 {
      %c0 = arith.constant 0 : index
      %c0_2 = arith.constant 0 : index
      %6 = vector.load %arg2[%c0, %c0_2] : memref<128x256xbf16, #tpu.memory_space<vmem>>, vector<128x256xbf16>
      %c0_3 = arith.constant 0 : index
      %c0_4 = arith.constant 0 : index
      %7 = vector.load %arg3[%c0_3, %c0_4] : memref<256x128xbf16, #tpu.memory_space<vmem>>, vector<256x128xbf16>
      %cst = arith.constant dense<0.000000e+00> : vector<128x128xf32>
      %8 = tpu.matmul %6, %7, %cst {dimension_numbers = #tpu.dot_dimension_numbers<[1], [0], [0], [1], [0, 0, 1, 1], [], []>} : vector<128x256xbf16>, vector<256x128xbf16>, vector<128x128xf32> -> vector<128x128xf32>
      %9 = arith.index_cast %arg1 : i32 to index
      %c0_5 = arith.constant 0 : index
      %c0_6 = arith.constant 0 : index
      %10 = vector.load %arg7[%9, %c0_5, %c0_6] : memref<1x128x128xf32, #tpu.memory_space<vmem>>, vector<1x128x128xf32>
      %11 = vector.shape_cast %10 : vector<1x128x128xf32> to vector<128x128xf32>
      %12 = vector.shape_cast %8 : vector<128x128xf32> to vector<1x128x128xf32>
      tpu.vector_store %arg7[%9, %c0_5, %c0_6], %12 {strides = array<i32>} : memref<1x128x128xf32, #tpu.memory_space<vmem>>, vector<1x128x128xf32>,
      %c0_i32_7 = arith.constant 0 : i32
      %13 = arith.cmpi eq, %arg1, %c0_i32_7 : i32
      %14 = arith.extui %13 : i1 to i32
      %c0_i32_8 = arith.constant 0 : i32
      %15 = arith.cmpi ne, %14, %c0_i32_8 : i32
      scf.if %15 {
        %cst_21 = arith.constant 0.000000e+00 : f32
        %30 = vector.broadcast %cst_21 : f32 to vector<1x128xf32>
        %c0_22 = arith.constant 0 : index
        %c0_23 = arith.constant 0 : index
        %31 = vector.load %arg8[%c0_22, %c0_23] : memref<1x128xf32, #tpu.memory_space<vmem>>, vector<1x128xf32>
        tpu.vector_store %arg8[%c0_22, %c0_23], %30 {strides = array<i32>} : memref<1x128xf32, #tpu.memory_space<vmem>>, vector<1x128xf32>,
        %cst_24 = arith.constant 0.000000e+00 : f32
        %32 = vector.broadcast %cst_24 : f32 to vector<1x128xf32>
        %c0_25 = arith.constant 0 : index
        %c0_26 = arith.constant 0 : index
        %33 = vector.load %arg9[%c0_25, %c0_26] : memref<1x128xf32, #tpu.memory_space<vmem>>, vector<1x128xf32>
        tpu.vector_store %arg9[%c0_25, %c0_26], %32 {strides = array<i32>} : memref<1x128xf32, #tpu.memory_space<vmem>>, vector<1x128xf32>,
      } else {
      }
      %c0_9 = arith.constant 0 : index
      %c0_10 = arith.constant 0 : index
      %16 = vector.load %arg8[%c0_9, %c0_10] : memref<1x128xf32, #tpu.memory_space<vmem>>, vector<1x128xf32>
      %cst_11 = arith.constant dense<0.000000e+00> : vector<128xf32>
      %17 = vector.multi_reduction <add>, %8, %cst_11 [0] : vector<128x128xf32> to vector<128xf32>
      %18 = vector.shape_cast %17 : vector<128xf32> to vector<1x128xf32>
      %19 = arith.addf %16, %18 : vector<1x128xf32>
      %c0_12 = arith.constant 0 : index
      %c0_13 = arith.constant 0 : index
      %20 = vector.load %arg8[%c0_12, %c0_13] : memref<1x128xf32, #tpu.memory_space<vmem>>, vector<1x128xf32>
      tpu.vector_store %arg8[%c0_12, %c0_13], %19 {strides = array<i32>} : memref<1x128xf32, #tpu.memory_space<vmem>>, vector<1x128xf32>,
      %c0_14 = arith.constant 0 : index
      %c0_15 = arith.constant 0 : index
      %21 = vector.load %arg9[%c0_14, %c0_15] : memref<1x128xf32, #tpu.memory_space<vmem>>, vector<1x128xf32>
      %22 = arith.mulf %8, %8 : vector<128x128xf32>
      %cst_16 = arith.constant dense<0.000000e+00> : vector<128xf32>
      %23 = vector.multi_reduction <add>, %22, %cst_16 [0] : vector<128x128xf32> to vector<128xf32>
      %24 = vector.shape_cast %23 : vector<128xf32> to vector<1x128xf32>
      %25 = arith.addf %21, %24 : vector<1x128xf32>
      %c0_17 = arith.constant 0 : index
      %c0_18 = arith.constant 0 : index
      %26 = vector.load %arg9[%c0_17, %c0_18] : memref<1x128xf32, #tpu.memory_space<vmem>>, vector<1x128xf32>
      tpu.vector_store %arg9[%c0_17, %c0_18], %25 {strides = array<i32>} : memref<1x128xf32, #tpu.memory_space<vmem>>, vector<1x128xf32>,
      %c0_i32_19 = arith.constant 0 : i32
      %27 = arith.cmpi eq, %arg1, %c0_i32_19 : i32
      %28 = arith.extui %27 : i1 to i32
      %c0_i32_20 = arith.constant 0 : i32
      %29 = arith.cmpi ne, %28, %c0_i32_20 : i32
      scf.if %29 {
        %c0_21 = arith.constant 0 : index
        %c0_22 = arith.constant 0 : index
        %30 = vector.load %arg8[%c0_21, %c0_22] : memref<1x128xf32, #tpu.memory_space<vmem>>, vector<1x128xf32>
        %cst_23 = arith.constant 7.812500e-03 : f32
        %31 = vector.broadcast %cst_23 : f32 to vector<1x128xf32>
        %32 = arith.mulf %30, %31 : vector<1x128xf32>
        %c0_24 = arith.constant 0 : index
        %c0_25 = arith.constant 0 : index
        %33 = vector.load %arg9[%c0_24, %c0_25] : memref<1x128xf32, #tpu.memory_space<vmem>>, vector<1x128xf32>
        %cst_26 = arith.constant 7.812500e-03 : f32
        %34 = vector.broadcast %cst_26 : f32 to vector<1x128xf32>
        %35 = arith.mulf %33, %34 : vector<1x128xf32>
        %36 = arith.mulf %32, %32 : vector<1x128xf32>
        %37 = arith.subf %35, %36 : vector<1x128xf32>
        %cst_27 = arith.constant 0.000000e+00 : f32
        %38 = vector.broadcast %cst_27 : f32 to vector<1x128xf32>
        %39 = arith.maximumf %37, %38 : vector<1x128xf32>
        %c0_28 = arith.constant 0 : index
        %c0_29 = arith.constant 0 : index
        %40 = vector.load %arg4[%c0_28, %c0_29] : memref<1x128xf32, #tpu.memory_space<vmem>>, vector<1x128xf32>
        %cst_30 = arith.constant 9.99999974E-6 : f32
        %41 = vector.broadcast %cst_30 : f32 to vector<1x128xf32>
        %42 = arith.addf %39, %41 : vector<1x128xf32>
        %43 = math.rsqrt %42 : vector<1x128xf32>
        %44 = arith.mulf %40, %43 : vector<1x128xf32>
        %c0_31 = arith.constant 0 : index
        %c0_32 = arith.constant 0 : index
        %45 = vector.load %arg10[%c0_31, %c0_32] : memref<1x128xf32, #tpu.memory_space<vmem>>, vector<1x128xf32>
        tpu.vector_store %arg10[%c0_31, %c0_32], %44 {strides = array<i32>} : memref<1x128xf32, #tpu.memory_space<vmem>>, vector<1x128xf32>,
        %c0_33 = arith.constant 0 : index
        %c0_34 = arith.constant 0 : index
        %46 = vector.load %arg5[%c0_33, %c0_34] : memref<1x128xf32, #tpu.memory_space<vmem>>, vector<1x128xf32>
        %47 = arith.mulf %32, %44 : vector<1x128xf32>
        %48 = arith.subf %46, %47 : vector<1x128xf32>
        %c0_35 = arith.constant 0 : index
        %c0_36 = arith.constant 0 : index
        %49 = vector.load %arg11[%c0_35, %c0_36] : memref<1x128xf32, #tpu.memory_space<vmem>>, vector<1x128xf32>
        tpu.vector_store %arg11[%c0_35, %c0_36], %48 {strides = array<i32>} : memref<1x128xf32, #tpu.memory_space<vmem>>, vector<1x128xf32>,
      } else {
      }
    } else {
    }
    %c1_i32 = arith.constant 1 : i32
    %3 = arith.cmpi eq, %arg0, %c1_i32 : i32
    %4 = arith.extui %3 : i1 to i32
    %c0_i32_1 = arith.constant 0 : i32
    %5 = arith.cmpi ne, %4, %c0_i32_1 : i32
    scf.if %5 {
      %6 = arith.index_cast %arg1 : i32 to index
      %c0 = arith.constant 0 : index
      %c0_2 = arith.constant 0 : index
      %7 = vector.load %arg7[%6, %c0, %c0_2] : memref<1x128x128xf32, #tpu.memory_space<vmem>>, vector<1x128x128xf32>
      %8 = vector.shape_cast %7 : vector<1x128x128xf32> to vector<128x128xf32>
      %c0_3 = arith.constant 0 : index
      %c0_4 = arith.constant 0 : index
      %9 = vector.load %arg10[%c0_3, %c0_4] : memref<1x128xf32, #tpu.memory_space<vmem>>, vector<1x128xf32>
      %10 = vector.broadcast %9 : vector<1x128xf32> to vector<128x128xf32>
      %11 = arith.mulf %8, %10 : vector<128x128xf32>
      %c0_5 = arith.constant 0 : index
      %c0_6 = arith.constant 0 : index
      %12 = vector.load %arg11[%c0_5, %c0_6] : memref<1x128xf32, #tpu.memory_space<vmem>>, vector<1x128xf32>
      %13 = vector.broadcast %12 : vector<1x128xf32> to vector<128x128xf32>
      %14 = arith.addf %11, %13 : vector<128x128xf32>
      %cst = arith.constant 0.000000e+00 : f32
      %15 = vector.broadcast %cst : f32 to vector<128x128xf32>
      %16 = arith.cmpf ogt, %14, %15 : vector<128x128xf32>
      %cst_7 = arith.constant 2.000000e-01 : f32
      %17 = vector.broadcast %cst_7 : f32 to vector<128x128xf32>
      %18 = arith.mulf %17, %14 : vector<128x128xf32>
      %19 = arith.select %16, %14, %18 : vector<128x128xi1>, vector<128x128xf32>
      %20 = arith.truncf %19 : vector<128x128xf32> to vector<128x128xbf16>
      %c0_8 = arith.constant 0 : index
      %c0_9 = arith.constant 0 : index
      %21 = vector.load %arg6[%c0_8, %c0_9] : memref<128x128xbf16, #tpu.memory_space<vmem>>, vector<128x128xbf16>
      tpu.vector_store %arg6[%c0_8, %c0_9], %20 {strides = array<i32>} : memref<128x128xbf16, #tpu.memory_space<vmem>>, vector<128x128xbf16>,
    } else {
    }
    return
  }
  func.func @transform_0(%arg0: i32, %arg1: i32) -> (i32, i32) {
    %c1_i32 = arith.constant 1 : i32
    %0 = arith.subi %c1_i32, %arg0 : i32
    %1 = arith.muli %0, %arg1 : i32
    %c0_i32 = arith.constant 0 : i32
    %c0_i32_0 = arith.constant 0 : i32
    return %1, %c0_i32 : i32, i32
  }
  func.func @transform_1(%arg0: i32, %arg1: i32) -> (i32, i32) {
    %c0_i32 = arith.constant 0 : i32
    %c0_i32_0 = arith.constant 0 : i32
    %c0_i32_1 = arith.constant 0 : i32
    return %c0_i32, %c0_i32_0 : i32, i32
  }
  func.func @transform_2(%arg0: i32, %arg1: i32) -> (i32, i32) {
    %c0_i32 = arith.constant 0 : i32
    %c0_i32_0 = arith.constant 0 : i32
    %c0_i32_1 = arith.constant 0 : i32
    return %c0_i32, %c0_i32_0 : i32, i32
  }
  func.func @transform_3(%arg0: i32, %arg1: i32) -> (i32, i32) {
    %c0_i32 = arith.constant 0 : i32
    %c0_i32_0 = arith.constant 0 : i32
    %c0_i32_1 = arith.constant 0 : i32
    return %c0_i32, %c0_i32_0 : i32, i32
  }
  func.func @transform_4(%arg0: i32, %arg1: i32) -> (i32, i32) {
    %0 = arith.muli %arg0, %arg1 : i32
    %c0_i32 = arith.constant 0 : i32
    %c0_i32_0 = arith.constant 0 : i32
    return %0, %c0_i32 : i32, i32
  }
}

module attributes {stable_mosaic.version = 11 : i64} {
  func.func @kernel(%arg0: i32, %arg1: i32, %arg2: memref<32x512xbf16, #tpu.memory_space<vmem>>, %arg3: memref<512x128xbf16, #tpu.memory_space<vmem>>, %arg4: memref<1x128xf32, #tpu.memory_space<vmem>>, %arg5: memref<1x128xf32, #tpu.memory_space<vmem>>, %arg6: memref<32x128xbf16, #tpu.memory_space<vmem>>, %arg7: memref<1x32x128xf32, #tpu.memory_space<vmem>>, %arg8: memref<1x128xf32, #tpu.memory_space<vmem>>, %arg9: memref<1x128xf32, #tpu.memory_space<vmem>>, %arg10: memref<1x128xf32, #tpu.memory_space<vmem>>, %arg11: memref<1x128xf32, #tpu.memory_space<vmem>>) attributes {dimension_semantics = [#tpu.dimension_semantics<arbitrary>, #tpu.dimension_semantics<arbitrary>], iteration_bounds = array<i64: 2, 1>, scalar_prefetch = 0 : i64, scratch_operands = 5 : i64, tpu.core_type = #tpu.core_type<tc>, window_params = [{transform_indices = @transform_0, window_bounds = array<i64: 32, 512>}, {pipeline_mode = #tpu.pipeline_mode<synchronous>, transform_indices = @transform_1, window_bounds = array<i64: 512, 128>}, {pipeline_mode = #tpu.pipeline_mode<synchronous>, transform_indices = @transform_2, window_bounds = array<i64: 1, 128>}, {pipeline_mode = #tpu.pipeline_mode<synchronous>, transform_indices = @transform_3, window_bounds = array<i64: 1, 128>}, {transform_indices = @transform_4, window_bounds = array<i64: 32, 128>}]} {
    %c0_i32 = arith.constant 0 : i32
    %0 = arith.cmpi eq, %arg0, %c0_i32 : i32
    %1 = arith.extui %0 : i1 to i32
    %c0_i32_0 = arith.constant 0 : i32
    %2 = arith.cmpi ne, %1, %c0_i32_0 : i32
    scf.if %2 {
      %c0 = arith.constant 0 : index
      %c0_2 = arith.constant 0 : index
      %6 = vector.load %arg2[%c0, %c0_2] : memref<32x512xbf16, #tpu.memory_space<vmem>>, vector<32x512xbf16>
      %c0_3 = arith.constant 0 : index
      %c0_4 = arith.constant 0 : index
      %7 = vector.load %arg3[%c0_3, %c0_4] : memref<512x128xbf16, #tpu.memory_space<vmem>>, vector<512x128xbf16>
      %cst = arith.constant dense<0.000000e+00> : vector<32x128xf32>
      %8 = tpu.matmul %6, %7, %cst {dimension_numbers = #tpu.dot_dimension_numbers<[1], [0], [0], [1], [0, 0, 1, 1], [], []>} : vector<32x512xbf16>, vector<512x128xbf16>, vector<32x128xf32> -> vector<32x128xf32>
      %9 = arith.index_cast %arg1 : i32 to index
      %c0_5 = arith.constant 0 : index
      %c0_6 = arith.constant 0 : index
      %10 = vector.load %arg7[%9, %c0_5, %c0_6] : memref<1x32x128xf32, #tpu.memory_space<vmem>>, vector<1x32x128xf32>
      %11 = vector.shape_cast %10 : vector<1x32x128xf32> to vector<32x128xf32>
      %12 = vector.shape_cast %8 : vector<32x128xf32> to vector<1x32x128xf32>
      tpu.vector_store %arg7[%9, %c0_5, %c0_6], %12 {strides = array<i32>} : memref<1x32x128xf32, #tpu.memory_space<vmem>>, vector<1x32x128xf32>,
      %c0_i32_7 = arith.constant 0 : i32
      %13 = arith.cmpi eq, %arg1, %c0_i32_7 : i32
      %14 = arith.extui %13 : i1 to i32
      %c0_i32_8 = arith.constant 0 : i32
      %15 = arith.cmpi ne, %14, %c0_i32_8 : i32
      scf.if %15 {
        %cst_21 = arith.constant 0.000000e+00 : f32
        %30 = vector.broadcast %cst_21 : f32 to vector<1x128xf32>
        %c0_22 = arith.constant 0 : index
        %c0_23 = arith.constant 0 : index
        %31 = vector.load %arg8[%c0_22, %c0_23] : memref<1x128xf32, #tpu.memory_space<vmem>>, vector<1x128xf32>
        tpu.vector_store %arg8[%c0_22, %c0_23], %30 {strides = array<i32>} : memref<1x128xf32, #tpu.memory_space<vmem>>, vector<1x128xf32>,
        %cst_24 = arith.constant 0.000000e+00 : f32
        %32 = vector.broadcast %cst_24 : f32 to vector<1x128xf32>
        %c0_25 = arith.constant 0 : index
        %c0_26 = arith.constant 0 : index
        %33 = vector.load %arg9[%c0_25, %c0_26] : memref<1x128xf32, #tpu.memory_space<vmem>>, vector<1x128xf32>
        tpu.vector_store %arg9[%c0_25, %c0_26], %32 {strides = array<i32>} : memref<1x128xf32, #tpu.memory_space<vmem>>, vector<1x128xf32>,
      } else {
      }
      %c0_9 = arith.constant 0 : index
      %c0_10 = arith.constant 0 : index
      %16 = vector.load %arg8[%c0_9, %c0_10] : memref<1x128xf32, #tpu.memory_space<vmem>>, vector<1x128xf32>
      %cst_11 = arith.constant dense<0.000000e+00> : vector<128xf32>
      %17 = vector.multi_reduction <add>, %8, %cst_11 [0] : vector<32x128xf32> to vector<128xf32>
      %18 = vector.shape_cast %17 : vector<128xf32> to vector<1x128xf32>
      %19 = arith.addf %16, %18 : vector<1x128xf32>
      %c0_12 = arith.constant 0 : index
      %c0_13 = arith.constant 0 : index
      %20 = vector.load %arg8[%c0_12, %c0_13] : memref<1x128xf32, #tpu.memory_space<vmem>>, vector<1x128xf32>
      tpu.vector_store %arg8[%c0_12, %c0_13], %19 {strides = array<i32>} : memref<1x128xf32, #tpu.memory_space<vmem>>, vector<1x128xf32>,
      %c0_14 = arith.constant 0 : index
      %c0_15 = arith.constant 0 : index
      %21 = vector.load %arg9[%c0_14, %c0_15] : memref<1x128xf32, #tpu.memory_space<vmem>>, vector<1x128xf32>
      %22 = arith.mulf %8, %8 : vector<32x128xf32>
      %cst_16 = arith.constant dense<0.000000e+00> : vector<128xf32>
      %23 = vector.multi_reduction <add>, %22, %cst_16 [0] : vector<32x128xf32> to vector<128xf32>
      %24 = vector.shape_cast %23 : vector<128xf32> to vector<1x128xf32>
      %25 = arith.addf %21, %24 : vector<1x128xf32>
      %c0_17 = arith.constant 0 : index
      %c0_18 = arith.constant 0 : index
      %26 = vector.load %arg9[%c0_17, %c0_18] : memref<1x128xf32, #tpu.memory_space<vmem>>, vector<1x128xf32>
      tpu.vector_store %arg9[%c0_17, %c0_18], %25 {strides = array<i32>} : memref<1x128xf32, #tpu.memory_space<vmem>>, vector<1x128xf32>,
      %c0_i32_19 = arith.constant 0 : i32
      %27 = arith.cmpi eq, %arg1, %c0_i32_19 : i32
      %28 = arith.extui %27 : i1 to i32
      %c0_i32_20 = arith.constant 0 : i32
      %29 = arith.cmpi ne, %28, %c0_i32_20 : i32
      scf.if %29 {
        %c0_21 = arith.constant 0 : index
        %c0_22 = arith.constant 0 : index
        %30 = vector.load %arg8[%c0_21, %c0_22] : memref<1x128xf32, #tpu.memory_space<vmem>>, vector<1x128xf32>
        %cst_23 = arith.constant 3.125000e-02 : f32
        %31 = vector.broadcast %cst_23 : f32 to vector<1x128xf32>
        %32 = arith.mulf %30, %31 : vector<1x128xf32>
        %c0_24 = arith.constant 0 : index
        %c0_25 = arith.constant 0 : index
        %33 = vector.load %arg9[%c0_24, %c0_25] : memref<1x128xf32, #tpu.memory_space<vmem>>, vector<1x128xf32>
        %cst_26 = arith.constant 3.125000e-02 : f32
        %34 = vector.broadcast %cst_26 : f32 to vector<1x128xf32>
        %35 = arith.mulf %33, %34 : vector<1x128xf32>
        %36 = arith.mulf %32, %32 : vector<1x128xf32>
        %37 = arith.subf %35, %36 : vector<1x128xf32>
        %cst_27 = arith.constant 0.000000e+00 : f32
        %38 = vector.broadcast %cst_27 : f32 to vector<1x128xf32>
        %39 = arith.maximumf %37, %38 : vector<1x128xf32>
        %c0_28 = arith.constant 0 : index
        %c0_29 = arith.constant 0 : index
        %40 = vector.load %arg4[%c0_28, %c0_29] : memref<1x128xf32, #tpu.memory_space<vmem>>, vector<1x128xf32>
        %cst_30 = arith.constant 9.99999974E-6 : f32
        %41 = vector.broadcast %cst_30 : f32 to vector<1x128xf32>
        %42 = arith.addf %39, %41 : vector<1x128xf32>
        %43 = math.rsqrt %42 : vector<1x128xf32>
        %44 = arith.mulf %40, %43 : vector<1x128xf32>
        %c0_31 = arith.constant 0 : index
        %c0_32 = arith.constant 0 : index
        %45 = vector.load %arg10[%c0_31, %c0_32] : memref<1x128xf32, #tpu.memory_space<vmem>>, vector<1x128xf32>
        tpu.vector_store %arg10[%c0_31, %c0_32], %44 {strides = array<i32>} : memref<1x128xf32, #tpu.memory_space<vmem>>, vector<1x128xf32>,
        %c0_33 = arith.constant 0 : index
        %c0_34 = arith.constant 0 : index
        %46 = vector.load %arg5[%c0_33, %c0_34] : memref<1x128xf32, #tpu.memory_space<vmem>>, vector<1x128xf32>
        %47 = arith.mulf %32, %44 : vector<1x128xf32>
        %48 = arith.subf %46, %47 : vector<1x128xf32>
        %c0_35 = arith.constant 0 : index
        %c0_36 = arith.constant 0 : index
        %49 = vector.load %arg11[%c0_35, %c0_36] : memref<1x128xf32, #tpu.memory_space<vmem>>, vector<1x128xf32>
        tpu.vector_store %arg11[%c0_35, %c0_36], %48 {strides = array<i32>} : memref<1x128xf32, #tpu.memory_space<vmem>>, vector<1x128xf32>,
      } else {
      }
    } else {
    }
    %c1_i32 = arith.constant 1 : i32
    %3 = arith.cmpi eq, %arg0, %c1_i32 : i32
    %4 = arith.extui %3 : i1 to i32
    %c0_i32_1 = arith.constant 0 : i32
    %5 = arith.cmpi ne, %4, %c0_i32_1 : i32
    scf.if %5 {
      %6 = arith.index_cast %arg1 : i32 to index
      %c0 = arith.constant 0 : index
      %c0_2 = arith.constant 0 : index
      %7 = vector.load %arg7[%6, %c0, %c0_2] : memref<1x32x128xf32, #tpu.memory_space<vmem>>, vector<1x32x128xf32>
      %8 = vector.shape_cast %7 : vector<1x32x128xf32> to vector<32x128xf32>
      %c0_3 = arith.constant 0 : index
      %c0_4 = arith.constant 0 : index
      %9 = vector.load %arg10[%c0_3, %c0_4] : memref<1x128xf32, #tpu.memory_space<vmem>>, vector<1x128xf32>
      %10 = vector.broadcast %9 : vector<1x128xf32> to vector<32x128xf32>
      %11 = arith.mulf %8, %10 : vector<32x128xf32>
      %c0_5 = arith.constant 0 : index
      %c0_6 = arith.constant 0 : index
      %12 = vector.load %arg11[%c0_5, %c0_6] : memref<1x128xf32, #tpu.memory_space<vmem>>, vector<1x128xf32>
      %13 = vector.broadcast %12 : vector<1x128xf32> to vector<32x128xf32>
      %14 = arith.addf %11, %13 : vector<32x128xf32>
      %cst = arith.constant 0.000000e+00 : f32
      %15 = vector.broadcast %cst : f32 to vector<32x128xf32>
      %16 = arith.cmpf ogt, %14, %15 : vector<32x128xf32>
      %cst_7 = arith.constant 2.000000e-01 : f32
      %17 = vector.broadcast %cst_7 : f32 to vector<32x128xf32>
      %18 = arith.mulf %17, %14 : vector<32x128xf32>
      %19 = arith.select %16, %14, %18 : vector<32x128xi1>, vector<32x128xf32>
      %20 = arith.truncf %19 : vector<32x128xf32> to vector<32x128xbf16>
      %c0_8 = arith.constant 0 : index
      %c0_9 = arith.constant 0 : index
      %21 = vector.load %arg6[%c0_8, %c0_9] : memref<32x128xbf16, #tpu.memory_space<vmem>>, vector<32x128xbf16>
      tpu.vector_store %arg6[%c0_8, %c0_9], %20 {strides = array<i32>} : memref<32x128xbf16, #tpu.memory_space<vmem>>, vector<32x128xbf16>,
    } else {
    }
    return
  }
  func.func @transform_0(%arg0: i32, %arg1: i32) -> (i32, i32) {
    %c1_i32 = arith.constant 1 : i32
    %0 = arith.subi %c1_i32, %arg0 : i32
    %1 = arith.muli %0, %arg1 : i32
    %c0_i32 = arith.constant 0 : i32
    %c0_i32_0 = arith.constant 0 : i32
    return %1, %c0_i32 : i32, i32
  }
  func.func @transform_1(%arg0: i32, %arg1: i32) -> (i32, i32) {
    %c0_i32 = arith.constant 0 : i32
    %c0_i32_0 = arith.constant 0 : i32
    %c0_i32_1 = arith.constant 0 : i32
    return %c0_i32, %c0_i32_0 : i32, i32
  }
  func.func @transform_2(%arg0: i32, %arg1: i32) -> (i32, i32) {
    %c0_i32 = arith.constant 0 : i32
    %c0_i32_0 = arith.constant 0 : i32
    %c0_i32_1 = arith.constant 0 : i32
    return %c0_i32, %c0_i32_0 : i32, i32
  }
  func.func @transform_3(%arg0: i32, %arg1: i32) -> (i32, i32) {
    %c0_i32 = arith.constant 0 : i32
    %c0_i32_0 = arith.constant 0 : i32
    %c0_i32_1 = arith.constant 0 : i32
    return %c0_i32, %c0_i32_0 : i32, i32
  }
  func.func @transform_4(%arg0: i32, %arg1: i32) -> (i32, i32) {
    %0 = arith.muli %arg0, %arg1 : i32
    %c0_i32 = arith.constant 0 : i32
    %c0_i32_0 = arith.constant 0 : i32
    return %0, %c0_i32 : i32, i32
  }
}

module attributes {stable_mosaic.version = 11 : i64} {
  func.func @_final_reduce_kernel(%arg0: memref<2x1024xbf16, #tpu.memory_space<vmem>>, %arg1: memref<1x1024xf32, #tpu.memory_space<vmem>>, %arg2: memref<1x1xf32, #tpu.memory_space<vmem>>, %arg3: memref<2x1xf32, #tpu.memory_space<vmem>>) attributes {dimension_semantics = [], scalar_prefetch = 0 : i64, scratch_operands = 0 : i64, tpu.core_type = #tpu.core_type<tc>} {
    %c0 = arith.constant 0 : index
    %c0_0 = arith.constant 0 : index
    %0 = vector.load %arg0[%c0, %c0_0] : memref<2x1024xbf16, #tpu.memory_space<vmem>>, vector<2x1024xbf16>
    %1 = arith.extf %0 : vector<2x1024xbf16> to vector<2x1024xf32>
    %c0_1 = arith.constant 0 : index
    %c0_2 = arith.constant 0 : index
    %2 = vector.load %arg1[%c0_1, %c0_2] : memref<1x1024xf32, #tpu.memory_space<vmem>>, vector<1x1024xf32>
    %3 = vector.broadcast %2 : vector<1x1024xf32> to vector<2x1024xf32>
    %4 = arith.mulf %1, %3 : vector<2x1024xf32>
    %cst = arith.constant dense<0.000000e+00> : vector<2xf32>
    %5 = vector.multi_reduction <add>, %4, %cst [1] : vector<2x1024xf32> to vector<2xf32>
    %6 = vector.shape_cast %5 : vector<2xf32> to vector<2x1xf32>
    %c0_3 = arith.constant 0 : index
    %c0_4 = arith.constant 0 : index
    %7 = vector.load %arg2[%c0_3, %c0_4] : memref<1x1xf32, #tpu.memory_space<vmem>>, vector<1x1xf32>
    %8 = vector.broadcast %7 : vector<1x1xf32> to vector<2x1xf32>
    %9 = arith.addf %6, %8 : vector<2x1xf32>
    %c0_5 = arith.constant 0 : index
    %c0_6 = arith.constant 0 : index
    %10 = vector.load %arg3[%c0_5, %c0_6] : memref<2x1xf32, #tpu.memory_space<vmem>>, vector<2x1xf32>
    tpu.vector_store %arg3[%c0_5, %c0_6], %9 {strides = array<i32>} : memref<2x1xf32, #tpu.memory_space<vmem>>, vector<2x1xf32>,
    return
  }
}

</mosaic_0001>

<llo_original>
// kernel: discriminator_forward.5
$region0: #{discriminator_forward.5}
  #allocation0 [shape = 'u32[]', space=smem, size = 0x4, offset = 0x4, fixed_abs, tag = 'smem constant byte address 0x4 - core index']
  #allocation1 [shape = 'u32[144,128]{1,0:T(1,128)}', space=vmem, size = 0x12000, scoped, tag = 'internal scratch']
  %s0 = inlined_call_operand.vmem [shape: bf16[2048,64], index: 0, kind: input, shape index: {}]
  %s1 = inlined_call_operand.vmem [shape: bf16[64,128], index: 1, kind: input, shape index: {}]
  %s2 = inlined_call_operand.vmem [shape: f32[1,128], index: 2, kind: input, shape index: {}]
  %s3 = inlined_call_operand.vmem [shape: bf16[2048,128], index: 3, kind: output, shape index: {}]
  %s4 = sld [smem:[#allocation0]]
  $region45: #{discriminator_forward.5} parent=0
    _
  %s6 = ssub.s32 1, %s4
  %s7 = scalar_select 0, %s6, %s4
  loop: start=0, step=1, limit=6
  $region2: #{discriminator_forward.5} parent=0 // loop_pre_header
    _
  $region3: #{discriminator_forward.5} parent=0 // loop_header
    %s9 = sphi 0, %s13
    %p10 = scmp.ge.s32.totalorder %s9, 6
    %s19 = sphi 0, %s21
    %s22 = sphi 0, %s19
    %s23 = sphi 0, %s22
    %s39 = sphi 0, %s23
    %s43 = sphi 0, %s43
    %s45 = sphi 0, %s43
    %s46 = sphi 0, %s45
    %s60 = sphi 0, %s46
    %s64 = sphi 0, %s64
    %s66 = sphi 0, %s64
    %s67 = sphi 0, %s66
    %s81 = sphi 0, %s67
    %s87 = sphi 0, %s89
    %s90 = sphi 0, %s87
    %s91 = sphi 0, %s90
    %s107 = sphi 0, %s91
  $region4: #{discriminator_forward.5} parent=0 // loop_header_branch
    %12 = sbr.rel (%p10) target = $region8
  $region5: #{discriminator_forward.5} parent=0 // loop_body
    %s14 = ssub.s32 %s9, 1
    %s15 = ssub.s32 %s9, 2
    %s16 = sadd.s32 %s9, 1
    %s17 = ssub.s32 %s9, %s16
    %p18 = scmp.eq.s32.totalorder %s17, 0
    %s20 = sadd.s32 %s19, 1
    %s21 = scalar_select %p18, %s19, %s20
    %p24 = pneg %p18
    %p25 = scmp.eq.s32.totalorder %s9, 3
    %p26 = por %p24, %p25
    %p27 = scmp.ne.s32.totalorder %s19, %s22
    %p28 = scmp.eq.s32.totalorder %s9, 0
    %p29 = por %p27, %p28
    %p30 = scmp.ne.s32.totalorder %s19, %s22
    %p31 = scmp.eq.s32.totalorder %s14, 3
    %p32 = por %p30, %p31
    %p33 = scmp.ne.s32.totalorder %s22, %s23
    %p34 = scmp.eq.s32.totalorder %s14, 0
    %p35 = por %p33, %p34
    %p36 = scmp.ne.s32.totalorder %s22, %s23
    %p37 = scmp.eq.s32.totalorder %s15, 3
    %p38 = por %p36, %p37
    %p40 = scmp.ne.s32.totalorder %s23, %s39
    %p41 = scmp.eq.s32.totalorder %s15, 0
    %p42 = por %p40, %p41
    %s44 = sadd.s32 %s43, 1
    %p47 = scmp.eq.s32.totalorder %s9, 3
    %p48 = scmp.ne.s32.totalorder %s43, %s45
    %p49 = scmp.eq.s32.totalorder %s9, 0
    %p50 = por %p48, %p49
    %p51 = scmp.ne.s32.totalorder %s43, %s45
    %p52 = scmp.eq.s32.totalorder %s14, 3
    %p53 = por %p51, %p52
    %p54 = scmp.ne.s32.totalorder %s45, %s46
    %p55 = scmp.eq.s32.totalorder %s14, 0
    %p56 = por %p54, %p55
    %p57 = scmp.ne.s32.totalorder %s45, %s46
    %p58 = scmp.eq.s32.totalorder %s15, 3
    %p59 = por %p57, %p58
    %p61 = scmp.ne.s32.totalorder %s46, %s60
    %p62 = scmp.eq.s32.totalorder %s15, 0
    %p63 = por %p61, %p62
    %s65 = sadd.s32 %s64, 1
    %p68 = scmp.eq.s32.totalorder %s9, 3
    %p69 = scmp.ne.s32.totalorder %s64, %s66
    %p70 = scmp.eq.s32.totalorder %s9, 0
    %p71 = por %p69, %p70
    %p72 = scmp.ne.s32.totalorder %s64, %s66
    %p73 = scmp.eq.s32.totalorder %s14, 3
    %p74 = por %p72, %p73
    %p75 = scmp.ne.s32.totalorder %s66, %s67
    %p76 = scmp.eq.s32.totalorder %s14, 0
    %p77 = por %p75, %p76
    %p78 = scmp.ne.s32.totalorder %s66, %s67
    %p79 = scmp.eq.s32.totalorder %s15, 3
    %p80 = por %p78, %p79
    %p82 = scmp.ne.s32.totalorder %s67, %s81
    %p83 = scmp.eq.s32.totalorder %s15, 0
    %p84 = por %p82, %p83
    %s85 = ssub.s32 %s9, %s16
    %p86 = scmp.eq.s32.totalorder %s85, 0
    %s88 = sadd.s32 %s87, 1
    %s89 = scalar_select %p86, %s87, %s88
    %p92 = pneg %p86
    %p93 = scmp.eq.s32.totalorder %s9, 3
    %p94 = por %p92, %p93
    %p95 = scmp.ne.s32.totalorder %s87, %s90
    %p96 = scmp.eq.s32.totalorder %s9, 0
    %p97 = por %p95, %p96
    %p98 = scmp.ne.s32.totalorder %s87, %s90
    %p99 = scmp.eq.s32.totalorder %s14, 3
    %p100 = por %p98, %p99
    %p101 = scmp.ne.s32.totalorder %s90, %s91
    %p102 = scmp.eq.s32.totalorder %s14, 0
    %p103 = por %p101, %p102
    %p104 = scmp.ne.s32.totalorder %s90, %s91
    %p105 = scmp.eq.s32.totalorder %s15, 3
    %p106 = por %p104, %p105
    %p108 = scmp.ne.s32.totalorder %s91, %s107
    %p109 = scmp.eq.s32.totalorder %s15, 0
    %p110 = por %p108, %p109
    %p111 = scmp.le.s32.totalorder 1, %s9
    %p112 = scmp.lt.s32.totalorder %s9, 5
    %p113 = pnand %p111, %p112
    %p114 = pneg %p113
    // Predicated region
    $region9: #{discriminator_forward.5} parent=5 // pred_check
      _
    $region10: #{discriminator_forward.5} parent=5 // pred_check_branch
      %116 = sbr.rel (%p113) target = $region12
    $region11: #{discriminator_forward.5} parent=5 // pred_region
      %s117 = ssub.s32 %s9, 1
      // Predicated region
      $region13: #{discriminator_forward.5} parent=11 // pred_check
        %p118 = pneg %p56
      $region14: #{discriminator_forward.5} parent=11 // pred_check_branch
        %120 = sbr.rel (%p118) target = $region16
      $region15: #{discriminator_forward.5} parent=11 // pred_region
        _
      $region16: #{discriminator_forward.5} parent=11 // pred_fallthru
        _
      // Predicated region
      $region17: #{discriminator_forward.5} parent=11 // pred_check
        %p121 = pneg %p77
      $region18: #{discriminator_forward.5} parent=11 // pred_check_branch
        %123 = sbr.rel (%p121) target = $region20
      $region19: #{discriminator_forward.5} parent=11 // pred_region
        _
      $region20: #{discriminator_forward.5} parent=11 // pred_fallthru
        _
    $region12: #{discriminator_forward.5} parent=5 // pred_fallthru
      _
    %p124 = scmp.lt.s32.totalorder %s9, 4
    // Predicated region
    $region21: #{discriminator_forward.5} parent=5 // pred_check
      %p125 = pneg %p124
    $region22: #{discriminator_forward.5} parent=5 // pred_check_branch
      %127 = sbr.rel (%p125) target = $region24
    $region23: #{discriminator_forward.5} parent=5 // pred_region
      // Predicated region
      $region25: #{discriminator_forward.5} parent=23 // pred_check
        %p128 = pneg %p29
      $region26: #{discriminator_forward.5} parent=23 // pred_check_branch
        %130 = sbr.rel (%p128) target = $region28
      $region27: #{discriminator_forward.5} parent=23 // pred_region
        %s131 = smul.u32 64, %s9
        %p132 = scmp.lt.s32.totalorder %s131, 255
        %s133 = scalar_select %p132, %s131, 255
        %s134 = smul.addr %s133, 4
        %s135 = scalar_lea.vmem %s0, %s134
        %s136 = smul.u32 64, %s9
      $region28: #{discriminator_forward.5} parent=23 // pred_fallthru
        _
    $region24: #{discriminator_forward.5} parent=5 // pred_fallthru
      _
    %p137 = scmp.le.s32.totalorder 1, %s9
    %p138 = scmp.lt.s32.totalorder %s9, 5
    %p139 = pnand %p137, %p138
    %p140 = pneg %p139
    // Predicated region
    $region29: #{discriminator_forward.5} parent=5 // pred_check
      _
    $region30: #{discriminator_forward.5} parent=5 // pred_check_branch
      %142 = sbr.rel (%p139) target = $region32
    $region31: #{discriminator_forward.5} parent=5 // pred_region
      %s143 = ssub.s32 %s9, 1
      %s144 = smul.u32 64, %s14
      %p145 = scmp.lt.s32.totalorder %s144, 255
      %s146 = scalar_select %p145, %s144, 255
      %s147 = smul.addr %s146, 4
      %s148 = scalar_lea.vmem %s0, %s147
      %p149 = pneg %p35
      %p150 = pneg %p32
      %p151 = pneg %p56
      %p152 = pneg %p53
      %p153 = pneg %p77
      %p154 = pneg %p74
      %p155 = pneg %p103
      %p156 = pneg %p100
      %s157 = smul.u32 64, %s14
      %p158 = scmp.lt.s32.totalorder %s157, 255
      %s159 = scalar_select %p158, %s157, 255
      %s160 = smul.addr %s159, 4
      %s161 = scalar_lea.vmem %s3, %s160
      %s162 = smul.u32 64, %s14
      %p163 = scmp.lt.s32.totalorder %s162, 255
      %s164 = scalar_select %p163, %s162, 255
      %s165 = smul.addr %s164, 4
      %s166 = scalar_lea.vmem %s0, %s165
      %s167 = smul.u32 64, %s14
      %s168 = smul.u32 64, %s14
      %p169 = scmp.lt.s32.totalorder %s168, 255
      %s170 = scalar_select %p169, %s168, 255
      %s171 = smul.addr %s170, 4
      %s172 = scalar_lea.vmem %s3, %s171
      %s173 = smul.u32 64, %s14
      %v175 = vld [vmem:[%s166] sm:$0xf]
      %v176 = vld [vmem:[%s166 + $0x4] sm:$0xf]
      %v177 = vld [vmem:[%s166 + $0x8] sm:$0xf]
      %v178 = vld [vmem:[%s166 + $0xc] sm:$0xf]
      %v179 = vld [vmem:[%s166 + $0x10] sm:$0xf]
      %v180 = vld [vmem:[%s166 + $0x14] sm:$0xf]
      %v181 = vld [vmem:[%s166 + $0x18] sm:$0xf]
      %v182 = vld [vmem:[%s166 + $0x1c] sm:$0xf]
      %v183 = vld [vmem:[%s166 + $0x20] sm:$0xf]
      %v184 = vld [vmem:[%s166 + $0x24] sm:$0xf]
      %v185 = vld [vmem:[%s166 + $0x28] sm:$0xf]
      %v186 = vld [vmem:[%s166 + $0x2c] sm:$0xf]
      %v187 = vld [vmem:[%s166 + $0x30] sm:$0xf]
      %v188 = vld [vmem:[%s166 + $0x34] sm:$0xf]
      %v189 = vld [vmem:[%s166 + $0x38] sm:$0xf]
      %v190 = vld [vmem:[%s166 + $0x3c] sm:$0xf]
      %v191 = vld [vmem:[%s166 + $0x40] sm:$0xf]
      %v192 = vld [vmem:[%s166 + $0x44] sm:$0xf]
      %v193 = vld [vmem:[%s166 + $0x48] sm:$0xf]
      %v194 = vld [vmem:[%s166 + $0x4c] sm:$0xf]
      %v195 = vld [vmem:[%s166 + $0x50] sm:$0xf]
      %v196 = vld [vmem:[%s166 + $0x54] sm:$0xf]
      %v197 = vld [vmem:[%s166 + $0x58] sm:$0xf]
      %v198 = vld [vmem:[%s166 + $0x5c] sm:$0xf]
      %v199 = vld [vmem:[%s166 + $0x60] sm:$0xf]
      %v200 = vld [vmem:[%s166 + $0x64] sm:$0xf]
      %v201 = vld [vmem:[%s166 + $0x68] sm:$0xf]
      %v202 = vld [vmem:[%s166 + $0x6c] sm:$0xf]
      %v203 = vld [vmem:[%s166 + $0x70] sm:$0xf]
      %v204 = vld [vmem:[%s166 + $0x74] sm:$0xf]
      %v205 = vld [vmem:[%s166 + $0x78] sm:$0xf]
      %v206 = vld [vmem:[%s166 + $0x7c] sm:$0xf]
      %v207 = vld [vmem:[%s166 + $0x80] sm:$0xf]
      %v208 = vld [vmem:[%s166 + $0x84] sm:$0xf]
      %v209 = vld [vmem:[%s166 + $0x88] sm:$0xf]
      %v210 = vld [vmem:[%s166 + $0x8c] sm:$0xf]
      %v211 = vld [vmem:[%s166 + $0x90] sm:$0xf]
      %v212 = vld [vmem:[%s166 + $0x94] sm:$0xf]
      %v213 = vld [vmem:[%s166 + $0x98] sm:$0xf]
      %v214 = vld [vmem:[%s166 + $0x9c] sm:$0xf]
      %v215 = vld [vmem:[%s166 + $0xa0] sm:$0xf]
      %v216 = vld [vmem:[%s166 + $0xa4] sm:$0xf]
      %v217 = vld [vmem:[%s166 + $0xa8] sm:$0xf]
      %v218 = vld [vmem:[%s166 + $0xac] sm:$0xf]
      %v219 = vld [vmem:[%s166 + $0xb0] sm:$0xf]
      %v220 = vld [vmem:[%s166 + $0xb4] sm:$0xf]
      %v221 = vld [vmem:[%s166 + $0xb8] sm:$0xf]
      %v222 = vld [vmem:[%s166 + $0xbc] sm:$0xf]
      %v223 = vld [vmem:[%s166 + $0xc0] sm:$0xf]
      %v224 = vld [vmem:[%s166 + $0xc4] sm:$0xf]
      %v225 = vld [vmem:[%s166 + $0xc8] sm:$0xf]
      %v226 = vld [vmem:[%s166 + $0xcc] sm:$0xf]
      %v227 = vld [vmem:[%s166 + $0xd0] sm:$0xf]
      %v228 = vld [vmem:[%s166 + $0xd4] sm:$0xf]
      %v229 = vld [vmem:[%s166 + $0xd8] sm:$0xf]
      %v230 = vld [vmem:[%s166 + $0xdc] sm:$0xf]
      %v231 = vld [vmem:[%s166 + $0xe0] sm:$0xf]
      %v232 = vld [vmem:[%s166 + $0xe4] sm:$0xf]
      %v233 = vld [vmem:[%s166 + $0xe8] sm:$0xf]
      %v234 = vld [vmem:[%s166 + $0xec] sm:$0xf]
      %v235 = vld [vmem:[%s166 + $0xf0] sm:$0xf]
      %v236 = vld [vmem:[%s166 + $0xf4] sm:$0xf]
      %v237 = vld [vmem:[%s166 + $0xf8] sm:$0xf]
      %v238 = vld [vmem:[%s166 + $0xfc] sm:$0xf]
      %v239 = vld [vmem:[%s1] sm:$0xf]
      %v240 = vld [vmem:[%s1 + $0x4] sm:$0xf]
      %v241 = vld [vmem:[%s1 + $0x8] sm:$0xf]
      %v242 = vld [vmem:[%s1 + $0xc] sm:$0xf]
      %v243 = vld [vmem:[%s1 + $0x10] sm:$0xf]
      %v244 = vld [vmem:[%s1 + $0x14] sm:$0xf]
      %v245 = vld [vmem:[%s1 + $0x18] sm:$0xf]
      %v246 = vld [vmem:[%s1 + $0x1c] sm:$0xf]
      %v247 = vld [vmem:[%s2] sm:$0x1]
      %v249 = vlaneseq
      %v250 = vshrl.u32 %v249, 7
      %v251 = vsub.s32 0, %v250
      %v252 = vrot.slane %v247, %v251
      %v318 = vunpack.c.l.b16 %v175
      %v319 = vunpack.c.l.b16 %v176
      %v320 = vunpack.c.l.b16 %v177
      %v321 = vunpack.c.l.b16 %v178
      %v322 = vunpack.c.l.b16 %v179
      %v323 = vunpack.c.l.b16 %v180
      %v324 = vunpack.c.l.b16 %v181
      %v325 = vunpack.c.l.b16 %v182
      %v326 = vunpack.c.l.b16 %v183
      %v327 = vunpack.c.l.b16 %v184
      %v328 = vunpack.c.l.b16 %v185
      %v329 = vunpack.c.l.b16 %v186
      %v330 = vunpack.c.l.b16 %v187
      %v331 = vunpack.c.l.b16 %v188
      %v332 = vunpack.c.l.b16 %v189
      %v333 = vunpack.c.l.b16 %v190
      %v334 = vunpack.c.l.b16 %v191
      %v335 = vunpack.c.l.b16 %v192
      %v336 = vunpack.c.l.b16 %v193
      %v337 = vunpack.c.l.b16 %v194
      %v338 = vunpack.c.l.b16 %v195
      %v339 = vunpack.c.l.b16 %v196
      %v340 = vunpack.c.l.b16 %v197
      %v341 = vunpack.c.l.b16 %v198
      %v342 = vunpack.c.l.b16 %v199
      %v343 = vunpack.c.l.b16 %v200
      %v344 = vunpack.c.l.b16 %v201
      %v345 = vunpack.c.l.b16 %v202
      %v346 = vunpack.c.l.b16 %v203
      %v347 = vunpack.c.l.b16 %v204
      %v348 = vunpack.c.l.b16 %v205
      %v349 = vunpack.c.l.b16 %v206
      %v350 = vunpack.c.l.b16 %v207
      %v351 = vunpack.c.l.b16 %v208
      %v352 = vunpack.c.l.b16 %v209
      %v353 = vunpack.c.l.b16 %v210
      %v354 = vunpack.c.l.b16 %v211
      %v355 = vunpack.c.l.b16 %v212
      %v356 = vunpack.c.l.b16 %v213
      %v357 = vunpack.c.l.b16 %v214
      %v358 = vunpack.c.l.b16 %v215
      %v359 = vunpack.c.l.b16 %v216
      %v360 = vunpack.c.l.b16 %v217
      %v361 = vunpack.c.l.b16 %v218
      %v362 = vunpack.c.l.b16 %v219
      %v363 = vunpack.c.l.b16 %v220
      %v364 = vunpack.c.l.b16 %v221
      %v365 = vunpack.c.l.b16 %v222
      %v366 = vunpack.c.l.b16 %v223
      %v367 = vunpack.c.l.b16 %v224
      %v368 = vunpack.c.l.b16 %v225
      %v369 = vunpack.c.l.b16 %v226
      %v370 = vunpack.c.l.b16 %v227
      %v371 = vunpack.c.l.b16 %v228
      %v372 = vunpack.c.l.b16 %v229
      %v373 = vunpack.c.l.b16 %v230
      %v374 = vunpack.c.l.b16 %v231
      %v375 = vunpack.c.l.b16 %v232
      %v376 = vunpack.c.l.b16 %v233
      %v377 = vunpack.c.l.b16 %v234
      %v378 = vunpack.c.l.b16 %v235
      %v379 = vunpack.c.l.b16 %v236
      %v380 = vunpack.c.l.b16 %v237
      %v381 = vunpack.c.l.b16 %v238
      %v382 = vpack.c.b16 %v319, %v318
      %v383 = vpack.c.b16 %v321, %v320
      %v384 = vpack.c.b16 %v323, %v322
      %v385 = vpack.c.b16 %v325, %v324
      %v386 = vpack.c.b16 %v327, %v326
      %v387 = vpack.c.b16 %v329, %v328
      %v388 = vpack.c.b16 %v331, %v330
      %v389 = vpack.c.b16 %v333, %v332
      %v390 = vpack.c.b16 %v335, %v334
      %v391 = vpack.c.b16 %v337, %v336
      %v392 = vpack.c.b16 %v339, %v338
      %v393 = vpack.c.b16 %v341, %v340
      %v394 = vpack.c.b16 %v343, %v342
      %v395 = vpack.c.b16 %v345, %v344
      %v396 = vpack.c.b16 %v347, %v346
      %v397 = vpack.c.b16 %v349, %v348
      %v398 = vpack.c.b16 %v351, %v350
      %v399 = vpack.c.b16 %v353, %v352
      %v400 = vpack.c.b16 %v355, %v354
      %v401 = vpack.c.b16 %v357, %v356
      %v402 = vpack.c.b16 %v359, %v358
      %v403 = vpack.c.b16 %v361, %v360
      %v404 = vpack.c.b16 %v363, %v362
      %v405 = vpack.c.b16 %v365, %v364
      %v406 = vpack.c.b16 %v367, %v366
      %v407 = vpack.c.b16 %v369, %v368
      %v408 = vpack.c.b16 %v371, %v370
      %v409 = vpack.c.b16 %v373, %v372
      %v410 = vpack.c.b16 %v375, %v374
      %v411 = vpack.c.b16 %v377, %v376
      %v412 = vpack.c.b16 %v379, %v378
      %v413 = vpack.c.b16 %v381, %v380
      %v422 = vunpack.c.l.b16 %v239
      %v423 = vunpack.c.l.b16 %v240
      %v424 = vunpack.c.l.b16 %v241
      %v425 = vunpack.c.l.b16 %v242
      %v426 = vunpack.c.l.b16 %v243
      %v427 = vunpack.c.l.b16 %v244
      %v428 = vunpack.c.l.b16 %v245
      %v429 = vunpack.c.l.b16 %v246
      %v430 = vpack.c.b16 %v423, %v422
      %v431 = vpack.c.b16 %v425, %v424
      %v432 = vpack.c.b16 %v427, %v426
      %v433 = vpack.c.b16 %v429, %v428
      %vm438 = vcmask 523264
      %v440 = vsel %vm438, %v382, 0
      %v443 = vsel %vm438, %v383, 0
      %v446 = vsel %vm438, %v384, 0
      %v449 = vsel %vm438, %v385, 0
      %v452 = vsel %vm438, %v386, 0
      %v455 = vsel %vm438, %v387, 0
      %v458 = vsel %vm438, %v388, 0
      %v461 = vsel %vm438, %v389, 0
      %v464 = vsel %vm438, %v390, 0
      %v467 = vsel %vm438, %v391, 0
      %v470 = vsel %vm438, %v392, 0
      %v473 = vsel %vm438, %v393, 0
      %v476 = vsel %vm438, %v394, 0
      %v479 = vsel %vm438, %v395, 0
      %v482 = vsel %vm438, %v396, 0
      %v485 = vsel %vm438, %v397, 0
      %v488 = vsel %vm438, %v398, 0
      %v491 = vsel %vm438, %v399, 0
      %v494 = vsel %vm438, %v400, 0
      %v497 = vsel %vm438, %v401, 0
      %v500 = vsel %vm438, %v402, 0
      %v503 = vsel %vm438, %v403, 0
      %v506 = vsel %vm438, %v404, 0
      %v509 = vsel %vm438, %v405, 0
      %v512 = vsel %vm438, %v406, 0
      %v515 = vsel %vm438, %v407, 0
      %v518 = vsel %vm438, %v408, 0
      %v521 = vsel %vm438, %v409, 0
      %v524 = vsel %vm438, %v410, 0
      %v527 = vsel %vm438, %v411, 0
      %v530 = vsel %vm438, %v412, 0
      %v533 = vsel %vm438, %v413, 0
      %535 = vmatprep.subr.bf16.mxu0 0
      %536 = vmatpush1.bf16.msra.mxu0 %v430
      %537 = vmatprep.subr.bf16.mxu0 0
      %538 = vmatpush1.bf16.msra.mxu0 %v431
      %539 = vmatprep.subr.bf16.mxu0 0
      %540 = vmatpush1.bf16.msra.mxu0 %v432
      %541 = vmatprep.subr.bf16.mxu0 0
      %542 = vmatpush1.bf16.msra.mxu0 %v433
      %543 = vmatprep.subr.bf16.mxu0 0
      %544 = vmatpush1.bf16.msra.mxu0 0
      %545 = vmatprep.subr.bf16.mxu0 0
      %546 = vmatpush1.bf16.msra.mxu0 0
      %547 = vmatprep.subr.bf16.mxu0 0
      %548 = vmatpush1.bf16.msra.mxu0 0
      %549 = vmatprep.subr.bf16.mxu0 0
      %550 = vmatpush1.bf16.msra.mxu0 0
      %551 = vmatprep.subr.bf16.mxu0 0
      %552 = vmatpush1.bf16.msra.mxu0 0
      %553 = vmatprep.subr.bf16.mxu0 0
      %554 = vmatpush1.bf16.msra.mxu0 0
      %555 = vmatprep.subr.bf16.mxu0 0
      %556 = vmatpush1.bf16.msra.mxu0 0
      %557 = vmatprep.subr.bf16.mxu0 0
      %558 = vmatpush1.bf16.msra.mxu0 0
      %559 = vmatprep.subr.bf16.mxu0 0
      %560 = vmatpush1.bf16.msra.mxu0 0
      %561 = vmatprep.subr.bf16.mxu0 0
      %562 = vmatpush1.bf16.msra.mxu0 0
      %563 = vmatprep.subr.bf16.mxu0 0
      %564 = vmatpush1.bf16.msra.mxu0 0
      %565 = vmatprep.subr.bf16.mxu0 0
      %566 = vmatpush1.bf16.msra.mxu0 0
      %567 = vmatprep.mubr.bf16.mxu0 0
      %568 = vmatmul.mubr.bf16.gmra.mrb[0].mxu0 %v440
      %v569 = vpop.f32.mrb[0].mxu0
      %v570 = vadd.f32 %v252, %v569
      %v571 = vpop.f32.mrb[0].mxu0
      %v572 = vpop.f32.mrb[0].mxu0
      %v573 = vadd.f32 %v252, %v572
      %v574 = vpop.f32.mrb[0].mxu0
      %575 = vmatprep.mubr.bf16.mxu0 0
      %576 = vmatmul.mubr.bf16.gmra.mrb[0].mxu0 %v443
      %v577 = vpop.f32.mrb[0].mxu0
      %v578 = vadd.f32 %v252, %v577
      %v579 = vpop.f32.mrb[0].mxu0
      %v580 = vpop.f32.mrb[0].mxu0
      %v581 = vadd.f32 %v252, %v580
      %v582 = vpop.f32.mrb[0].mxu0
      %583 = vmatprep.mubr.bf16.mxu0 0
      %584 = vmatmul.mubr.bf16.gmra.mrb[0].mxu0 %v446
      %v585 = vpop.f32.mrb[0].mxu0
      %v586 = vadd.f32 %v252, %v585
      %v587 = vpop.f32.mrb[0].mxu0
      %v588 = vpop.f32.mrb[0].mxu0
      %v589 = vadd.f32 %v252, %v588
      %v590 = vpop.f32.mrb[0].mxu0
      %591 = vmatprep.mubr.bf16.mxu0 0
      %592 = vmatmul.mubr.bf16.gmra.mrb[0].mxu0 %v449
      %v593 = vpop.f32.mrb[0].mxu0
      %v594 = vadd.f32 %v252, %v593
      %v595 = vpop.f32.mrb[0].mxu0
      %v596 = vpop.f32.mrb[0].mxu0
      %v597 = vadd.f32 %v252, %v596
      %v598 = vpop.f32.mrb[0].mxu0
      %599 = vmatprep.mubr.bf16.mxu0 0
      %600 = vmatmul.mubr.bf16.gmra.mrb[0].mxu0 %v452
      %v601 = vpop.f32.mrb[0].mxu0
      %v602 = vadd.f32 %v252, %v601
      %v603 = vpop.f32.mrb[0].mxu0
      %v604 = vpop.f32.mrb[0].mxu0
      %v605 = vadd.f32 %v252, %v604
      %v606 = vpop.f32.mrb[0].mxu0
      %607 = vmatprep.mubr.bf16.mxu0 0
      %608 = vmatmul.mubr.bf16.gmra.mrb[0].mxu0 %v455
      %v609 = vpop.f32.mrb[0].mxu0
      %v610 = vadd.f32 %v252, %v609
      %v611 = vpop.f32.mrb[0].mxu0
      %v612 = vpop.f32.mrb[0].mxu0
      %v613 = vadd.f32 %v252, %v612
      %v614 = vpop.f32.mrb[0].mxu0
      %615 = vmatprep.mubr.bf16.mxu0 0
      %616 = vmatmul.mubr.bf16.gmra.mrb[0].mxu0 %v458
      %v617 = vpop.f32.mrb[0].mxu0
      %v618 = vadd.f32 %v252, %v617
      %v619 = vpop.f32.mrb[0].mxu0
      %v620 = vpop.f32.mrb[0].mxu0
      %v621 = vadd.f32 %v252, %v620
      %v622 = vpop.f32.mrb[0].mxu0
      %623 = vmatprep.mubr.bf16.mxu0 0
      %624 = vmatmul.mubr.bf16.gmra.mrb[0].mxu0 %v461
      %v625 = vpop.f32.mrb[0].mxu0
      %v626 = vadd.f32 %v252, %v625
      %v627 = vpop.f32.mrb[0].mxu0
      %v628 = vpop.f32.mrb[0].mxu0
      %v629 = vadd.f32 %v252, %v628
      %v630 = vpop.f32.mrb[0].mxu0
      %631 = vmatprep.mubr.bf16.mxu0 0
      %632 = vmatmul.mubr.bf16.gmra.mrb[0].mxu0 %v464
      %v633 = vpop.f32.mrb[0].mxu0
      %v634 = vadd.f32 %v252, %v633
      %v635 = vpop.f32.mrb[0].mxu0
      %v636 = vpop.f32.mrb[0].mxu0
      %v637 = vadd.f32 %v252, %v636
      %v638 = vpop.f32.mrb[0].mxu0
      %639 = vmatprep.mubr.bf16.mxu0 0
      %640 = vmatmul.mubr.bf16.gmra.mrb[0].mxu0 %v467
      %v641 = vpop.f32.mrb[0].mxu0
      %v642 = vadd.f32 %v252, %v641
      %v643 = vpop.f32.mrb[0].mxu0
      %v644 = vpop.f32.mrb[0].mxu0
      %v645 = vadd.f32 %v252, %v644
      %v646 = vpop.f32.mrb[0].mxu0
      %647 = vmatprep.mubr.bf16.mxu0 0
      %648 = vmatmul.mubr.bf16.gmra.mrb[0].mxu0 %v470
      %v649 = vpop.f32.mrb[0].mxu0
      %v650 = vadd.f32 %v252, %v649
      %v651 = vpop.f32.mrb[0].mxu0
      %v652 = vpop.f32.mrb[0].mxu0
      %v653 = vadd.f32 %v252, %v652
      %v654 = vpop.f32.mrb[0].mxu0
      %655 = vmatprep.mubr.bf16.mxu0 0
      %656 = vmatmul.mubr.bf16.gmra.mrb[0].mxu0 %v473
      %v657 = vpop.f32.mrb[0].mxu0
      %v658 = vadd.f32 %v252, %v657
      %v659 = vpop.f32.mrb[0].mxu0
      %v660 = vpop.f32.mrb[0].mxu0
      %v661 = vadd.f32 %v252, %v660
      %v662 = vpop.f32.mrb[0].mxu0
      %663 = vmatprep.mubr.bf16.mxu0 0
      %664 = vmatmul.mubr.bf16.gmra.mrb[0].mxu0 %v476
      %v665 = vpop.f32.mrb[0].mxu0
      %v666 = vadd.f32 %v252, %v665
      %v667 = vpop.f32.mrb[0].mxu0
      %v668 = vpop.f32.mrb[0].mxu0
      %v669 = vadd.f32 %v252, %v668
      %v670 = vpop.f32.mrb[0].mxu0
      %671 = vmatprep.mubr.bf16.mxu0 0
      %672 = vmatmul.mubr.bf16.gmra.mrb[0].mxu0 %v479
      %v673 = vpop.f32.mrb[0].mxu0
      %v674 = vadd.f32 %v252, %v673
      %v675 = vpop.f32.mrb[0].mxu0
      %v676 = vpop.f32.mrb[0].mxu0
      %v677 = vadd.f32 %v252, %v676
      %v678 = vpop.f32.mrb[0].mxu0
      %679 = vmatprep.mubr.bf16.mxu0 0
      %680 = vmatmul.mubr.bf16.gmra.mrb[0].mxu0 %v482
      %v681 = vpop.f32.mrb[0].mxu0
      %v682 = vadd.f32 %v252, %v681
      %v683 = vpop.f32.mrb[0].mxu0
      %v684 = vpop.f32.mrb[0].mxu0
      %v685 = vadd.f32 %v252, %v684
      %v686 = vpop.f32.mrb[0].mxu0
      %687 = vmatprep.mubr.bf16.mxu0 0
      %688 = vmatmul.mubr.bf16.gmra.mrb[0].mxu0 %v485
      %v689 = vpop.f32.mrb[0].mxu0
      %v690 = vadd.f32 %v252, %v689
      %v691 = vpop.f32.mrb[0].mxu0
      %v692 = vpop.f32.mrb[0].mxu0
      %v693 = vadd.f32 %v252, %v692
      %v694 = vpop.f32.mrb[0].mxu0
      %695 = vmatprep.mubr.bf16.mxu0 0
      %696 = vmatmul.mubr.bf16.gmra.mrb[0].mxu0 %v488
      %v697 = vpop.f32.mrb[0].mxu0
      %v698 = vadd.f32 %v252, %v697
      %v699 = vpop.f32.mrb[0].mxu0
      %v700 = vpop.f32.mrb[0].mxu0
      %v701 = vadd.f32 %v252, %v700
      %v702 = vpop.f32.mrb[0].mxu0
      %703 = vmatprep.mubr.bf16.mxu0 0
      %704 = vmatmul.mubr.bf16.gmra.mrb[0].mxu0 %v491
      %v705 = vpop.f32.mrb[0].mxu0
      %v706 = vadd.f32 %v252, %v705
      %v707 = vpop.f32.mrb[0].mxu0
      %v708 = vpop.f32.mrb[0].mxu0
      %v709 = vadd.f32 %v252, %v708
      %v710 = vpop.f32.mrb[0].mxu0
      %711 = vmatprep.mubr.bf16.mxu0 0
      %712 = vmatmul.mubr.bf16.gmra.mrb[0].mxu0 %v494
      %v713 = vpop.f32.mrb[0].mxu0
      %v714 = vadd.f32 %v252, %v713
      %v715 = vpop.f32.mrb[0].mxu0
      %v716 = vpop.f32.mrb[0].mxu0
      %v717 = vadd.f32 %v252, %v716
      %v718 = vpop.f32.mrb[0].mxu0
      %719 = vmatprep.mubr.bf16.mxu0 0
      %720 = vmatmul.mubr.bf16.gmra.mrb[0].mxu0 %v497
      %v721 = vpop.f32.mrb[0].mxu0
      %v722 = vadd.f32 %v252, %v721
      %v723 = vpop.f32.mrb[0].mxu0
      %v724 = vpop.f32.mrb[0].mxu0
      %v725 = vadd.f32 %v252, %v724
      %v726 = vpop.f32.mrb[0].mxu0
      %727 = vmatprep.mubr.bf16.mxu0 0
      %728 = vmatmul.mubr.bf16.gmra.mrb[0].mxu0 %v500
      %v729 = vpop.f32.mrb[0].mxu0
      %v730 = vadd.f32 %v252, %v729
      %v731 = vpop.f32.mrb[0].mxu0
      %v732 = vpop.f32.mrb[0].mxu0
      %v733 = vadd.f32 %v252, %v732
      %v734 = vpop.f32.mrb[0].mxu0
      %735 = vmatprep.mubr.bf16.mxu0 0
      %736 = vmatmul.mubr.bf16.gmra.mrb[0].mxu0 %v503
      %v737 = vpop.f32.mrb[0].mxu0
      %v738 = vadd.f32 %v252, %v737
      %v739 = vpop.f32.mrb[0].mxu0
      %v740 = vpop.f32.mrb[0].mxu0
      %v741 = vadd.f32 %v252, %v740
      %v742 = vpop.f32.mrb[0].mxu0
      %743 = vmatprep.mubr.bf16.mxu0 0
      %744 = vmatmul.mubr.bf16.gmra.mrb[0].mxu0 %v506
      %v745 = vpop.f32.mrb[0].mxu0
      %v746 = vadd.f32 %v252, %v745
      %v747 = vpop.f32.mrb[0].mxu0
      %v748 = vpop.f32.mrb[0].mxu0
      %v749 = vadd.f32 %v252, %v748
      %v750 = vpop.f32.mrb[0].mxu0
      %751 = vmatprep.mubr.bf16.mxu0 0
      %752 = vmatmul.mubr.bf16.gmra.mrb[0].mxu0 %v509
      %v753 = vpop.f32.mrb[0].mxu0
      %v754 = vadd.f32 %v252, %v753
      %v755 = vpop.f32.mrb[0].mxu0
      %v756 = vpop.f32.mrb[0].mxu0
      %v757 = vadd.f32 %v252, %v756
      %v758 = vpop.f32.mrb[0].mxu0
      %759 = vmatprep.mubr.bf16.mxu0 0
      %760 = vmatmul.mubr.bf16.gmra.mrb[0].mxu0 %v512
      %v761 = vpop.f32.mrb[0].mxu0
      %v762 = vadd.f32 %v252, %v761
      %v763 = vpop.f32.mrb[0].mxu0
      %v764 = vpop.f32.mrb[0].mxu0
      %v765 = vadd.f32 %v252, %v764
      %v766 = vpop.f32.mrb[0].mxu0
      %767 = vmatprep.mubr.bf16.mxu0 0
      %768 = vmatmul.mubr.bf16.gmra.mrb[0].mxu0 %v515
      %v769 = vpop.f32.mrb[0].mxu0
      %v770 = vadd.f32 %v252, %v769
      %v771 = vpop.f32.mrb[0].mxu0
      %v772 = vpop.f32.mrb[0].mxu0
      %v773 = vadd.f32 %v252, %v772
      %v774 = vpop.f32.mrb[0].mxu0
      %775 = vmatprep.mubr.bf16.mxu0 0
      %776 = vmatmul.mubr.bf16.gmra.mrb[0].mxu0 %v518
      %v777 = vpop.f32.mrb[0].mxu0
      %v778 = vadd.f32 %v252, %v777
      %v779 = vpop.f32.mrb[0].mxu0
      %v780 = vpop.f32.mrb[0].mxu0
      %v781 = vadd.f32 %v252, %v780
      %v782 = vpop.f32.mrb[0].mxu0
      %783 = vmatprep.mubr.bf16.mxu0 0
      %784 = vmatmul.mubr.bf16.gmra.mrb[0].mxu0 %v521
      %v785 = vpop.f32.mrb[0].mxu0
      %v786 = vadd.f32 %v252, %v785
      %v787 = vpop.f32.mrb[0].mxu0
      %v788 = vpop.f32.mrb[0].mxu0
      %v789 = vadd.f32 %v252, %v788
      %v790 = vpop.f32.mrb[0].mxu0
      %791 = vmatprep.mubr.bf16.mxu0 0
      %792 = vmatmul.mubr.bf16.gmra.mrb[0].mxu0 %v524
      %v793 = vpop.f32.mrb[0].mxu0
      %v794 = vadd.f32 %v252, %v793
      %v795 = vpop.f32.mrb[0].mxu0
      %v796 = vpop.f32.mrb[0].mxu0
      %v797 = vadd.f32 %v252, %v796
      %v798 = vpop.f32.mrb[0].mxu0
      %799 = vmatprep.mubr.bf16.mxu0 0
      %800 = vmatmul.mubr.bf16.gmra.mrb[0].mxu0 %v527
      %v801 = vpop.f32.mrb[0].mxu0
      %v802 = vadd.f32 %v252, %v801
      %v803 = vpop.f32.mrb[0].mxu0
      %v804 = vpop.f32.mrb[0].mxu0
      %v805 = vadd.f32 %v252, %v804
      %v806 = vpop.f32.mrb[0].mxu0
      %807 = vmatprep.mubr.bf16.mxu0 0
      %808 = vmatmul.mubr.bf16.gmra.mrb[0].mxu0 %v530
      %v809 = vpop.f32.mrb[0].mxu0
      %v810 = vadd.f32 %v252, %v809
      %v811 = vpop.f32.mrb[0].mxu0
      %v812 = vpop.f32.mrb[0].mxu0
      %v813 = vadd.f32 %v252, %v812
      %v814 = vpop.f32.mrb[0].mxu0
      %815 = vmatprep.mubr.bf16.mxu0 0
      %816 = vmatmul.mubr.bf16.gmra.mrb[0].mxu0 %v533
      %v817 = vpop.f32.mrb[0].mxu0
      %v818 = vadd.f32 %v252, %v817
      %v819 = vpop.f32.mrb[0].mxu0
      %v820 = vpop.f32.mrb[0].mxu0
      %v821 = vadd.f32 %v252, %v820
      %v822 = vpop.f32.mrb[0].mxu0
      %823 = vdwg.mxu0
      %vm824 = vcmp.gt.f32.partialorder %v570, 0.0
      %vm825 = vcmp.gt.f32.partialorder %v573, 0.0
      %vm826 = vcmp.gt.f32.partialorder %v578, 0.0
      %vm827 = vcmp.gt.f32.partialorder %v581, 0.0
      %vm828 = vcmp.gt.f32.partialorder %v586, 0.0
      %vm829 = vcmp.gt.f32.partialorder %v589, 0.0
      %vm830 = vcmp.gt.f32.partialorder %v594, 0.0
      %vm831 = vcmp.gt.f32.partialorder %v597, 0.0
      %vm832 = vcmp.gt.f32.partialorder %v602, 0.0
      %vm833 = vcmp.gt.f32.partialorder %v605, 0.0
      %vm834 = vcmp.gt.f32.partialorder %v610, 0.0
      %vm835 = vcmp.gt.f32.partialorder %v613, 0.0
      %vm836 = vcmp.gt.f32.partialorder %v618, 0.0
      %vm837 = vcmp.gt.f32.partialorder %v621, 0.0
      %vm838 = vcmp.gt.f32.partialorder %v626, 0.0
      %vm839 = vcmp.gt.f32.partialorder %v629, 0.0
      %vm840 = vcmp.gt.f32.partialorder %v634, 0.0
      %vm841 = vcmp.gt.f32.partialorder %v637, 0.0
      %vm842 = vcmp.gt.f32.partialorder %v642, 0.0
      %vm843 = vcmp.gt.f32.partialorder %v645, 0.0
      %vm844 = vcmp.gt.f32.partialorder %v650, 0.0
      %vm845 = vcmp.gt.f32.partialorder %v653, 0.0
      %vm846 = vcmp.gt.f32.partialorder %v658, 0.0
      %vm847 = vcmp.gt.f32.partialorder %v661, 0.0
      %vm848 = vcmp.gt.f32.partialorder %v666, 0.0
      %vm849 = vcmp.gt.f32.partialorder %v669, 0.0
      %vm850 = vcmp.gt.f32.partialorder %v674, 0.0
      %vm851 = vcmp.gt.f32.partialorder %v677, 0.0
      %vm852 = vcmp.gt.f32.partialorder %v682, 0.0
      %vm853 = vcmp.gt.f32.partialorder %v685, 0.0
      %vm854 = vcmp.gt.f32.partialorder %v690, 0.0
      %vm855 = vcmp.gt.f32.partialorder %v693, 0.0
      %vm856 = vcmp.gt.f32.partialorder %v698, 0.0
      %vm857 = vcmp.gt.f32.partialorder %v701, 0.0
      %vm858 = vcmp.gt.f32.partialorder %v706, 0.0
      %vm859 = vcmp.gt.f32.partialorder %v709, 0.0
      %vm860 = vcmp.gt.f32.partialorder %v714, 0.0
      %vm861 = vcmp.gt.f32.partialorder %v717, 0.0
      %vm862 = vcmp.gt.f32.partialorder %v722, 0.0
      %vm863 = vcmp.gt.f32.partialorder %v725, 0.0
      %vm864 = vcmp.gt.f32.partialorder %v730, 0.0
      %vm865 = vcmp.gt.f32.partialorder %v733, 0.0
      %vm866 = vcmp.gt.f32.partialorder %v738, 0.0
      %vm867 = vcmp.gt.f32.partialorder %v741, 0.0
      %vm868 = vcmp.gt.f32.partialorder %v746, 0.0
      %vm869 = vcmp.gt.f32.partialorder %v749, 0.0
      %vm870 = vcmp.gt.f32.partialorder %v754, 0.0
      %vm871 = vcmp.gt.f32.partialorder %v757, 0.0
      %vm872 = vcmp.gt.f32.partialorder %v762, 0.0
      %vm873 = vcmp.gt.f32.partialorder %v765, 0.0
      %vm874 = vcmp.gt.f32.partialorder %v770, 0.0
      %vm875 = vcmp.gt.f32.partialorder %v773, 0.0
      %vm876 = vcmp.gt.f32.partialorder %v778, 0.0
      %vm877 = vcmp.gt.f32.partialorder %v781, 0.0
      %vm878 = vcmp.gt.f32.partialorder %v786, 0.0
      %vm879 = vcmp.gt.f32.partialorder %v789, 0.0
      %vm880 = vcmp.gt.f32.partialorder %v794, 0.0
      %vm881 = vcmp.gt.f32.partialorder %v797, 0.0
      %vm882 = vcmp.gt.f32.partialorder %v802, 0.0
      %vm883 = vcmp.gt.f32.partialorder %v805, 0.0
      %vm884 = vcmp.gt.f32.partialorder %v810, 0.0
      %vm885 = vcmp.gt.f32.partialorder %v813, 0.0
      %vm886 = vcmp.gt.f32.partialorder %v818, 0.0
      %vm887 = vcmp.gt.f32.partialorder %v821, 0.0
      %v888 = vmul.f32 %v570, 0.2
      %v889 = vmul.f32 %v573, 0.2
      %v890 = vmul.f32 %v578, 0.2
      %v891 = vmul.f32 %v581, 0.2
      %v892 = vmul.f32 %v586, 0.2
      %v893 = vmul.f32 %v589, 0.2
      %v894 = vmul.f32 %v594, 0.2
      %v895 = vmul.f32 %v597, 0.2
      %v896 = vmul.f32 %v602, 0.2
      %v897 = vmul.f32 %v605, 0.2
      %v898 = vmul.f32 %v610, 0.2
      %v899 = vmul.f32 %v613, 0.2
      %v900 = vmul.f32 %v618, 0.2
      %v901 = vmul.f32 %v621, 0.2
      %v902 = vmul.f32 %v626, 0.2
      %v903 = vmul.f32 %v629, 0.2
      %v904 = vmul.f32 %v634, 0.2
      %v905 = vmul.f32 %v637, 0.2
      %v906 = vmul.f32 %v642, 0.2
      %v907 = vmul.f32 %v645, 0.2
      %v908 = vmul.f32 %v650, 0.2
      %v909 = vmul.f32 %v653, 0.2
      %v910 = vmul.f32 %v658, 0.2
      %v911 = vmul.f32 %v661, 0.2
      %v912 = vmul.f32 %v666, 0.2
      %v913 = vmul.f32 %v669, 0.2
      %v914 = vmul.f32 %v674, 0.2
      %v915 = vmul.f32 %v677, 0.2
      %v916 = vmul.f32 %v682, 0.2
      %v917 = vmul.f32 %v685, 0.2
      %v918 = vmul.f32 %v690, 0.2
      %v919 = vmul.f32 %v693, 0.2
      %v920 = vmul.f32 %v698, 0.2
      %v921 = vmul.f32 %v701, 0.2
      %v922 = vmul.f32 %v706, 0.2
      %v923 = vmul.f32 %v709, 0.2
      %v924 = vmul.f32 %v714, 0.2
      %v925 = vmul.f32 %v717, 0.2
      %v926 = vmul.f32 %v722, 0.2
      %v927 = vmul.f32 %v725, 0.2
      %v928 = vmul.f32 %v730, 0.2
      %v929 = vmul.f32 %v733, 0.2
      %v930 = vmul.f32 %v738, 0.2
      %v931 = vmul.f32 %v741, 0.2
      %v932 = vmul.f32 %v746, 0.2
      %v933 = vmul.f32 %v749, 0.2
      %v934 = vmul.f32 %v754, 0.2
      %v935 = vmul.f32 %v757, 0.2
      %v936 = vmul.f32 %v762, 0.2
      %v937 = vmul.f32 %v765, 0.2
      %v938 = vmul.f32 %v770, 0.2
      %v939 = vmul.f32 %v773, 0.2
      %v940 = vmul.f32 %v778, 0.2
      %v941 = vmul.f32 %v781, 0.2
      %v942 = vmul.f32 %v786, 0.2
      %v943 = vmul.f32 %v789, 0.2
      %v944 = vmul.f32 %v794, 0.2
      %v945 = vmul.f32 %v797, 0.2
      %v946 = vmul.f32 %v802, 0.2
      %v947 = vmul.f32 %v805, 0.2
      %v948 = vmul.f32 %v810, 0.2
      %v949 = vmul.f32 %v813, 0.2
      %v950 = vmul.f32 %v818, 0.2
      %v951 = vmul.f32 %v821, 0.2
      %v952 = vsel %vm824, %v570, %v888
      %v953 = vsel %vm825, %v573, %v889
      %v954 = vsel %vm826, %v578, %v890
      %v955 = vsel %vm827, %v581, %v891
      %v956 = vsel %vm828, %v586, %v892
      %v957 = vsel %vm829, %v589, %v893
      %v958 = vsel %vm830, %v594, %v894
      %v959 = vsel %vm831, %v597, %v895
      %v960 = vsel %vm832, %v602, %v896
      %v961 = vsel %vm833, %v605, %v897
      %v962 = vsel %vm834, %v610, %v898
      %v963 = vsel %vm835, %v613, %v899
      %v964 = vsel %vm836, %v618, %v900
      %v965 = vsel %vm837, %v621, %v901
      %v966 = vsel %vm838, %v626, %v902
      %v967 = vsel %vm839, %v629, %v903
      %v968 = vsel %vm840, %v634, %v904
      %v969 = vsel %vm841, %v637, %v905
      %v970 = vsel %vm842, %v642, %v906
      %v971 = vsel %vm843, %v645, %v907
      %v972 = vsel %vm844, %v650, %v908
      %v973 = vsel %vm845, %v653, %v909
      %v974 = vsel %vm846, %v658, %v910
      %v975 = vsel %vm847, %v661, %v911
      %v976 = vsel %vm848, %v666, %v912
      %v977 = vsel %vm849, %v669, %v913
      %v978 = vsel %vm850, %v674, %v914
      %v979 = vsel %vm851, %v677, %v915
      %v980 = vsel %vm852, %v682, %v916
      %v981 = vsel %vm853, %v685, %v917
      %v982 = vsel %vm854, %v690, %v918
      %v983 = vsel %vm855, %v693, %v919
      %v984 = vsel %vm856, %v698, %v920
      %v985 = vsel %vm857, %v701, %v921
      %v986 = vsel %vm858, %v706, %v922
      %v987 = vsel %vm859, %v709, %v923
      %v988 = vsel %vm860, %v714, %v924
      %v989 = vsel %vm861, %v717, %v925
      %v990 = vsel %vm862, %v722, %v926
      %v991 = vsel %vm863, %v725, %v927
      %v992 = vsel %vm864, %v730, %v928
      %v993 = vsel %vm865, %v733, %v929
      %v994 = vsel %vm866, %v738, %v930
      %v995 = vsel %vm867, %v741, %v931
      %v996 = vsel %vm868, %v746, %v932
      %v997 = vsel %vm869, %v749, %v933
      %v998 = vsel %vm870, %v754, %v934
      %v999 = vsel %vm871, %v757, %v935
      %v1000 = vsel %vm872, %v762, %v936
      %v1001 = vsel %vm873, %v765, %v937
      %v1002 = vsel %vm874, %v770, %v938
      %v1003 = vsel %vm875, %v773, %v939
      %v1004 = vsel %vm876, %v778, %v940
      %v1005 = vsel %vm877, %v781, %v941
      %v1006 = vsel %vm878, %v786, %v942
      %v1007 = vsel %vm879, %v789, %v943
      %v1008 = vsel %vm880, %v794, %v944
      %v1009 = vsel %vm881, %v797, %v945
      %v1010 = vsel %vm882, %v802, %v946
      %v1011 = vsel %vm883, %v805, %v947
      %v1012 = vsel %vm884, %v810, %v948
      %v1013 = vsel %vm885, %v813, %v949
      %v1014 = vsel %vm886, %v818, %v950
      %v1015 = vsel %vm887, %v821, %v951
      %v1016 = vpack.c.bf16 %v953, %v952
      %v1017 = vpack.c.bf16 %v955, %v954
      %v1018 = vpack.c.bf16 %v957, %v956
      %v1019 = vpack.c.bf16 %v959, %v958
      %v1020 = vpack.c.bf16 %v961, %v960
      %v1021 = vpack.c.bf16 %v963, %v962
      %v1022 = vpack.c.bf16 %v965, %v964
      %v1023 = vpack.c.bf16 %v967, %v966
      %v1024 = vpack.c.bf16 %v969, %v968
      %v1025 = vpack.c.bf16 %v971, %v970
      %v1026 = vpack.c.bf16 %v973, %v972
      %v1027 = vpack.c.bf16 %v975, %v974
      %v1028 = vpack.c.bf16 %v977, %v976
      %v1029 = vpack.c.bf16 %v979, %v978
      %v1030 = vpack.c.bf16 %v981, %v980
      %v1031 = vpack.c.bf16 %v983, %v982
      %v1032 = vpack.c.bf16 %v985, %v984
      %v1033 = vpack.c.bf16 %v987, %v986
      %v1034 = vpack.c.bf16 %v989, %v988
      %v1035 = vpack.c.bf16 %v991, %v990
      %v1036 = vpack.c.bf16 %v993, %v992
      %v1037 = vpack.c.bf16 %v995, %v994
      %v1038 = vpack.c.bf16 %v997, %v996
      %v1039 = vpack.c.bf16 %v999, %v998
      %v1040 = vpack.c.bf16 %v1001, %v1000
      %v1041 = vpack.c.bf16 %v1003, %v1002
      %v1042 = vpack.c.bf16 %v1005, %v1004
      %v1043 = vpack.c.bf16 %v1007, %v1006
      %v1044 = vpack.c.bf16 %v1009, %v1008
      %v1045 = vpack.c.bf16 %v1011, %v1010
      %v1046 = vpack.c.bf16 %v1013, %v1012
      %v1047 = vpack.c.bf16 %v1015, %v1014
      %v1080 = vunpack.c.l.b16 %v1016
      %v1081 = vunpack.c.h.b16 %v1016
      %v1082 = vunpack.c.l.b16 %v1017
      %v1083 = vunpack.c.h.b16 %v1017
      %v1084 = vunpack.c.l.b16 %v1018
      %v1085 = vunpack.c.h.b16 %v1018
      %v1086 = vunpack.c.l.b16 %v1019
      %v1087 = vunpack.c.h.b16 %v1019
      %v1088 = vunpack.c.l.b16 %v1020
      %v1089 = vunpack.c.h.b16 %v1020
      %v1090 = vunpack.c.l.b16 %v1021
      %v1091 = vunpack.c.h.b16 %v1021
      %v1092 = vunpack.c.l.b16 %v1022
      %v1093 = vunpack.c.h.b16 %v1022
      %v1094 = vunpack.c.l.b16 %v1023
      %v1095 = vunpack.c.h.b16 %v1023
      %v1096 = vunpack.c.l.b16 %v1024
      %v1097 = vunpack.c.h.b16 %v1024
      %v1098 = vunpack.c.l.b16 %v1025
      %v1099 = vunpack.c.h.b16 %v1025
      %v1100 = vunpack.c.l.b16 %v1026
      %v1101 = vunpack.c.h.b16 %v1026
      %v1102 = vunpack.c.l.b16 %v1027
      %v1103 = vunpack.c.h.b16 %v1027
      %v1104 = vunpack.c.l.b16 %v1028
      %v1105 = vunpack.c.h.b16 %v1028
      %v1106 = vunpack.c.l.b16 %v1029
      %v1107 = vunpack.c.h.b16 %v1029
      %v1108 = vunpack.c.l.b16 %v1030
      %v1109 = vunpack.c.h.b16 %v1030
      %v1110 = vunpack.c.l.b16 %v1031
      %v1111 = vunpack.c.h.b16 %v1031
      %v1112 = vunpack.c.l.b16 %v1032
      %v1113 = vunpack.c.h.b16 %v1032
      %v1114 = vunpack.c.l.b16 %v1033
      %v1115 = vunpack.c.h.b16 %v1033
      %v1116 = vunpack.c.l.b16 %v1034
      %v1117 = vunpack.c.h.b16 %v1034
      %v1118 = vunpack.c.l.b16 %v1035
      %v1119 = vunpack.c.h.b16 %v1035
      %v1120 = vunpack.c.l.b16 %v1036
      %v1121 = vunpack.c.h.b16 %v1036
      %v1122 = vunpack.c.l.b16 %v1037
      %v1123 = vunpack.c.h.b16 %v1037
      %v1124 = vunpack.c.l.b16 %v1038
      %v1125 = vunpack.c.h.b16 %v1038
      %v1126 = vunpack.c.l.b16 %v1039
      %v1127 = vunpack.c.h.b16 %v1039
      %v1128 = vunpack.c.l.b16 %v1040
      %v1129 = vunpack.c.h.b16 %v1040
      %v1130 = vunpack.c.l.b16 %v1041
      %v1131 = vunpack.c.h.b16 %v1041
      %v1132 = vunpack.c.l.b16 %v1042
      %v1133 = vunpack.c.h.b16 %v1042
      %v1134 = vunpack.c.l.b16 %v1043
      %v1135 = vunpack.c.h.b16 %v1043
      %v1136 = vunpack.c.l.b16 %v1044
      %v1137 = vunpack.c.h.b16 %v1044
      %v1138 = vunpack.c.l.b16 %v1045
      %v1139 = vunpack.c.h.b16 %v1045
      %v1140 = vunpack.c.l.b16 %v1046
      %v1141 = vunpack.c.h.b16 %v1046
      %v1142 = vunpack.c.l.b16 %v1047
      %v1143 = vunpack.c.h.b16 %v1047
      %v1144 = vpack.c.b16 %v1080, %v1080
      %v1145 = vpack.c.b16 %v1081, %v1081
      %v1146 = vpack.c.b16 %v1082, %v1082
      %v1147 = vpack.c.b16 %v1083, %v1083
      %v1148 = vpack.c.b16 %v1084, %v1084
      %v1149 = vpack.c.b16 %v1085, %v1085
      %v1150 = vpack.c.b16 %v1086, %v1086
      %v1151 = vpack.c.b16 %v1087, %v1087
      %v1152 = vpack.c.b16 %v1088, %v1088
      %v1153 = vpack.c.b16 %v1089, %v1089
      %v1154 = vpack.c.b16 %v1090, %v1090
      %v1155 = vpack.c.b16 %v1091, %v1091
      %v1156 = vpack.c.b16 %v1092, %v1092
      %v1157 = vpack.c.b16 %v1093, %v1093
      %v1158 = vpack.c.b16 %v1094, %v1094
      %v1159 = vpack.c.b16 %v1095, %v1095
      %v1160 = vpack.c.b16 %v1096, %v1096
      %v1161 = vpack.c.b16 %v1097, %v1097
      %v1162 = vpack.c.b16 %v1098, %v1098
      %v1163 = vpack.c.b16 %v1099, %v1099
      %v1164 = vpack.c.b16 %v1100, %v1100
      %v1165 = vpack.c.b16 %v1101, %v1101
      %v1166 = vpack.c.b16 %v1102, %v1102
      %v1167 = vpack.c.b16 %v1103, %v1103
      %v1168 = vpack.c.b16 %v1104, %v1104
      %v1169 = vpack.c.b16 %v1105, %v1105
      %v1170 = vpack.c.b16 %v1106, %v1106
      %v1171 = vpack.c.b16 %v1107, %v1107
      %v1172 = vpack.c.b16 %v1108, %v1108
      %v1173 = vpack.c.b16 %v1109, %v1109
      %v1174 = vpack.c.b16 %v1110, %v1110
      %v1175 = vpack.c.b16 %v1111, %v1111
      %v1176 = vpack.c.b16 %v1112, %v1112
      %v1177 = vpack.c.b16 %v1113, %v1113
      %v1178 = vpack.c.b16 %v1114, %v1114
      %v1179 = vpack.c.b16 %v1115, %v1115
      %v1180 = vpack.c.b16 %v1116, %v1116
      %v1181 = vpack.c.b16 %v1117, %v1117
      %v1182 = vpack.c.b16 %v1118, %v1118
      %v1183 = vpack.c.b16 %v1119, %v1119
      %v1184 = vpack.c.b16 %v1120, %v1120
      %v1185 = vpack.c.b16 %v1121, %v1121
      %v1186 = vpack.c.b16 %v1122, %v1122
      %v1187 = vpack.c.b16 %v1123, %v1123
      %v1188 = vpack.c.b16 %v1124, %v1124
      %v1189 = vpack.c.b16 %v1125, %v1125
      %v1190 = vpack.c.b16 %v1126, %v1126
      %v1191 = vpack.c.b16 %v1127, %v1127
      %v1192 = vpack.c.b16 %v1128, %v1128
      %v1193 = vpack.c.b16 %v1129, %v1129
      %v1194 = vpack.c.b16 %v1130, %v1130
      %v1195 = vpack.c.b16 %v1131, %v1131
      %v1196 = vpack.c.b16 %v1132, %v1132
      %v1197 = vpack.c.b16 %v1133, %v1133
      %v1198 = vpack.c.b16 %v1134, %v1134
      %v1199 = vpack.c.b16 %v1135, %v1135
      %v1200 = vpack.c.b16 %v1136, %v1136
      %v1201 = vpack.c.b16 %v1137, %v1137
      %v1202 = vpack.c.b16 %v1138, %v1138
      %v1203 = vpack.c.b16 %v1139, %v1139
      %v1204 = vpack.c.b16 %v1140, %v1140
      %v1205 = vpack.c.b16 %v1141, %v1141
      %v1206 = vpack.c.b16 %v1142, %v1142
      %v1207 = vpack.c.b16 %v1143, %v1143
      %1272 = vst [vmem:[%s172] sm:$0xf] %v1144
      %1273 = vst [vmem:[%s172 + $0x4] sm:$0xf] %v1145
      %1274 = vst [vmem:[%s172 + $0x8] sm:$0xf] %v1146
      %1275 = vst [vmem:[%s172 + $0xc] sm:$0xf] %v1147
      %1276 = vst [vmem:[%s172 + $0x10] sm:$0xf] %v1148
      %1277 = vst [vmem:[%s172 + $0x14] sm:$0xf] %v1149
      %1278 = vst [vmem:[%s172 + $0x18] sm:$0xf] %v1150
      %1279 = vst [vmem:[%s172 + $0x1c] sm:$0xf] %v1151
      %1280 = vst [vmem:[%s172 + $0x20] sm:$0xf] %v1152
      %1281 = vst [vmem:[%s172 + $0x24] sm:$0xf] %v1153
      %1282 = vst [vmem:[%s172 + $0x28] sm:$0xf] %v1154
      %1283 = vst [vmem:[%s172 + $0x2c] sm:$0xf] %v1155
      %1284 = vst [vmem:[%s172 + $0x30] sm:$0xf] %v1156
      %1285 = vst [vmem:[%s172 + $0x34] sm:$0xf] %v1157
      %1286 = vst [vmem:[%s172 + $0x38] sm:$0xf] %v1158
      %1287 = vst [vmem:[%s172 + $0x3c] sm:$0xf] %v1159
      %1288 = vst [vmem:[%s172 + $0x40] sm:$0xf] %v1160
      %1289 = vst [vmem:[%s172 + $0x44] sm:$0xf] %v1161
      %1290 = vst [vmem:[%s172 + $0x48] sm:$0xf] %v1162
      %1291 = vst [vmem:[%s172 + $0x4c] sm:$0xf] %v1163
      %1292 = vst [vmem:[%s172 + $0x50] sm:$0xf] %v1164
      %1293 = vst [vmem:[%s172 + $0x54] sm:$0xf] %v1165
      %1294 = vst [vmem:[%s172 + $0x58] sm:$0xf] %v1166
      %1295 = vst [vmem:[%s172 + $0x5c] sm:$0xf] %v1167
      %1296 = vst [vmem:[%s172 + $0x60] sm:$0xf] %v1168
      %1297 = vst [vmem:[%s172 + $0x64] sm:$0xf] %v1169
      %1298 = vst [vmem:[%s172 + $0x68] sm:$0xf] %v1170
      %1299 = vst [vmem:[%s172 + $0x6c] sm:$0xf] %v1171
      %1300 = vst [vmem:[%s172 + $0x70] sm:$0xf] %v1172
      %1301 = vst [vmem:[%s172 + $0x74] sm:$0xf] %v1173
      %1302 = vst [vmem:[%s172 + $0x78] sm:$0xf] %v1174
      %1303 = vst [vmem:[%s172 + $0x7c] sm:$0xf] %v1175
      %1304 = vst [vmem:[%s172 + $0x80] sm:$0xf] %v1176
      %1305 = vst [vmem:[%s172 + $0x84] sm:$0xf] %v1177
      %1306 = vst [vmem:[%s172 + $0x88] sm:$0xf] %v1178
      %1307 = vst [vmem:[%s172 + $0x8c] sm:$0xf] %v1179
      %1308 = vst [vmem:[%s172 + $0x90] sm:$0xf] %v1180
      %1309 = vst [vmem:[%s172 + $0x94] sm:$0xf] %v1181
      %1310 = vst [vmem:[%s172 + $0x98] sm:$0xf] %v1182
      %1311 = vst [vmem:[%s172 + $0x9c] sm:$0xf] %v1183
      %1312 = vst [vmem:[%s172 + $0xa0] sm:$0xf] %v1184
      %1313 = vst [vmem:[%s172 + $0xa4] sm:$0xf] %v1185
      %1314 = vst [vmem:[%s172 + $0xa8] sm:$0xf] %v1186
      %1315 = vst [vmem:[%s172 + $0xac] sm:$0xf] %v1187
      %1316 = vst [vmem:[%s172 + $0xb0] sm:$0xf] %v1188
      %1317 = vst [vmem:[%s172 + $0xb4] sm:$0xf] %v1189
      %1318 = vst [vmem:[%s172 + $0xb8] sm:$0xf] %v1190
      %1319 = vst [vmem:[%s172 + $0xbc] sm:$0xf] %v1191
      %1320 = vst [vmem:[%s172 + $0xc0] sm:$0xf] %v1192
      %1321 = vst [vmem:[%s172 + $0xc4] sm:$0xf] %v1193
      %1322 = vst [vmem:[%s172 + $0xc8] sm:$0xf] %v1194
      %1323 = vst [vmem:[%s172 + $0xcc] sm:$0xf] %v1195
      %1324 = vst [vmem:[%s172 + $0xd0] sm:$0xf] %v1196
      %1325 = vst [vmem:[%s172 + $0xd4] sm:$0xf] %v1197
      %1326 = vst [vmem:[%s172 + $0xd8] sm:$0xf] %v1198
      %1327 = vst [vmem:[%s172 + $0xdc] sm:$0xf] %v1199
      %1328 = vst [vmem:[%s172 + $0xe0] sm:$0xf] %v1200
      %1329 = vst [vmem:[%s172 + $0xe4] sm:$0xf] %v1201
      %1330 = vst [vmem:[%s172 + $0xe8] sm:$0xf] %v1202
      %1331 = vst [vmem:[%s172 + $0xec] sm:$0xf] %v1203
      %1332 = vst [vmem:[%s172 + $0xf0] sm:$0xf] %v1204
      %1333 = vst [vmem:[%s172 + $0xf4] sm:$0xf] %v1205
      %1334 = vst [vmem:[%s172 + $0xf8] sm:$0xf] %v1206
      %1335 = vst [vmem:[%s172 + $0xfc] sm:$0xf] %v1207
      %s1336 = smul.u32 64, %s14
      %p1337 = scmp.lt.s32.totalorder %s1336, 255
      %s1338 = scalar_select %p1337, %s1336, 255
      %s1339 = smul.addr %s1338, 4
      %s1340 = scalar_lea.vmem %s3, %s1339
      // Predicated region
      $region33: #{discriminator_forward.5} parent=31 // pred_check
        %p1341 = pneg %p100
      $region34: #{discriminator_forward.5} parent=31 // pred_check_branch
        %1343 = sbr.rel (%p1341) target = $region36
      $region35: #{discriminator_forward.5} parent=31 // pred_region
        %s1344 = smul.u32 64, %s14
      $region36: #{discriminator_forward.5} parent=31 // pred_fallthru
        _
    $region32: #{discriminator_forward.5} parent=5 // pred_fallthru
      _
    %p1345 = scmp.le.s32.totalorder 2, %s9
    // Predicated region
    $region37: #{discriminator_forward.5} parent=5 // pred_check
      %p1346 = pneg %p1345
    $region38: #{discriminator_forward.5} parent=5 // pred_check_branch
      %1348 = sbr.rel (%p1346) target = $region40
    $region39: #{discriminator_forward.5} parent=5 // pred_region
      %s1349 = ssub.s32 %s9, 2
      // Predicated region
      $region41: #{discriminator_forward.5} parent=39 // pred_check
        %p1350 = pneg %p106
      $region42: #{discriminator_forward.5} parent=39 // pred_check_branch
        %1352 = sbr.rel (%p1350) target = $region44
      $region43: #{discriminator_forward.5} parent=39 // pred_region
        %s1353 = smul.u32 64, %s15
        %p1354 = scmp.lt.s32.totalorder %s1353, 255
        %s1355 = scalar_select %p1354, %s1353, 255
        %s1356 = smul.addr %s1355, 4
        %s1357 = scalar_lea.vmem %s3, %s1356
      $region44: #{discriminator_forward.5} parent=39 // pred_fallthru
        _
    $region40: #{discriminator_forward.5} parent=5 // pred_fallthru
      _
  $region6: #{discriminator_forward.5} parent=0 // loop_footer
    %s13 = sadd.s32 1, %s9
  $region7: #{discriminator_forward.5} parent=0 // loop_footer_branch
    %8 = sbr.rel target = $region3
  $region8: #{discriminator_forward.5} parent=0 // loop_exit
    _

// kernel: discriminator_forward.6
$region0: #{discriminator_forward.6}
  #allocation0 [shape = 'u32[]', space=smem, size = 0x4, offset = 0x4, fixed_abs, tag = 'smem constant byte address 0x4 - core index']
  #allocation1 [shape = 'u32[144,128]{1,0:T(1,128)}', space=vmem, size = 0x12000, scoped, tag = 'internal scratch']
  #allocation2 [shape = 'f32[1,512,128]{2,1,0:T(8,128)}', space=vmem, size = 0x40000, scoped, tag = 'scratch operand']
  #allocation3 [shape = 'f32[1,128]{1,0:T(1,128)}', space=vmem, size = 0x200, scoped, tag = 'scratch operand']
  #allocation4 [shape = 'f32[1,128]{1,0:T(1,128)}', space=vmem, size = 0x200, scoped, tag = 'scratch operand']
  #allocation5 [shape = 'f32[1,128]{1,0:T(1,128)}', space=vmem, size = 0x200, scoped, tag = 'scratch operand']
  #allocation6 [shape = 'f32[1,128]{1,0:T(1,128)}', space=vmem, size = 0x200, scoped, tag = 'scratch operand']
  %s0 = inlined_call_operand.vmem [shape: bf16[512,128], index: 0, kind: input, shape index: {}]
  %s1 = inlined_call_operand.vmem [shape: bf16[128,128], index: 1, kind: input, shape index: {}]
  %s2 = inlined_call_operand.vmem [shape: f32[1,128], index: 2, kind: input, shape index: {}]
  %s3 = inlined_call_operand.vmem [shape: f32[1,128], index: 3, kind: input, shape index: {}]
  %s4 = inlined_call_operand.vmem [shape: bf16[512,128], index: 4, kind: output, shape index: {}]
  %s5 = sld [smem:[#allocation0]]
  $region65: #{discriminator_forward.6} parent=0
    _
  %s7 = ssub.s32 1, %s5
  %s8 = scalar_select 0, %s7, %s5
  loop: start=0, step=1, limit=4
  $region2: #{discriminator_forward.6} parent=0 // loop_pre_header
    _
  $region3: #{discriminator_forward.6} parent=0 // loop_header
    %s10 = sphi 0, %s14
    %p11 = scmp.ge.s32.totalorder %s10, 4
    %s17 = sphi 0, %s29
    %s18 = sphi 0, %s25
    %s19 = sphi 0, %s17
    %s20 = sphi 0, %s18
    %s21 = sphi 0, %s19
    %s22 = sphi 0, %s20
    %s36 = sphi 0, %s38
    %s39 = sphi 0, %s36
    %s40 = sphi 0, %s39
    %s56 = sphi 0, %s40
    %s60 = sphi 0, %s60
    %s62 = sphi 0, %s60
    %s63 = sphi 0, %s62
    %s77 = sphi 0, %s63
    %s81 = sphi 0, %s81
    %s83 = sphi 0, %s81
    %s84 = sphi 0, %s83
    %s98 = sphi 0, %s84
    %s102 = sphi 0, %s102
    %s104 = sphi 0, %s102
    %s105 = sphi 0, %s104
    %s119 = sphi 0, %s105
    %s127 = sphi 0, %s129
    %s130 = sphi 0, %s127
    %s131 = sphi 0, %s130
    %s147 = sphi 0, %s131
  $region4: #{discriminator_forward.6} parent=0 // loop_header_branch
    %13 = sbr.rel (%p11) target = $region8
  $region5: #{discriminator_forward.6} parent=0 // loop_body
    %s15 = ssub.s32 %s10, 1
    %s16 = ssub.s32 %s10, 2
    %s23 = sadd.s32 1, %s18
    %p24 = scmp.ge.s32.totalorder %s23, 1
    %s25 = scalar_select %p24, 0, %s23
    %s26 = sadd.s32 1, %s17
    %s27 = scalar_select %p24, %s26, %s17
    %p28 = scmp.ge.s32.totalorder %s27, 2
    %s29 = scalar_select %p28, 0, %s27
    %s30 = ssub.s32 1, %s17
    %s31 = smul.u32 %s30, %s18
    %s32 = ssub.s32 1, %s29
    %s33 = smul.u32 %s32, %s25
    %s34 = ssub.s32 %s31, %s33
    %p35 = scmp.eq.s32.totalorder %s34, 0
    %s37 = sadd.s32 %s36, 1
    %s38 = scalar_select %p35, %s36, %s37
    %p41 = pneg %p35
    %p42 = scmp.eq.s32.totalorder %s10, 1
    %p43 = por %p41, %p42
    %p44 = scmp.ne.s32.totalorder %s36, %s39
    %p45 = scmp.eq.s32.totalorder %s10, 0
    %p46 = por %p44, %p45
    %p47 = scmp.ne.s32.totalorder %s36, %s39
    %p48 = scmp.eq.s32.totalorder %s15, 1
    %p49 = por %p47, %p48
    %p50 = scmp.ne.s32.totalorder %s39, %s40
    %p51 = scmp.eq.s32.totalorder %s15, 0
    %p52 = por %p50, %p51
    %p53 = scmp.ne.s32.totalorder %s39, %s40
    %p54 = scmp.eq.s32.totalorder %s16, 1
    %p55 = por %p53, %p54
    %p57 = scmp.ne.s32.totalorder %s40, %s56
    %p58 = scmp.eq.s32.totalorder %s16, 0
    %p59 = por %p57, %p58
    %s61 = sadd.s32 %s60, 1
    %p64 = scmp.eq.s32.totalorder %s10, 1
    %p65 = scmp.ne.s32.totalorder %s60, %s62
    %p66 = scmp.eq.s32.totalorder %s10, 0
    %p67 = por %p65, %p66
    %p68 = scmp.ne.s32.totalorder %s60, %s62
    %p69 = scmp.eq.s32.totalorder %s15, 1
    %p70 = por %p68, %p69
    %p71 = scmp.ne.s32.totalorder %s62, %s63
    %p72 = scmp.eq.s32.totalorder %s15, 0
    %p73 = por %p71, %p72
    %p74 = scmp.ne.s32.totalorder %s62, %s63
    %p75 = scmp.eq.s32.totalorder %s16, 1
    %p76 = por %p74, %p75
    %p78 = scmp.ne.s32.totalorder %s63, %s77
    %p79 = scmp.eq.s32.totalorder %s16, 0
    %p80 = por %p78, %p79
    %s82 = sadd.s32 %s81, 1
    %p85 = scmp.eq.s32.totalorder %s10, 1
    %p86 = scmp.ne.s32.totalorder %s81, %s83
    %p87 = scmp.eq.s32.totalorder %s10, 0
    %p88 = por %p86, %p87
    %p89 = scmp.ne.s32.totalorder %s81, %s83
    %p90 = scmp.eq.s32.totalorder %s15, 1
    %p91 = por %p89, %p90
    %p92 = scmp.ne.s32.totalorder %s83, %s84
    %p93 = scmp.eq.s32.totalorder %s15, 0
    %p94 = por %p92, %p93
    %p95 = scmp.ne.s32.totalorder %s83, %s84
    %p96 = scmp.eq.s32.totalorder %s16, 1
    %p97 = por %p95, %p96
    %p99 = scmp.ne.s32.totalorder %s84, %s98
    %p100 = scmp.eq.s32.totalorder %s16, 0
    %p101 = por %p99, %p100
    %s103 = sadd.s32 %s102, 1
    %p106 = scmp.eq.s32.totalorder %s10, 1
    %p107 = scmp.ne.s32.totalorder %s102, %s104
    %p108 = scmp.eq.s32.totalorder %s10, 0
    %p109 = por %p107, %p108
    %p110 = scmp.ne.s32.totalorder %s102, %s104
    %p111 = scmp.eq.s32.totalorder %s15, 1
    %p112 = por %p110, %p111
    %p113 = scmp.ne.s32.totalorder %s104, %s105
    %p114 = scmp.eq.s32.totalorder %s15, 0
    %p115 = por %p113, %p114
    %p116 = scmp.ne.s32.totalorder %s104, %s105
    %p117 = scmp.eq.s32.totalorder %s16, 1
    %p118 = por %p116, %p117
    %p120 = scmp.ne.s32.totalorder %s105, %s119
    %p121 = scmp.eq.s32.totalorder %s16, 0
    %p122 = por %p120, %p121
    %s123 = smul.u32 %s17, %s18
    %s124 = smul.u32 %s29, %s25
    %s125 = ssub.s32 %s123, %s124
    %p126 = scmp.eq.s32.totalorder %s125, 0
    %s128 = sadd.s32 %s127, 1
    %s129 = scalar_select %p126, %s127, %s128
    %p132 = pneg %p126
    %p133 = scmp.eq.s32.totalorder %s10, 1
    %p134 = por %p132, %p133
    %p135 = scmp.ne.s32.totalorder %s127, %s130
    %p136 = scmp.eq.s32.totalorder %s10, 0
    %p137 = por %p135, %p136
    %p138 = scmp.ne.s32.totalorder %s127, %s130
    %p139 = scmp.eq.s32.totalorder %s15, 1
    %p140 = por %p138, %p139
    %p141 = scmp.ne.s32.totalorder %s130, %s131
    %p142 = scmp.eq.s32.totalorder %s15, 0
    %p143 = por %p141, %p142
    %p144 = scmp.ne.s32.totalorder %s130, %s131
    %p145 = scmp.eq.s32.totalorder %s16, 1
    %p146 = por %p144, %p145
    %p148 = scmp.ne.s32.totalorder %s131, %s147
    %p149 = scmp.eq.s32.totalorder %s16, 0
    %p150 = por %p148, %p149
    %p151 = scmp.le.s32.totalorder 1, %s10
    %p152 = scmp.lt.s32.totalorder %s10, 3
    %p153 = pnand %p151, %p152
    %p154 = pneg %p153
    // Predicated region
    $region9: #{discriminator_forward.6} parent=5 // pred_check
      _
    $region10: #{discriminator_forward.6} parent=5 // pred_check_branch
      %156 = sbr.rel (%p153) target = $region12
    $region11: #{discriminator_forward.6} parent=5 // pred_region
      %s157 = ssub.s32 %s10, 1
      // Predicated region
      $region13: #{discriminator_forward.6} parent=11 // pred_check
        %p158 = pneg %p73
      $region14: #{discriminator_forward.6} parent=11 // pred_check_branch
        %160 = sbr.rel (%p158) target = $region16
      $region15: #{discriminator_forward.6} parent=11 // pred_region
        _
      $region16: #{discriminator_forward.6} parent=11 // pred_fallthru
        _
      // Predicated region
      $region17: #{discriminator_forward.6} parent=11 // pred_check
        %p161 = pneg %p94
      $region18: #{discriminator_forward.6} parent=11 // pred_check_branch
        %163 = sbr.rel (%p161) target = $region20
      $region19: #{discriminator_forward.6} parent=11 // pred_region
        _
      $region20: #{discriminator_forward.6} parent=11 // pred_fallthru
        _
      // Predicated region
      $region21: #{discriminator_forward.6} parent=11 // pred_check
        %p164 = pneg %p115
      $region22: #{discriminator_forward.6} parent=11 // pred_check_branch
        %166 = sbr.rel (%p164) target = $region24
      $region23: #{discriminator_forward.6} parent=11 // pred_region
        _
      $region24: #{discriminator_forward.6} parent=11 // pred_fallthru
        _
    $region12: #{discriminator_forward.6} parent=5 // pred_fallthru
      _
    %p167 = scmp.lt.s32.totalorder %s10, 2
    // Predicated region
    $region25: #{discriminator_forward.6} parent=5 // pred_check
      %p168 = pneg %p167
    $region26: #{discriminator_forward.6} parent=5 // pred_check_branch
      %170 = sbr.rel (%p168) target = $region28
    $region27: #{discriminator_forward.6} parent=5 // pred_region
      // Predicated region
      $region29: #{discriminator_forward.6} parent=27 // pred_check
        %p171 = pneg %p46
      $region30: #{discriminator_forward.6} parent=27 // pred_check_branch
        %173 = sbr.rel (%p171) target = $region32
      $region31: #{discriminator_forward.6} parent=27 // pred_region
        %s174 = ssub.s32 1, %s17
        %s175 = smul.u32 %s174, %s18
        %s176 = smul.u32 64, %s175
        %p177 = scmp.lt.s32.totalorder %s176, 63
        %s178 = scalar_select %p177, %s176, 63
        %s179 = smul.addr %s178, 4
        %s180 = scalar_lea.vmem %s0, %s179
        %s181 = ssub.s32 1, %s17
        %s182 = smul.u32 %s181, %s18
        %s183 = smul.u32 64, %s182
      $region32: #{discriminator_forward.6} parent=27 // pred_fallthru
        _
    $region28: #{discriminator_forward.6} parent=5 // pred_fallthru
      _
    %p184 = scmp.le.s32.totalorder 1, %s10
    %p185 = scmp.lt.s32.totalorder %s10, 3
    %p186 = pnand %p184, %p185
    %p187 = pneg %p186
    // Predicated region
    $region33: #{discriminator_forward.6} parent=5 // pred_check
      _
    $region34: #{discriminator_forward.6} parent=5 // pred_check_branch
      %189 = sbr.rel (%p186) target = $region36
    $region35: #{discriminator_forward.6} parent=5 // pred_region
      %s190 = ssub.s32 %s10, 1
      %s191 = ssub.s32 1, %s19
      %s192 = smul.u32 %s191, %s20
      %s193 = smul.u32 64, %s192
      %p194 = scmp.lt.s32.totalorder %s193, 63
      %s195 = scalar_select %p194, %s193, 63
      %s196 = smul.addr %s195, 4
      %s197 = scalar_lea.vmem %s0, %s196
      %p198 = pneg %p52
      %p199 = pneg %p49
      %p200 = pneg %p73
      %p201 = pneg %p70
      %p202 = pneg %p94
      %p203 = pneg %p91
      %p204 = pneg %p115
      %p205 = pneg %p112
      %p206 = pneg %p143
      %p207 = pneg %p140
      %s208 = smul.u32 %s19, %s20
      %s209 = smul.u32 64, %s208
      %p210 = scmp.lt.s32.totalorder %s209, 63
      %s211 = scalar_select %p210, %s209, 63
      %s212 = smul.addr %s211, 4
      %s213 = scalar_lea.vmem %s4, %s212
      %s214 = ssub.s32 1, %s19
      %s215 = smul.u32 %s214, %s20
      %s216 = smul.u32 64, %s215
      %p217 = scmp.lt.s32.totalorder %s216, 63
      %s218 = scalar_select %p217, %s216, 63
      %s219 = smul.addr %s218, 4
      %s220 = scalar_lea.vmem %s0, %s219
      %s221 = ssub.s32 1, %s19
      %s222 = smul.u32 %s221, %s20
      %s223 = smul.u32 64, %s222
      %s224 = smul.u32 %s19, %s20
      %s225 = smul.u32 64, %s224
      %p226 = scmp.lt.s32.totalorder %s225, 63
      %s227 = scalar_select %p226, %s225, 63
      %s228 = smul.addr %s227, 4
      %s229 = scalar_lea.vmem %s4, %s228
      %s230 = smul.u32 %s19, %s20
      %s231 = smul.u32 64, %s230
      %p233 = scmp.eq.s32.totalorder %s19, 0
      // Predicated region
      $region37: #{discriminator_forward.6} parent=35 // pred_check
        %p234 = pneg %p233
      $region38: #{discriminator_forward.6} parent=35 // pred_check_branch
        %236 = sbr.rel (%p234) target = $region40
      $region39: #{discriminator_forward.6} parent=35 // pred_region
        %v237 = vld [vmem:[%s220] sm:$0xf]
        %v238 = vld [vmem:[%s220 + $0x4] sm:$0xf]
        %v239 = vld [vmem:[%s220 + $0x8] sm:$0xf]
        %v240 = vld [vmem:[%s220 + $0xc] sm:$0xf]
        %v241 = vld [vmem:[%s220 + $0x10] sm:$0xf]
        %v242 = vld [vmem:[%s220 + $0x14] sm:$0xf]
        %v243 = vld [vmem:[%s220 + $0x18] sm:$0xf]
        %v244 = vld [vmem:[%s220 + $0x1c] sm:$0xf]
        %v245 = vld [vmem:[%s220 + $0x20] sm:$0xf]
        %v246 = vld [vmem:[%s220 + $0x24] sm:$0xf]
        %v247 = vld [vmem:[%s220 + $0x28] sm:$0xf]
        %v248 = vld [vmem:[%s220 + $0x2c] sm:$0xf]
        %v249 = vld [vmem:[%s220 + $0x30] sm:$0xf]
        %v250 = vld [vmem:[%s220 + $0x34] sm:$0xf]
        %v251 = vld [vmem:[%s220 + $0x38] sm:$0xf]
        %v252 = vld [vmem:[%s220 + $0x3c] sm:$0xf]
        %v253 = vld [vmem:[%s220 + $0x40] sm:$0xf]
        %v254 = vld [vmem:[%s220 + $0x44] sm:$0xf]
        %v255 = vld [vmem:[%s220 + $0x48] sm:$0xf]
        %v256 = vld [vmem:[%s220 + $0x4c] sm:$0xf]
        %v257 = vld [vmem:[%s220 + $0x50] sm:$0xf]
        %v258 = vld [vmem:[%s220 + $0x54] sm:$0xf]
        %v259 = vld [vmem:[%s220 + $0x58] sm:$0xf]
        %v260 = vld [vmem:[%s220 + $0x5c] sm:$0xf]
        %v261 = vld [vmem:[%s220 + $0x60] sm:$0xf]
        %v262 = vld [vmem:[%s220 + $0x64] sm:$0xf]
        %v263 = vld [vmem:[%s220 + $0x68] sm:$0xf]
        %v264 = vld [vmem:[%s220 + $0x6c] sm:$0xf]
        %v265 = vld [vmem:[%s220 + $0x70] sm:$0xf]
        %v266 = vld [vmem:[%s220 + $0x74] sm:$0xf]
        %v267 = vld [vmem:[%s220 + $0x78] sm:$0xf]
        %v268 = vld [vmem:[%s220 + $0x7c] sm:$0xf]
        %v269 = vld [vmem:[%s220 + $0x80] sm:$0xf]
        %v270 = vld [vmem:[%s220 + $0x84] sm:$0xf]
        %v271 = vld [vmem:[%s220 + $0x88] sm:$0xf]
        %v272 = vld [vmem:[%s220 + $0x8c] sm:$0xf]
        %v273 = vld [vmem:[%s220 + $0x90] sm:$0xf]
        %v274 = vld [vmem:[%s220 + $0x94] sm:$0xf]
        %v275 = vld [vmem:[%s220 + $0x98] sm:$0xf]
        %v276 = vld [vmem:[%s220 + $0x9c] sm:$0xf]
        %v277 = vld [vmem:[%s220 + $0xa0] sm:$0xf]
        %v278 = vld [vmem:[%s220 + $0xa4] sm:$0xf]
        %v279 = vld [vmem:[%s220 + $0xa8] sm:$0xf]
        %v280 = vld [vmem:[%s220 + $0xac] sm:$0xf]
        %v281 = vld [vmem:[%s220 + $0xb0] sm:$0xf]
        %v282 = vld [vmem:[%s220 + $0xb4] sm:$0xf]
        %v283 = vld [vmem:[%s220 + $0xb8] sm:$0xf]
        %v284 = vld [vmem:[%s220 + $0xbc] sm:$0xf]
        %v285 = vld [vmem:[%s220 + $0xc0] sm:$0xf]
        %v286 = vld [vmem:[%s220 + $0xc4] sm:$0xf]
        %v287 = vld [vmem:[%s220 + $0xc8] sm:$0xf]
        %v288 = vld [vmem:[%s220 + $0xcc] sm:$0xf]
        %v289 = vld [vmem:[%s220 + $0xd0] sm:$0xf]
        %v290 = vld [vmem:[%s220 + $0xd4] sm:$0xf]
        %v291 = vld [vmem:[%s220 + $0xd8] sm:$0xf]
        %v292 = vld [vmem:[%s220 + $0xdc] sm:$0xf]
        %v293 = vld [vmem:[%s220 + $0xe0] sm:$0xf]
        %v294 = vld [vmem:[%s220 + $0xe4] sm:$0xf]
        %v295 = vld [vmem:[%s220 + $0xe8] sm:$0xf]
        %v296 = vld [vmem:[%s220 + $0xec] sm:$0xf]
        %v297 = vld [vmem:[%s220 + $0xf0] sm:$0xf]
        %v298 = vld [vmem:[%s220 + $0xf4] sm:$0xf]
        %v299 = vld [vmem:[%s220 + $0xf8] sm:$0xf]
        %v300 = vld [vmem:[%s220 + $0xfc] sm:$0xf]
        %v301 = vld [vmem:[%s1] sm:$0xf]
        %v302 = vld [vmem:[%s1 + $0x4] sm:$0xf]
        %v303 = vld [vmem:[%s1 + $0x8] sm:$0xf]
        %v304 = vld [vmem:[%s1 + $0xc] sm:$0xf]
        %v305 = vld [vmem:[%s1 + $0x10] sm:$0xf]
        %v306 = vld [vmem:[%s1 + $0x14] sm:$0xf]
        %v307 = vld [vmem:[%s1 + $0x18] sm:$0xf]
        %v308 = vld [vmem:[%s1 + $0x1c] sm:$0xf]
        %v309 = vld [vmem:[%s1 + $0x20] sm:$0xf]
        %v310 = vld [vmem:[%s1 + $0x24] sm:$0xf]
        %v311 = vld [vmem:[%s1 + $0x28] sm:$0xf]
        %v312 = vld [vmem:[%s1 + $0x2c] sm:$0xf]
        %v313 = vld [vmem:[%s1 + $0x30] sm:$0xf]
        %v314 = vld [vmem:[%s1 + $0x34] sm:$0xf]
        %v315 = vld [vmem:[%s1 + $0x38] sm:$0xf]
        %v316 = vld [vmem:[%s1 + $0x3c] sm:$0xf]
        %v381 = vunpack.c.l.b16 %v237
        %v382 = vunpack.c.l.b16 %v238
        %v383 = vunpack.c.l.b16 %v239
        %v384 = vunpack.c.l.b16 %v240
        %v385 = vunpack.c.l.b16 %v241
        %v386 = vunpack.c.l.b16 %v242
        %v387 = vunpack.c.l.b16 %v243
        %v388 = vunpack.c.l.b16 %v244
        %v389 = vunpack.c.l.b16 %v245
        %v390 = vunpack.c.l.b16 %v246
        %v391 = vunpack.c.l.b16 %v247
        %v392 = vunpack.c.l.b16 %v248
        %v393 = vunpack.c.l.b16 %v249
        %v394 = vunpack.c.l.b16 %v250
        %v395 = vunpack.c.l.b16 %v251
        %v396 = vunpack.c.l.b16 %v252
        %v397 = vunpack.c.l.b16 %v253
        %v398 = vunpack.c.l.b16 %v254
        %v399 = vunpack.c.l.b16 %v255
        %v400 = vunpack.c.l.b16 %v256
        %v401 = vunpack.c.l.b16 %v257
        %v402 = vunpack.c.l.b16 %v258
        %v403 = vunpack.c.l.b16 %v259
        %v404 = vunpack.c.l.b16 %v260
        %v405 = vunpack.c.l.b16 %v261
        %v406 = vunpack.c.l.b16 %v262
        %v407 = vunpack.c.l.b16 %v263
        %v408 = vunpack.c.l.b16 %v264
        %v409 = vunpack.c.l.b16 %v265
        %v410 = vunpack.c.l.b16 %v266
        %v411 = vunpack.c.l.b16 %v267
        %v412 = vunpack.c.l.b16 %v268
        %v413 = vunpack.c.l.b16 %v269
        %v414 = vunpack.c.l.b16 %v270
        %v415 = vunpack.c.l.b16 %v271
        %v416 = vunpack.c.l.b16 %v272
        %v417 = vunpack.c.l.b16 %v273
        %v418 = vunpack.c.l.b16 %v274
        %v419 = vunpack.c.l.b16 %v275
        %v420 = vunpack.c.l.b16 %v276
        %v421 = vunpack.c.l.b16 %v277
        %v422 = vunpack.c.l.b16 %v278
        %v423 = vunpack.c.l.b16 %v279
        %v424 = vunpack.c.l.b16 %v280
        %v425 = vunpack.c.l.b16 %v281
        %v426 = vunpack.c.l.b16 %v282
        %v427 = vunpack.c.l.b16 %v283
        %v428 = vunpack.c.l.b16 %v284
        %v429 = vunpack.c.l.b16 %v285
        %v430 = vunpack.c.l.b16 %v286
        %v431 = vunpack.c.l.b16 %v287
        %v432 = vunpack.c.l.b16 %v288
        %v433 = vunpack.c.l.b16 %v289
        %v434 = vunpack.c.l.b16 %v290
        %v435 = vunpack.c.l.b16 %v291
        %v436 = vunpack.c.l.b16 %v292
        %v437 = vunpack.c.l.b16 %v293
        %v438 = vunpack.c.l.b16 %v294
        %v439 = vunpack.c.l.b16 %v295
        %v440 = vunpack.c.l.b16 %v296
        %v441 = vunpack.c.l.b16 %v297
        %v442 = vunpack.c.l.b16 %v298
        %v443 = vunpack.c.l.b16 %v299
        %v444 = vunpack.c.l.b16 %v300
        %v445 = vpack.c.b16 %v382, %v381
        %v446 = vpack.c.b16 %v384, %v383
        %v447 = vpack.c.b16 %v386, %v385
        %v448 = vpack.c.b16 %v388, %v387
        %v449 = vpack.c.b16 %v390, %v389
        %v450 = vpack.c.b16 %v392, %v391
        %v451 = vpack.c.b16 %v394, %v393
        %v452 = vpack.c.b16 %v396, %v395
        %v453 = vpack.c.b16 %v398, %v397
        %v454 = vpack.c.b16 %v400, %v399
        %v455 = vpack.c.b16 %v402, %v401
        %v456 = vpack.c.b16 %v404, %v403
        %v457 = vpack.c.b16 %v406, %v405
        %v458 = vpack.c.b16 %v408, %v407
        %v459 = vpack.c.b16 %v410, %v409
        %v460 = vpack.c.b16 %v412, %v411
        %v461 = vpack.c.b16 %v414, %v413
        %v462 = vpack.c.b16 %v416, %v415
        %v463 = vpack.c.b16 %v418, %v417
        %v464 = vpack.c.b16 %v420, %v419
        %v465 = vpack.c.b16 %v422, %v421
        %v466 = vpack.c.b16 %v424, %v423
        %v467 = vpack.c.b16 %v426, %v425
        %v468 = vpack.c.b16 %v428, %v427
        %v469 = vpack.c.b16 %v430, %v429
        %v470 = vpack.c.b16 %v432, %v431
        %v471 = vpack.c.b16 %v434, %v433
        %v472 = vpack.c.b16 %v436, %v435
        %v473 = vpack.c.b16 %v438, %v437
        %v474 = vpack.c.b16 %v440, %v439
        %v475 = vpack.c.b16 %v442, %v441
        %v476 = vpack.c.b16 %v444, %v443
        %v525 = vunpack.c.l.b16 %v301
        %v526 = vunpack.c.l.b16 %v302
        %v527 = vunpack.c.l.b16 %v303
        %v528 = vunpack.c.l.b16 %v304
        %v529 = vunpack.c.l.b16 %v305
        %v530 = vunpack.c.l.b16 %v306
        %v531 = vunpack.c.l.b16 %v307
        %v532 = vunpack.c.l.b16 %v308
        %v533 = vunpack.c.l.b16 %v309
        %v534 = vunpack.c.l.b16 %v310
        %v535 = vunpack.c.l.b16 %v311
        %v536 = vunpack.c.l.b16 %v312
        %v537 = vunpack.c.l.b16 %v313
        %v538 = vunpack.c.l.b16 %v314
        %v539 = vunpack.c.l.b16 %v315
        %v540 = vunpack.c.l.b16 %v316
        %v541 = vpack.c.b16 %v526, %v525
        %v542 = vpack.c.b16 %v528, %v527
        %v543 = vpack.c.b16 %v530, %v529
        %v544 = vpack.c.b16 %v532, %v531
        %v545 = vpack.c.b16 %v534, %v533
        %v546 = vpack.c.b16 %v536, %v535
        %v547 = vpack.c.b16 %v538, %v537
        %v548 = vpack.c.b16 %v540, %v539
        %557 = vmatprep.subr.bf16.mxu0 0
        %558 = vmatpush1.bf16.msra.mxu0 %v541
        %559 = vmatprep.subr.bf16.mxu0 0
        %560 = vmatpush1.bf16.msra.mxu0 %v542
        %561 = vmatprep.subr.bf16.mxu0 0
        %562 = vmatpush1.bf16.msra.mxu0 %v543
        %563 = vmatprep.subr.bf16.mxu0 0
        %564 = vmatpush1.bf16.msra.mxu0 %v544
        %565 = vmatprep.subr.bf16.mxu0 0
        %566 = vmatpush1.bf16.msra.mxu0 %v545
        %567 = vmatprep.subr.bf16.mxu0 0
        %568 = vmatpush1.bf16.msra.mxu0 %v546
        %569 = vmatprep.subr.bf16.mxu0 0
        %570 = vmatpush1.bf16.msra.mxu0 %v547
        %571 = vmatprep.subr.bf16.mxu0 0
        %572 = vmatpush1.bf16.msra.mxu0 %v548
        %573 = vmatprep.subr.bf16.mxu0 0
        %574 = vmatpush1.bf16.msra.mxu0 0
        %575 = vmatprep.subr.bf16.mxu0 0
        %576 = vmatpush1.bf16.msra.mxu0 0
        %577 = vmatprep.subr.bf16.mxu0 0
        %578 = vmatpush1.bf16.msra.mxu0 0
        %579 = vmatprep.subr.bf16.mxu0 0
        %580 = vmatpush1.bf16.msra.mxu0 0
        %581 = vmatprep.subr.bf16.mxu0 0
        %582 = vmatpush1.bf16.msra.mxu0 0
        %583 = vmatprep.subr.bf16.mxu0 0
        %584 = vmatpush1.bf16.msra.mxu0 0
        %585 = vmatprep.subr.bf16.mxu0 0
        %586 = vmatpush1.bf16.msra.mxu0 0
        %587 = vmatprep.subr.bf16.mxu0 0
        %588 = vmatpush1.bf16.msra.mxu0 0
        %589 = vmatprep.mubr.bf16.mxu0 0
        %590 = vmatmul.mubr.bf16.gmra.mrb[0].mxu0 %v445
        %v591 = vpop.f32.mrb[0].mxu0
        %v592 = vadd.f32 0.0, %v591
        %v593 = vpop.f32.mrb[0].mxu0
        %v594 = vpop.f32.mrb[0].mxu0
        %v595 = vadd.f32 0.0, %v594
        %v596 = vpop.f32.mrb[0].mxu0
        %597 = vmatprep.mubr.bf16.mxu0 0
        %598 = vmatmul.mubr.bf16.gmra.mrb[0].mxu0 %v446
        %v599 = vpop.f32.mrb[0].mxu0
        %v600 = vadd.f32 0.0, %v599
        %v601 = vpop.f32.mrb[0].mxu0
        %v602 = vpop.f32.mrb[0].mxu0
        %v603 = vadd.f32 0.0, %v602
        %v604 = vpop.f32.mrb[0].mxu0
        %605 = vmatprep.mubr.bf16.mxu0 0
        %606 = vmatmul.mubr.bf16.gmra.mrb[0].mxu0 %v447
        %v607 = vpop.f32.mrb[0].mxu0
        %v608 = vadd.f32 0.0, %v607
        %v609 = vpop.f32.mrb[0].mxu0
        %v610 = vpop.f32.mrb[0].mxu0
        %v611 = vadd.f32 0.0, %v610
        %v612 = vpop.f32.mrb[0].mxu0
        %613 = vmatprep.mubr.bf16.mxu0 0
        %614 = vmatmul.mubr.bf16.gmra.mrb[0].mxu0 %v448
        %v615 = vpop.f32.mrb[0].mxu0
        %v616 = vadd.f32 0.0, %v615
        %v617 = vpop.f32.mrb[0].mxu0
        %v618 = vpop.f32.mrb[0].mxu0
        %v619 = vadd.f32 0.0, %v618
        %v620 = vpop.f32.mrb[0].mxu0
        %621 = vmatprep.mubr.bf16.mxu0 0
        %622 = vmatmul.mubr.bf16.gmra.mrb[0].mxu0 %v449
        %v623 = vpop.f32.mrb[0].mxu0
        %v624 = vadd.f32 0.0, %v623
        %v625 = vpop.f32.mrb[0].mxu0
        %v626 = vpop.f32.mrb[0].mxu0
        %v627 = vadd.f32 0.0, %v626
        %v628 = vpop.f32.mrb[0].mxu0
        %629 = vmatprep.mubr.bf16.mxu0 0
        %630 = vmatmul.mubr.bf16.gmra.mrb[0].mxu0 %v450
        %v631 = vpop.f32.mrb[0].mxu0
        %v632 = vadd.f32 0.0, %v631
        %v633 = vpop.f32.mrb[0].mxu0
        %v634 = vpop.f32.mrb[0].mxu0
        %v635 = vadd.f32 0.0, %v634
        %v636 = vpop.f32.mrb[0].mxu0
        %637 = vmatprep.mubr.bf16.mxu0 0
        %638 = vmatmul.mubr.bf16.gmra.mrb[0].mxu0 %v451
        %v639 = vpop.f32.mrb[0].mxu0
        %v640 = vadd.f32 0.0, %v639
        %v641 = vpop.f32.mrb[0].mxu0
        %v642 = vpop.f32.mrb[0].mxu0
        %v643 = vadd.f32 0.0, %v642
        %v644 = vpop.f32.mrb[0].mxu0
        %645 = vmatprep.mubr.bf16.mxu0 0
        %646 = vmatmul.mubr.bf16.gmra.mrb[0].mxu0 %v452
        %v647 = vpop.f32.mrb[0].mxu0
        %v648 = vadd.f32 0.0, %v647
        %v649 = vpop.f32.mrb[0].mxu0
        %v650 = vpop.f32.mrb[0].mxu0
        %v651 = vadd.f32 0.0, %v650
        %v652 = vpop.f32.mrb[0].mxu0
        %653 = vmatprep.mubr.bf16.mxu0 0
        %654 = vmatmul.mubr.bf16.gmra.mrb[0].mxu0 %v453
        %v655 = vpop.f32.mrb[0].mxu0
        %v656 = vadd.f32 0.0, %v655
        %v657 = vpop.f32.mrb[0].mxu0
        %v658 = vpop.f32.mrb[0].mxu0
        %v659 = vadd.f32 0.0, %v658
        %v660 = vpop.f32.mrb[0].mxu0
        %661 = vmatprep.mubr.bf16.mxu0 0
        %662 = vmatmul.mubr.bf16.gmra.mrb[0].mxu0 %v454
        %v663 = vpop.f32.mrb[0].mxu0
        %v664 = vadd.f32 0.0, %v663
        %v665 = vpop.f32.mrb[0].mxu0
        %v666 = vpop.f32.mrb[0].mxu0
        %v667 = vadd.f32 0.0, %v666
        %v668 = vpop.f32.mrb[0].mxu0
        %669 = vmatprep.mubr.bf16.mxu0 0
        %670 = vmatmul.mubr.bf16.gmra.mrb[0].mxu0 %v455
        %v671 = vpop.f32.mrb[0].mxu0
        %v672 = vadd.f32 0.0, %v671
        %v673 = vpop.f32.mrb[0].mxu0
        %v674 = vpop.f32.mrb[0].mxu0
        %v675 = vadd.f32 0.0, %v674
        %v676 = vpop.f32.mrb[0].mxu0
        %677 = vmatprep.mubr.bf16.mxu0 0
        %678 = vmatmul.mubr.bf16.gmra.mrb[0].mxu0 %v456
        %v679 = vpop.f32.mrb[0].mxu0
        %v680 = vadd.f32 0.0, %v679
        %v681 = vpop.f32.mrb[0].mxu0
        %v682 = vpop.f32.mrb[0].mxu0
        %v683 = vadd.f32 0.0, %v682
        %v684 = vpop.f32.mrb[0].mxu0
        %685 = vmatprep.mubr.bf16.mxu0 0
        %686 = vmatmul.mubr.bf16.gmra.mrb[0].mxu0 %v457
        %v687 = vpop.f32.mrb[0].mxu0
        %v688 = vadd.f32 0.0, %v687
        %v689 = vpop.f32.mrb[0].mxu0
        %v690 = vpop.f32.mrb[0].mxu0
        %v691 = vadd.f32 0.0, %v690
        %v692 = vpop.f32.mrb[0].mxu0
        %693 = vmatprep.mubr.bf16.mxu0 0
        %694 = vmatmul.mubr.bf16.gmra.mrb[0].mxu0 %v458
        %v695 = vpop.f32.mrb[0].mxu0
        %v696 = vadd.f32 0.0, %v695
        %v697 = vpop.f32.mrb[0].mxu0
        %v698 = vpop.f32.mrb[0].mxu0
        %v699 = vadd.f32 0.0, %v698
        %v700 = vpop.f32.mrb[0].mxu0
        %701 = vmatprep.mubr.bf16.mxu0 0
        %702 = vmatmul.mubr.bf16.gmra.mrb[0].mxu0 %v459
        %v703 = vpop.f32.mrb[0].mxu0
        %v704 = vadd.f32 0.0, %v703
        %v705 = vpop.f32.mrb[0].mxu0
        %v706 = vpop.f32.mrb[0].mxu0
        %v707 = vadd.f32 0.0, %v706
        %v708 = vpop.f32.mrb[0].mxu0
        %709 = vmatprep.mubr.bf16.mxu0 0
        %710 = vmatmul.mubr.bf16.gmra.mrb[0].mxu0 %v460
        %v711 = vpop.f32.mrb[0].mxu0
        %v712 = vadd.f32 0.0, %v711
        %v713 = vpop.f32.mrb[0].mxu0
        %v714 = vpop.f32.mrb[0].mxu0
        %v715 = vadd.f32 0.0, %v714
        %v716 = vpop.f32.mrb[0].mxu0
        %717 = vmatprep.mubr.bf16.mxu0 0
        %718 = vmatmul.mubr.bf16.gmra.mrb[0].mxu0 %v461
        %v719 = vpop.f32.mrb[0].mxu0
        %v720 = vadd.f32 0.0, %v719
        %v721 = vpop.f32.mrb[0].mxu0
        %v722 = vpop.f32.mrb[0].mxu0
        %v723 = vadd.f32 0.0, %v722
        %v724 = vpop.f32.mrb[0].mxu0
        %725 = vmatprep.mubr.bf16.mxu0 0
        %726 = vmatmul.mubr.bf16.gmra.mrb[0].mxu0 %v462
        %v727 = vpop.f32.mrb[0].mxu0
        %v728 = vadd.f32 0.0, %v727
        %v729 = vpop.f32.mrb[0].mxu0
        %v730 = vpop.f32.mrb[0].mxu0
        %v731 = vadd.f32 0.0, %v730
        %v732 = vpop.f32.mrb[0].mxu0
        %733 = vmatprep.mubr.bf16.mxu0 0
        %734 = vmatmul.mubr.bf16.gmra.mrb[0].mxu0 %v463
        %v735 = vpop.f32.mrb[0].mxu0
        %v736 = vadd.f32 0.0, %v735
        %v737 = vpop.f32.mrb[0].mxu0
        %v738 = vpop.f32.mrb[0].mxu0
        %v739 = vadd.f32 0.0, %v738
        %v740 = vpop.f32.mrb[0].mxu0
        %741 = vmatprep.mubr.bf16.mxu0 0
        %742 = vmatmul.mubr.bf16.gmra.mrb[0].mxu0 %v464
        %v743 = vpop.f32.mrb[0].mxu0
        %v744 = vadd.f32 0.0, %v743
        %v745 = vpop.f32.mrb[0].mxu0
        %v746 = vpop.f32.mrb[0].mxu0
        %v747 = vadd.f32 0.0, %v746
        %v748 = vpop.f32.mrb[0].mxu0
        %749 = vmatprep.mubr.bf16.mxu0 0
        %750 = vmatmul.mubr.bf16.gmra.mrb[0].mxu0 %v465
        %v751 = vpop.f32.mrb[0].mxu0
        %v752 = vadd.f32 0.0, %v751
        %v753 = vpop.f32.mrb[0].mxu0
        %v754 = vpop.f32.mrb[0].mxu0
        %v755 = vadd.f32 0.0, %v754
        %v756 = vpop.f32.mrb[0].mxu0
        %757 = vmatprep.mubr.bf16.mxu0 0
        %758 = vmatmul.mubr.bf16.gmra.mrb[0].mxu0 %v466
        %v759 = vpop.f32.mrb[0].mxu0
        %v760 = vadd.f32 0.0, %v759
        %v761 = vpop.f32.mrb[0].mxu0
        %v762 = vpop.f32.mrb[0].mxu0
        %v763 = vadd.f32 0.0, %v762
        %v764 = vpop.f32.mrb[0].mxu0
        %765 = vmatprep.mubr.bf16.mxu0 0
        %766 = vmatmul.mubr.bf16.gmra.mrb[0].mxu0 %v467
        %v767 = vpop.f32.mrb[0].mxu0
        %v768 = vadd.f32 0.0, %v767
        %v769 = vpop.f32.mrb[0].mxu0
        %v770 = vpop.f32.mrb[0].mxu0
        %v771 = vadd.f32 0.0, %v770
        %v772 = vpop.f32.mrb[0].mxu0
        %773 = vmatprep.mubr.bf16.mxu0 0
        %774 = vmatmul.mubr.bf16.gmra.mrb[0].mxu0 %v468
        %v775 = vpop.f32.mrb[0].mxu0
        %v776 = vadd.f32 0.0, %v775
        %v777 = vpop.f32.mrb[0].mxu0
        %v778 = vpop.f32.mrb[0].mxu0
        %v779 = vadd.f32 0.0, %v778
        %v780 = vpop.f32.mrb[0].mxu0
        %781 = vmatprep.mubr.bf16.mxu0 0
        %782 = vmatmul.mubr.bf16.gmra.mrb[0].mxu0 %v469
        %v783 = vpop.f32.mrb[0].mxu0
        %v784 = vadd.f32 0.0, %v783
        %v785 = vpop.f32.mrb[0].mxu0
        %v786 = vpop.f32.mrb[0].mxu0
        %v787 = vadd.f32 0.0, %v786
        %v788 = vpop.f32.mrb[0].mxu0
        %789 = vmatprep.mubr.bf16.mxu0 0
        %790 = vmatmul.mubr.bf16.gmra.mrb[0].mxu0 %v470
        %v791 = vpop.f32.mrb[0].mxu0
        %v792 = vadd.f32 0.0, %v791
        %v793 = vpop.f32.mrb[0].mxu0
        %v794 = vpop.f32.mrb[0].mxu0
        %v795 = vadd.f32 0.0, %v794
        %v796 = vpop.f32.mrb[0].mxu0
        %797 = vmatprep.mubr.bf16.mxu0 0
        %798 = vmatmul.mubr.bf16.gmra.mrb[0].mxu0 %v471
        %v799 = vpop.f32.mrb[0].mxu0
        %v800 = vadd.f32 0.0, %v799
        %v801 = vpop.f32.mrb[0].mxu0
        %v802 = vpop.f32.mrb[0].mxu0
        %v803 = vadd.f32 0.0, %v802
        %v804 = vpop.f32.mrb[0].mxu0
        %805 = vmatprep.mubr.bf16.mxu0 0
        %806 = vmatmul.mubr.bf16.gmra.mrb[0].mxu0 %v472
        %v807 = vpop.f32.mrb[0].mxu0
        %v808 = vadd.f32 0.0, %v807
        %v809 = vpop.f32.mrb[0].mxu0
        %v810 = vpop.f32.mrb[0].mxu0
        %v811 = vadd.f32 0.0, %v810
        %v812 = vpop.f32.mrb[0].mxu0
        %813 = vmatprep.mubr.bf16.mxu0 0
        %814 = vmatmul.mubr.bf16.gmra.mrb[0].mxu0 %v473
        %v815 = vpop.f32.mrb[0].mxu0
        %v816 = vadd.f32 0.0, %v815
        %v817 = vpop.f32.mrb[0].mxu0
        %v818 = vpop.f32.mrb[0].mxu0
        %v819 = vadd.f32 0.0, %v818
        %v820 = vpop.f32.mrb[0].mxu0
        %821 = vmatprep.mubr.bf16.mxu0 0
        %822 = vmatmul.mubr.bf16.gmra.mrb[0].mxu0 %v474
        %v823 = vpop.f32.mrb[0].mxu0
        %v824 = vadd.f32 0.0, %v823
        %v825 = vpop.f32.mrb[0].mxu0
        %v826 = vpop.f32.mrb[0].mxu0
        %v827 = vadd.f32 0.0, %v826
        %v828 = vpop.f32.mrb[0].mxu0
        %829 = vmatprep.mubr.bf16.mxu0 0
        %830 = vmatmul.mubr.bf16.gmra.mrb[0].mxu0 %v475
        %v831 = vpop.f32.mrb[0].mxu0
        %v832 = vadd.f32 0.0, %v831
        %v833 = vpop.f32.mrb[0].mxu0
        %v834 = vpop.f32.mrb[0].mxu0
        %v835 = vadd.f32 0.0, %v834
        %v836 = vpop.f32.mrb[0].mxu0
        %837 = vmatprep.mubr.bf16.mxu0 0
        %838 = vmatmul.mubr.bf16.gmra.mrb[0].mxu0 %v476
        %v839 = vpop.f32.mrb[0].mxu0
        %v840 = vadd.f32 0.0, %v839
        %v841 = vpop.f32.mrb[0].mxu0
        %v842 = vpop.f32.mrb[0].mxu0
        %v843 = vadd.f32 0.0, %v842
        %v844 = vpop.f32.mrb[0].mxu0
        %845 = vdwg.mxu0
        %s846 = smul.u32 %s20, 512
        %s847 = scalar_lea.vmem [#allocation2], %s846
        %848 = vst [vmem:[%s847] sm:$0xff] %v592
        %849 = vst [vmem:[%s847 + $0x8] sm:$0xff] %v595
        %850 = vst [vmem:[%s847 + $0x10] sm:$0xff] %v600
        %851 = vst [vmem:[%s847 + $0x18] sm:$0xff] %v603
        %852 = vst [vmem:[%s847 + $0x20] sm:$0xff] %v608
        %853 = vst [vmem:[%s847 + $0x28] sm:$0xff] %v611
        %854 = vst [vmem:[%s847 + $0x30] sm:$0xff] %v616
        %855 = vst [vmem:[%s847 + $0x38] sm:$0xff] %v619
        %856 = vst [vmem:[%s847 + $0x40] sm:$0xff] %v624
        %857 = vst [vmem:[%s847 + $0x48] sm:$0xff] %v627
        %858 = vst [vmem:[%s847 + $0x50] sm:$0xff] %v632
        %859 = vst [vmem:[%s847 + $0x58] sm:$0xff] %v635
        %860 = vst [vmem:[%s847 + $0x60] sm:$0xff] %v640
        %861 = vst [vmem:[%s847 + $0x68] sm:$0xff] %v643
        %862 = vst [vmem:[%s847 + $0x70] sm:$0xff] %v648
        %863 = vst [vmem:[%s847 + $0x78] sm:$0xff] %v651
        %864 = vst [vmem:[%s847 + $0x80] sm:$0xff] %v656
        %865 = vst [vmem:[%s847 + $0x88] sm:$0xff] %v659
        %866 = vst [vmem:[%s847 + $0x90] sm:$0xff] %v664
        %867 = vst [vmem:[%s847 + $0x98] sm:$0xff] %v667
        %868 = vst [vmem:[%s847 + $0xa0] sm:$0xff] %v672
        %869 = vst [vmem:[%s847 + $0xa8] sm:$0xff] %v675
        %870 = vst [vmem:[%s847 + $0xb0] sm:$0xff] %v680
        %871 = vst [vmem:[%s847 + $0xb8] sm:$0xff] %v683
        %872 = vst [vmem:[%s847 + $0xc0] sm:$0xff] %v688
        %873 = vst [vmem:[%s847 + $0xc8] sm:$0xff] %v691
        %874 = vst [vmem:[%s847 + $0xd0] sm:$0xff] %v696
        %875 = vst [vmem:[%s847 + $0xd8] sm:$0xff] %v699
        %876 = vst [vmem:[%s847 + $0xe0] sm:$0xff] %v704
        %877 = vst [vmem:[%s847 + $0xe8] sm:$0xff] %v707
        %878 = vst [vmem:[%s847 + $0xf0] sm:$0xff] %v712
        %879 = vst [vmem:[%s847 + $0xf8] sm:$0xff] %v715
        %880 = vst [vmem:[%s847 + $0x100] sm:$0xff] %v720
        %881 = vst [vmem:[%s847 + $0x108] sm:$0xff] %v723
        %882 = vst [vmem:[%s847 + $0x110] sm:$0xff] %v728
        %883 = vst [vmem:[%s847 + $0x118] sm:$0xff] %v731
        %884 = vst [vmem:[%s847 + $0x120] sm:$0xff] %v736
        %885 = vst [vmem:[%s847 + $0x128] sm:$0xff] %v739
        %886 = vst [vmem:[%s847 + $0x130] sm:$0xff] %v744
        %887 = vst [vmem:[%s847 + $0x138] sm:$0xff] %v747
        %888 = vst [vmem:[%s847 + $0x140] sm:$0xff] %v752
        %889 = vst [vmem:[%s847 + $0x148] sm:$0xff] %v755
        %890 = vst [vmem:[%s847 + $0x150] sm:$0xff] %v760
        %891 = vst [vmem:[%s847 + $0x158] sm:$0xff] %v763
        %892 = vst [vmem:[%s847 + $0x160] sm:$0xff] %v768
        %893 = vst [vmem:[%s847 + $0x168] sm:$0xff] %v771
        %894 = vst [vmem:[%s847 + $0x170] sm:$0xff] %v776
        %895 = vst [vmem:[%s847 + $0x178] sm:$0xff] %v779
        %896 = vst [vmem:[%s847 + $0x180] sm:$0xff] %v784
        %897 = vst [vmem:[%s847 + $0x188] sm:$0xff] %v787
        %898 = vst [vmem:[%s847 + $0x190] sm:$0xff] %v792
        %899 = vst [vmem:[%s847 + $0x198] sm:$0xff] %v795
        %900 = vst [vmem:[%s847 + $0x1a0] sm:$0xff] %v800
        %901 = vst [vmem:[%s847 + $0x1a8] sm:$0xff] %v803
        %902 = vst [vmem:[%s847 + $0x1b0] sm:$0xff] %v808
        %903 = vst [vmem:[%s847 + $0x1b8] sm:$0xff] %v811
        %904 = vst [vmem:[%s847 + $0x1c0] sm:$0xff] %v816
        %905 = vst [vmem:[%s847 + $0x1c8] sm:$0xff] %v819
        %906 = vst [vmem:[%s847 + $0x1d0] sm:$0xff] %v824
        %907 = vst [vmem:[%s847 + $0x1d8] sm:$0xff] %v827
        %908 = vst [vmem:[%s847 + $0x1e0] sm:$0xff] %v832
        %909 = vst [vmem:[%s847 + $0x1e8] sm:$0xff] %v835
        %910 = vst [vmem:[%s847 + $0x1f0] sm:$0xff] %v840
        %911 = vst [vmem:[%s847 + $0x1f8] sm:$0xff] %v843
        %p912 = scmp.eq.s32.totalorder %s20, 0
        // Predicated region
        $region41: #{discriminator_forward.6} parent=39 // pred_check
          %p913 = pneg %p912
        $region42: #{discriminator_forward.6} parent=39 // pred_check_branch
          %915 = sbr.rel (%p913) target = $region44
        $region43: #{discriminator_forward.6} parent=39 // pred_region
          %916 = vst [vmem:[#allocation3] sm:$0x1] 0.0
          %917 = vst [vmem:[#allocation4] sm:$0x1] 0.0
        $region44: #{discriminator_forward.6} parent=39 // pred_fallthru
          _
        %v918 = vld [vmem:[#allocation3] sm:$0x1]
        %v919 = vadd.f32 %v592, %v595
        %v920 = vadd.f32 %v919, %v600
        %v921 = vadd.f32 %v920, %v603
        %v922 = vadd.f32 %v921, %v608
        %v923 = vadd.f32 %v922, %v611
        %v924 = vadd.f32 %v923, %v616
        %v925 = vadd.f32 %v924, %v619
        %v926 = vadd.f32 %v925, %v624
        %v927 = vadd.f32 %v926, %v627
        %v928 = vadd.f32 %v927, %v632
        %v929 = vadd.f32 %v928, %v635
        %v930 = vadd.f32 %v929, %v640
        %v931 = vadd.f32 %v930, %v643
        %v932 = vadd.f32 %v931, %v648
        %v933 = vadd.f32 %v932, %v651
        %v934 = vadd.f32 %v933, %v656
        %v935 = vadd.f32 %v934, %v659
        %v936 = vadd.f32 %v935, %v664
        %v937 = vadd.f32 %v936, %v667
        %v938 = vadd.f32 %v937, %v672
        %v939 = vadd.f32 %v938, %v675
        %v940 = vadd.f32 %v939, %v680
        %v941 = vadd.f32 %v940, %v683
        %v942 = vadd.f32 %v941, %v688
        %v943 = vadd.f32 %v942, %v691
        %v944 = vadd.f32 %v943, %v696
        %v945 = vadd.f32 %v944, %v699
        %v946 = vadd.f32 %v945, %v704
        %v947 = vadd.f32 %v946, %v707
        %v948 = vadd.f32 %v947, %v712
        %v949 = vadd.f32 %v948, %v715
        %v950 = vadd.f32 %v949, %v720
        %v951 = vadd.f32 %v950, %v723
        %v952 = vadd.f32 %v951, %v728
        %v953 = vadd.f32 %v952, %v731
        %v954 = vadd.f32 %v953, %v736
        %v955 = vadd.f32 %v954, %v739
        %v956 = vadd.f32 %v955, %v744
        %v957 = vadd.f32 %v956, %v747
        %v958 = vadd.f32 %v957, %v752
        %v959 = vadd.f32 %v958, %v755
        %v960 = vadd.f32 %v959, %v760
        %v961 = vadd.f32 %v960, %v763
        %v962 = vadd.f32 %v961, %v768
        %v963 = vadd.f32 %v962, %v771
        %v964 = vadd.f32 %v963, %v776
        %v965 = vadd.f32 %v964, %v779
        %v966 = vadd.f32 %v965, %v784
        %v967 = vadd.f32 %v966, %v787
        %v968 = vadd.f32 %v967, %v792
        %v969 = vadd.f32 %v968, %v795
        %v970 = vadd.f32 %v969, %v800
        %v971 = vadd.f32 %v970, %v803
        %v972 = vadd.f32 %v971, %v808
        %v973 = vadd.f32 %v972, %v811
        %v974 = vadd.f32 %v973, %v816
        %v975 = vadd.f32 %v974, %v819
        %v976 = vadd.f32 %v975, %v824
        %v977 = vadd.f32 %v976, %v827
        %v978 = vadd.f32 %v977, %v832
        %v979 = vadd.f32 %v978, %v835
        %v980 = vadd.f32 %v979, %v840
        %v981 = vadd.f32 %v980, %v843
        %v982 = vrot.slane %v981, 4
        %v983 = vadd.f32 %v981, %v982
        %v984 = vrot.slane %v983, 2
        %v985 = vadd.f32 %v983, %v984
        %v986 = vrot.slane %v985, 1
        %v987 = vadd.f32 %v985, %v986
        %v988 = vadd.f32 %v918, %v987
        %989 = vst [vmem:[#allocation3] sm:$0x1] %v988
        %v990 = vld [vmem:[#allocation4] sm:$0x1]
        %v991 = vmul.f32 %v592, %v592
        %v992 = vmul.f32 %v595, %v595
        %v993 = vmul.f32 %v600, %v600
        %v994 = vmul.f32 %v603, %v603
        %v995 = vmul.f32 %v608, %v608
        %v996 = vmul.f32 %v611, %v611
        %v997 = vmul.f32 %v616, %v616
        %v998 = vmul.f32 %v619, %v619
        %v999 = vmul.f32 %v624, %v624
        %v1000 = vmul.f32 %v627, %v627
        %v1001 = vmul.f32 %v632, %v632
        %v1002 = vmul.f32 %v635, %v635
        %v1003 = vmul.f32 %v640, %v640
        %v1004 = vmul.f32 %v643, %v643
        %v1005 = vmul.f32 %v648, %v648
        %v1006 = vmul.f32 %v651, %v651
        %v1007 = vmul.f32 %v656, %v656
        %v1008 = vmul.f32 %v659, %v659
        %v1009 = vmul.f32 %v664, %v664
        %v1010 = vmul.f32 %v667, %v667
        %v1011 = vmul.f32 %v672, %v672
        %v1012 = vmul.f32 %v675, %v675
        %v1013 = vmul.f32 %v680, %v680
        %v1014 = vmul.f32 %v683, %v683
        %v1015 = vmul.f32 %v688, %v688
        %v1016 = vmul.f32 %v691, %v691
        %v1017 = vmul.f32 %v696, %v696
        %v1018 = vmul.f32 %v699, %v699
        %v1019 = vmul.f32 %v704, %v704
        %v1020 = vmul.f32 %v707, %v707
        %v1021 = vmul.f32 %v712, %v712
        %v1022 = vmul.f32 %v715, %v715
        %v1023 = vmul.f32 %v720, %v720
        %v1024 = vmul.f32 %v723, %v723
        %v1025 = vmul.f32 %v728, %v728
        %v1026 = vmul.f32 %v731, %v731
        %v1027 = vmul.f32 %v736, %v736
        %v1028 = vmul.f32 %v739, %v739
        %v1029 = vmul.f32 %v744, %v744
        %v1030 = vmul.f32 %v747, %v747
        %v1031 = vmul.f32 %v752, %v752
        %v1032 = vmul.f32 %v755, %v755
        %v1033 = vmul.f32 %v760, %v760
        %v1034 = vmul.f32 %v763, %v763
        %v1035 = vmul.f32 %v768, %v768
        %v1036 = vmul.f32 %v771, %v771
        %v1037 = vmul.f32 %v776, %v776
        %v1038 = vmul.f32 %v779, %v779
        %v1039 = vmul.f32 %v784, %v784
        %v1040 = vmul.f32 %v787, %v787
        %v1041 = vmul.f32 %v792, %v792
        %v1042 = vmul.f32 %v795, %v795
        %v1043 = vmul.f32 %v800, %v800
        %v1044 = vmul.f32 %v803, %v803
        %v1045 = vmul.f32 %v808, %v808
        %v1046 = vmul.f32 %v811, %v811
        %v1047 = vmul.f32 %v816, %v816
        %v1048 = vmul.f32 %v819, %v819
        %v1049 = vmul.f32 %v824, %v824
        %v1050 = vmul.f32 %v827, %v827
        %v1051 = vmul.f32 %v832, %v832
        %v1052 = vmul.f32 %v835, %v835
        %v1053 = vmul.f32 %v840, %v840
        %v1054 = vmul.f32 %v843, %v843
        %v1055 = vadd.f32 %v991, %v992
        %v1056 = vadd.f32 %v1055, %v993
        %v1057 = vadd.f32 %v1056, %v994
        %v1058 = vadd.f32 %v1057, %v995
        %v1059 = vadd.f32 %v1058, %v996
        %v1060 = vadd.f32 %v1059, %v997
        %v1061 = vadd.f32 %v1060, %v998
        %v1062 = vadd.f32 %v1061, %v999
        %v1063 = vadd.f32 %v1062, %v1000
        %v1064 = vadd.f32 %v1063, %v1001
        %v1065 = vadd.f32 %v1064, %v1002
        %v1066 = vadd.f32 %v1065, %v1003
        %v1067 = vadd.f32 %v1066, %v1004
        %v1068 = vadd.f32 %v1067, %v1005
        %v1069 = vadd.f32 %v1068, %v1006
        %v1070 = vadd.f32 %v1069, %v1007
        %v1071 = vadd.f32 %v1070, %v1008
        %v1072 = vadd.f32 %v1071, %v1009
        %v1073 = vadd.f32 %v1072, %v1010
        %v1074 = vadd.f32 %v1073, %v1011
        %v1075 = vadd.f32 %v1074, %v1012
        %v1076 = vadd.f32 %v1075, %v1013
        %v1077 = vadd.f32 %v1076, %v1014
        %v1078 = vadd.f32 %v1077, %v1015
        %v1079 = vadd.f32 %v1078, %v1016
        %v1080 = vadd.f32 %v1079, %v1017
        %v1081 = vadd.f32 %v1080, %v1018
        %v1082 = vadd.f32 %v1081, %v1019
        %v1083 = vadd.f32 %v1082, %v1020
        %v1084 = vadd.f32 %v1083, %v1021
        %v1085 = vadd.f32 %v1084, %v1022
        %v1086 = vadd.f32 %v1085, %v1023
        %v1087 = vadd.f32 %v1086, %v1024
        %v1088 = vadd.f32 %v1087, %v1025
        %v1089 = vadd.f32 %v1088, %v1026
        %v1090 = vadd.f32 %v1089, %v1027
        %v1091 = vadd.f32 %v1090, %v1028
        %v1092 = vadd.f32 %v1091, %v1029
        %v1093 = vadd.f32 %v1092, %v1030
        %v1094 = vadd.f32 %v1093, %v1031
        %v1095 = vadd.f32 %v1094, %v1032
        %v1096 = vadd.f32 %v1095, %v1033
        %v1097 = vadd.f32 %v1096, %v1034
        %v1098 = vadd.f32 %v1097, %v1035
        %v1099 = vadd.f32 %v1098, %v1036
        %v1100 = vadd.f32 %v1099, %v1037
        %v1101 = vadd.f32 %v1100, %v1038
        %v1102 = vadd.f32 %v1101, %v1039
        %v1103 = vadd.f32 %v1102, %v1040
        %v1104 = vadd.f32 %v1103, %v1041
        %v1105 = vadd.f32 %v1104, %v1042
        %v1106 = vadd.f32 %v1105, %v1043
        %v1107 = vadd.f32 %v1106, %v1044
        %v1108 = vadd.f32 %v1107, %v1045
        %v1109 = vadd.f32 %v1108, %v1046
        %v1110 = vadd.f32 %v1109, %v1047
        %v1111 = vadd.f32 %v1110, %v1048
        %v1112 = vadd.f32 %v1111, %v1049
        %v1113 = vadd.f32 %v1112, %v1050
        %v1114 = vadd.f32 %v1113, %v1051
        %v1115 = vadd.f32 %v1114, %v1052
        %v1116 = vadd.f32 %v1115, %v1053
        %v1117 = vadd.f32 %v1116, %v1054
        %v1118 = vrot.slane %v1117, 4
        %v1119 = vadd.f32 %v1117, %v1118
        %v1120 = vrot.slane %v1119, 2
        %v1121 = vadd.f32 %v1119, %v1120
        %v1122 = vrot.slane %v1121, 1
        %v1123 = vadd.f32 %v1121, %v1122
        %v1124 = vadd.f32 %v990, %v1123
        %1125 = vst [vmem:[#allocation4] sm:$0x1] %v1124
        // Predicated region
        $region45: #{discriminator_forward.6} parent=39 // pred_check
          %p1126 = pneg %p912
        $region46: #{discriminator_forward.6} parent=39 // pred_check_branch
          %1128 = sbr.rel (%p1126) target = $region48
        $region47: #{discriminator_forward.6} parent=39 // pred_region
          %v1129 = vld [vmem:[#allocation3] sm:$0x1]
          %v1130 = vmul.f32 %v1129, 0.001953125
          %v1131 = vld [vmem:[#allocation4] sm:$0x1]
          %v1132 = vmul.f32 %v1131, 0.001953125
          %v1133 = vmul.f32 %v1130, %v1130
          %v1134 = vsub.f32 %v1132, %v1133
          %v1135 = vmax.f32 %v1134, 0.0
          %v1136 = vld [vmem:[%s2] sm:$0x1]
          %v1137 = vadd.f32 %v1135, 1e-05
          %v1138 = vrsqrt.pop %v1137
          %v1139 = vmul.f32 %v1136, %v1138
          %1140 = vst [vmem:[#allocation5] sm:$0x1] %v1139
          %v1141 = vld [vmem:[%s3] sm:$0x1]
          %v1142 = vmul.f32 %v1130, %v1139
          %v1143 = vsub.f32 %v1141, %v1142
          %1144 = vst [vmem:[#allocation6] sm:$0x1] %v1143
        $region48: #{discriminator_forward.6} parent=39 // pred_fallthru
          _
      $region40: #{discriminator_forward.6} parent=35 // pred_fallthru
        _
      %p1145 = scmp.eq.s32.totalorder %s19, 1
      // Predicated region
      $region49: #{discriminator_forward.6} parent=35 // pred_check
        %p1146 = pneg %p1145
      $region50: #{discriminator_forward.6} parent=35 // pred_check_branch
        %1148 = sbr.rel (%p1146) target = $region52
      $region51: #{discriminator_forward.6} parent=35 // pred_region
        %s1149 = smul.u32 %s20, 512
        %s1150 = scalar_lea.vmem [#allocation2], %s1149
        %v1151 = vld [vmem:[%s1150] sm:$0xff]
        %v1152 = vld [vmem:[%s1150 + $0x8] sm:$0xff]
        %v1153 = vld [vmem:[%s1150 + $0x10] sm:$0xff]
        %v1154 = vld [vmem:[%s1150 + $0x18] sm:$0xff]
        %v1155 = vld [vmem:[%s1150 + $0x20] sm:$0xff]
        %v1156 = vld [vmem:[%s1150 + $0x28] sm:$0xff]
        %v1157 = vld [vmem:[%s1150 + $0x30] sm:$0xff]
        %v1158 = vld [vmem:[%s1150 + $0x38] sm:$0xff]
        %v1159 = vld [vmem:[%s1150 + $0x40] sm:$0xff]
        %v1160 = vld [vmem:[%s1150 + $0x48] sm:$0xff]
        %v1161 = vld [vmem:[%s1150 + $0x50] sm:$0xff]
        %v1162 = vld [vmem:[%s1150 + $0x58] sm:$0xff]
        %v1163 = vld [vmem:[%s1150 + $0x60] sm:$0xff]
        %v1164 = vld [vmem:[%s1150 + $0x68] sm:$0xff]
        %v1165 = vld [vmem:[%s1150 + $0x70] sm:$0xff]
        %v1166 = vld [vmem:[%s1150 + $0x78] sm:$0xff]
        %v1167 = vld [vmem:[%s1150 + $0x80] sm:$0xff]
        %v1168 = vld [vmem:[%s1150 + $0x88] sm:$0xff]
        %v1169 = vld [vmem:[%s1150 + $0x90] sm:$0xff]
        %v1170 = vld [vmem:[%s1150 + $0x98] sm:$0xff]
        %v1171 = vld [vmem:[%s1150 + $0xa0] sm:$0xff]
        %v1172 = vld [vmem:[%s1150 + $0xa8] sm:$0xff]
        %v1173 = vld [vmem:[%s1150 + $0xb0] sm:$0xff]
        %v1174 = vld [vmem:[%s1150 + $0xb8] sm:$0xff]
        %v1175 = vld [vmem:[%s1150 + $0xc0] sm:$0xff]
        %v1176 = vld [vmem:[%s1150 + $0xc8] sm:$0xff]
        %v1177 = vld [vmem:[%s1150 + $0xd0] sm:$0xff]
        %v1178 = vld [vmem:[%s1150 + $0xd8] sm:$0xff]
        %v1179 = vld [vmem:[%s1150 + $0xe0] sm:$0xff]
        %v1180 = vld [vmem:[%s1150 + $0xe8] sm:$0xff]
        %v1181 = vld [vmem:[%s1150 + $0xf0] sm:$0xff]
        %v1182 = vld [vmem:[%s1150 + $0xf8] sm:$0xff]
        %v1183 = vld [vmem:[%s1150 + $0x100] sm:$0xff]
        %v1184 = vld [vmem:[%s1150 + $0x108] sm:$0xff]
        %v1185 = vld [vmem:[%s1150 + $0x110] sm:$0xff]
        %v1186 = vld [vmem:[%s1150 + $0x118] sm:$0xff]
        %v1187 = vld [vmem:[%s1150 + $0x120] sm:$0xff]
        %v1188 = vld [vmem:[%s1150 + $0x128] sm:$0xff]
        %v1189 = vld [vmem:[%s1150 + $0x130] sm:$0xff]
        %v1190 = vld [vmem:[%s1150 + $0x138] sm:$0xff]
        %v1191 = vld [vmem:[%s1150 + $0x140] sm:$0xff]
        %v1192 = vld [vmem:[%s1150 + $0x148] sm:$0xff]
        %v1193 = vld [vmem:[%s1150 + $0x150] sm:$0xff]
        %v1194 = vld [vmem:[%s1150 + $0x158] sm:$0xff]
        %v1195 = vld [vmem:[%s1150 + $0x160] sm:$0xff]
        %v1196 = vld [vmem:[%s1150 + $0x168] sm:$0xff]
        %v1197 = vld [vmem:[%s1150 + $0x170] sm:$0xff]
        %v1198 = vld [vmem:[%s1150 + $0x178] sm:$0xff]
        %v1199 = vld [vmem:[%s1150 + $0x180] sm:$0xff]
        %v1200 = vld [vmem:[%s1150 + $0x188] sm:$0xff]
        %v1201 = vld [vmem:[%s1150 + $0x190] sm:$0xff]
        %v1202 = vld [vmem:[%s1150 + $0x198] sm:$0xff]
        %v1203 = vld [vmem:[%s1150 + $0x1a0] sm:$0xff]
        %v1204 = vld [vmem:[%s1150 + $0x1a8] sm:$0xff]
        %v1205 = vld [vmem:[%s1150 + $0x1b0] sm:$0xff]
        %v1206 = vld [vmem:[%s1150 + $0x1b8] sm:$0xff]
        %v1207 = vld [vmem:[%s1150 + $0x1c0] sm:$0xff]
        %v1208 = vld [vmem:[%s1150 + $0x1c8] sm:$0xff]
        %v1209 = vld [vmem:[%s1150 + $0x1d0] sm:$0xff]
        %v1210 = vld [vmem:[%s1150 + $0x1d8] sm:$0xff]
        %v1211 = vld [vmem:[%s1150 + $0x1e0] sm:$0xff]
        %v1212 = vld [vmem:[%s1150 + $0x1e8] sm:$0xff]
        %v1213 = vld [vmem:[%s1150 + $0x1f0] sm:$0xff]
        %v1214 = vld [vmem:[%s1150 + $0x1f8] sm:$0xff]
        %v1215 = vld [vmem:[#allocation5] sm:$0x1]
        %v1217 = vlaneseq
        %v1218 = vshrl.u32 %v1217, 7
        %v1219 = vsub.s32 0, %v1218
        %v1220 = vrot.slane %v1215, %v1219
        %v1222 = vmul.f32 %v1151, %v1220
        %v1223 = vmul.f32 %v1152, %v1220
        %v1224 = vmul.f32 %v1153, %v1220
        %v1225 = vmul.f32 %v1154, %v1220
        %v1226 = vmul.f32 %v1155, %v1220
        %v1227 = vmul.f32 %v1156, %v1220
        %v1228 = vmul.f32 %v1157, %v1220
        %v1229 = vmul.f32 %v1158, %v1220
        %v1230 = vmul.f32 %v1159, %v1220
        %v1231 = vmul.f32 %v1160, %v1220
        %v1232 = vmul.f32 %v1161, %v1220
        %v1233 = vmul.f32 %v1162, %v1220
        %v1234 = vmul.f32 %v1163, %v1220
        %v1235 = vmul.f32 %v1164, %v1220
        %v1236 = vmul.f32 %v1165, %v1220
        %v1237 = vmul.f32 %v1166, %v1220
        %v1238 = vmul.f32 %v1167, %v1220
        %v1239 = vmul.f32 %v1168, %v1220
        %v1240 = vmul.f32 %v1169, %v1220
        %v1241 = vmul.f32 %v1170, %v1220
        %v1242 = vmul.f32 %v1171, %v1220
        %v1243 = vmul.f32 %v1172, %v1220
        %v1244 = vmul.f32 %v1173, %v1220
        %v1245 = vmul.f32 %v1174, %v1220
        %v1246 = vmul.f32 %v1175, %v1220
        %v1247 = vmul.f32 %v1176, %v1220
        %v1248 = vmul.f32 %v1177, %v1220
        %v1249 = vmul.f32 %v1178, %v1220
        %v1250 = vmul.f32 %v1179, %v1220
        %v1251 = vmul.f32 %v1180, %v1220
        %v1252 = vmul.f32 %v1181, %v1220
        %v1253 = vmul.f32 %v1182, %v1220
        %v1254 = vmul.f32 %v1183, %v1220
        %v1255 = vmul.f32 %v1184, %v1220
        %v1256 = vmul.f32 %v1185, %v1220
        %v1257 = vmul.f32 %v1186, %v1220
        %v1258 = vmul.f32 %v1187, %v1220
        %v1259 = vmul.f32 %v1188, %v1220
        %v1260 = vmul.f32 %v1189, %v1220
        %v1261 = vmul.f32 %v1190, %v1220
        %v1262 = vmul.f32 %v1191, %v1220
        %v1263 = vmul.f32 %v1192, %v1220
        %v1264 = vmul.f32 %v1193, %v1220
        %v1265 = vmul.f32 %v1194, %v1220
        %v1266 = vmul.f32 %v1195, %v1220
        %v1267 = vmul.f32 %v1196, %v1220
        %v1268 = vmul.f32 %v1197, %v1220
        %v1269 = vmul.f32 %v1198, %v1220
        %v1270 = vmul.f32 %v1199, %v1220
        %v1271 = vmul.f32 %v1200, %v1220
        %v1272 = vmul.f32 %v1201, %v1220
        %v1273 = vmul.f32 %v1202, %v1220
        %v1274 = vmul.f32 %v1203, %v1220
        %v1275 = vmul.f32 %v1204, %v1220
        %v1276 = vmul.f32 %v1205, %v1220
        %v1277 = vmul.f32 %v1206, %v1220
        %v1278 = vmul.f32 %v1207, %v1220
        %v1279 = vmul.f32 %v1208, %v1220
        %v1280 = vmul.f32 %v1209, %v1220
        %v1281 = vmul.f32 %v1210, %v1220
        %v1282 = vmul.f32 %v1211, %v1220
        %v1283 = vmul.f32 %v1212, %v1220
        %v1284 = vmul.f32 %v1213, %v1220
        %v1285 = vmul.f32 %v1214, %v1220
        %v1286 = vld [vmem:[#allocation6] sm:$0x1]
        %v1288 = vlaneseq
        %v1289 = vshrl.u32 %v1288, 7
        %v1290 = vsub.s32 0, %v1289
        %v1291 = vrot.slane %v1286, %v1290
        %v1293 = vadd.f32 %v1222, %v1291
        %v1294 = vadd.f32 %v1223, %v1291
        %v1295 = vadd.f32 %v1224, %v1291
        %v1296 = vadd.f32 %v1225, %v1291
        %v1297 = vadd.f32 %v1226, %v1291
        %v1298 = vadd.f32 %v1227, %v1291
        %v1299 = vadd.f32 %v1228, %v1291
        %v1300 = vadd.f32 %v1229, %v1291
        %v1301 = vadd.f32 %v1230, %v1291
        %v1302 = vadd.f32 %v1231, %v1291
        %v1303 = vadd.f32 %v1232, %v1291
        %v1304 = vadd.f32 %v1233, %v1291
        %v1305 = vadd.f32 %v1234, %v1291
        %v1306 = vadd.f32 %v1235, %v1291
        %v1307 = vadd.f32 %v1236, %v1291
        %v1308 = vadd.f32 %v1237, %v1291
        %v1309 = vadd.f32 %v1238, %v1291
        %v1310 = vadd.f32 %v1239, %v1291
        %v1311 = vadd.f32 %v1240, %v1291
        %v1312 = vadd.f32 %v1241, %v1291
        %v1313 = vadd.f32 %v1242, %v1291
        %v1314 = vadd.f32 %v1243, %v1291
        %v1315 = vadd.f32 %v1244, %v1291
        %v1316 = vadd.f32 %v1245, %v1291
        %v1317 = vadd.f32 %v1246, %v1291
        %v1318 = vadd.f32 %v1247, %v1291
        %v1319 = vadd.f32 %v1248, %v1291
        %v1320 = vadd.f32 %v1249, %v1291
        %v1321 = vadd.f32 %v1250, %v1291
        %v1322 = vadd.f32 %v1251, %v1291
        %v1323 = vadd.f32 %v1252, %v1291
        %v1324 = vadd.f32 %v1253, %v1291
        %v1325 = vadd.f32 %v1254, %v1291
        %v1326 = vadd.f32 %v1255, %v1291
        %v1327 = vadd.f32 %v1256, %v1291
        %v1328 = vadd.f32 %v1257, %v1291
        %v1329 = vadd.f32 %v1258, %v1291
        %v1330 = vadd.f32 %v1259, %v1291
        %v1331 = vadd.f32 %v1260, %v1291
        %v1332 = vadd.f32 %v1261, %v1291
        %v1333 = vadd.f32 %v1262, %v1291
        %v1334 = vadd.f32 %v1263, %v1291
        %v1335 = vadd.f32 %v1264, %v1291
        %v1336 = vadd.f32 %v1265, %v1291
        %v1337 = vadd.f32 %v1266, %v1291
        %v1338 = vadd.f32 %v1267, %v1291
        %v1339 = vadd.f32 %v1268, %v1291
        %v1340 = vadd.f32 %v1269, %v1291
        %v1341 = vadd.f32 %v1270, %v1291
        %v1342 = vadd.f32 %v1271, %v1291
        %v1343 = vadd.f32 %v1272, %v1291
        %v1344 = vadd.f32 %v1273, %v1291
        %v1345 = vadd.f32 %v1274, %v1291
        %v1346 = vadd.f32 %v1275, %v1291
        %v1347 = vadd.f32 %v1276, %v1291
        %v1348 = vadd.f32 %v1277, %v1291
        %v1349 = vadd.f32 %v1278, %v1291
        %v1350 = vadd.f32 %v1279, %v1291
        %v1351 = vadd.f32 %v1280, %v1291
        %v1352 = vadd.f32 %v1281, %v1291
        %v1353 = vadd.f32 %v1282, %v1291
        %v1354 = vadd.f32 %v1283, %v1291
        %v1355 = vadd.f32 %v1284, %v1291
        %v1356 = vadd.f32 %v1285, %v1291
        %vm1357 = vcmp.gt.f32.partialorder %v1293, 0.0
        %vm1358 = vcmp.gt.f32.partialorder %v1294, 0.0
        %vm1359 = vcmp.gt.f32.partialorder %v1295, 0.0
        %vm1360 = vcmp.gt.f32.partialorder %v1296, 0.0
        %vm1361 = vcmp.gt.f32.partialorder %v1297, 0.0
        %vm1362 = vcmp.gt.f32.partialorder %v1298, 0.0
        %vm1363 = vcmp.gt.f32.partialorder %v1299, 0.0
        %vm1364 = vcmp.gt.f32.partialorder %v1300, 0.0
        %vm1365 = vcmp.gt.f32.partialorder %v1301, 0.0
        %vm1366 = vcmp.gt.f32.partialorder %v1302, 0.0
        %vm1367 = vcmp.gt.f32.partialorder %v1303, 0.0
        %vm1368 = vcmp.gt.f32.partialorder %v1304, 0.0
        %vm1369 = vcmp.gt.f32.partialorder %v1305, 0.0
        %vm1370 = vcmp.gt.f32.partialorder %v1306, 0.0
        %vm1371 = vcmp.gt.f32.partialorder %v1307, 0.0
        %vm1372 = vcmp.gt.f32.partialorder %v1308, 0.0
        %vm1373 = vcmp.gt.f32.partialorder %v1309, 0.0
        %vm1374 = vcmp.gt.f32.partialorder %v1310, 0.0
        %vm1375 = vcmp.gt.f32.partialorder %v1311, 0.0
        %vm1376 = vcmp.gt.f32.partialorder %v1312, 0.0
        %vm1377 = vcmp.gt.f32.partialorder %v1313, 0.0
        %vm1378 = vcmp.gt.f32.partialorder %v1314, 0.0
        %vm1379 = vcmp.gt.f32.partialorder %v1315, 0.0
        %vm1380 = vcmp.gt.f32.partialorder %v1316, 0.0
        %vm1381 = vcmp.gt.f32.partialorder %v1317, 0.0
        %vm1382 = vcmp.gt.f32.partialorder %v1318, 0.0
        %vm1383 = vcmp.gt.f32.partialorder %v1319, 0.0
        %vm1384 = vcmp.gt.f32.partialorder %v1320, 0.0
        %vm1385 = vcmp.gt.f32.partialorder %v1321, 0.0
        %vm1386 = vcmp.gt.f32.partialorder %v1322, 0.0
        %vm1387 = vcmp.gt.f32.partialorder %v1323, 0.0
        %vm1388 = vcmp.gt.f32.partialorder %v1324, 0.0
        %vm1389 = vcmp.gt.f32.partialorder %v1325, 0.0
        %vm1390 = vcmp.gt.f32.partialorder %v1326, 0.0
        %vm1391 = vcmp.gt.f32.partialorder %v1327, 0.0
        %vm1392 = vcmp.gt.f32.partialorder %v1328, 0.0
        %vm1393 = vcmp.gt.f32.partialorder %v1329, 0.0
        %vm1394 = vcmp.gt.f32.partialorder %v1330, 0.0
        %vm1395 = vcmp.gt.f32.partialorder %v1331, 0.0
        %vm1396 = vcmp.gt.f32.partialorder %v1332, 0.0
        %vm1397 = vcmp.gt.f32.partialorder %v1333, 0.0
        %vm1398 = vcmp.gt.f32.partialorder %v1334, 0.0
        %vm1399 = vcmp.gt.f32.partialorder %v1335, 0.0
        %vm1400 = vcmp.gt.f32.partialorder %v1336, 0.0
        %vm1401 = vcmp.gt.f32.partialorder %v1337, 0.0
        %vm1402 = vcmp.gt.f32.partialorder %v1338, 0.0
        %vm1403 = vcmp.gt.f32.partialorder %v1339, 0.0
        %vm1404 = vcmp.gt.f32.partialorder %v1340, 0.0
        %vm1405 = vcmp.gt.f32.partialorder %v1341, 0.0
        %vm1406 = vcmp.gt.f32.partialorder %v1342, 0.0
        %vm1407 = vcmp.gt.f32.partialorder %v1343, 0.0
        %vm1408 = vcmp.gt.f32.partialorder %v1344, 0.0
        %vm1409 = vcmp.gt.f32.partialorder %v1345, 0.0
        %vm1410 = vcmp.gt.f32.partialorder %v1346, 0.0
        %vm1411 = vcmp.gt.f32.partialorder %v1347, 0.0
        %vm1412 = vcmp.gt.f32.partialorder %v1348, 0.0
        %vm1413 = vcmp.gt.f32.partialorder %v1349, 0.0
        %vm1414 = vcmp.gt.f32.partialorder %v1350, 0.0
        %vm1415 = vcmp.gt.f32.partialorder %v1351, 0.0
        %vm1416 = vcmp.gt.f32.partialorder %v1352, 0.0
        %vm1417 = vcmp.gt.f32.partialorder %v1353, 0.0
        %vm1418 = vcmp.gt.f32.partialorder %v1354, 0.0
        %vm1419 = vcmp.gt.f32.partialorder %v1355, 0.0
        %vm1420 = vcmp.gt.f32.partialorder %v1356, 0.0
        %v1421 = vmul.f32 %v1293, 0.2
        %v1422 = vmul.f32 %v1294, 0.2
        %v1423 = vmul.f32 %v1295, 0.2
        %v1424 = vmul.f32 %v1296, 0.2
        %v1425 = vmul.f32 %v1297, 0.2
        %v1426 = vmul.f32 %v1298, 0.2
        %v1427 = vmul.f32 %v1299, 0.2
        %v1428 = vmul.f32 %v1300, 0.2
        %v1429 = vmul.f32 %v1301, 0.2
        %v1430 = vmul.f32 %v1302, 0.2
        %v1431 = vmul.f32 %v1303, 0.2
        %v1432 = vmul.f32 %v1304, 0.2
        %v1433 = vmul.f32 %v1305, 0.2
        %v1434 = vmul.f32 %v1306, 0.2
        %v1435 = vmul.f32 %v1307, 0.2
        %v1436 = vmul.f32 %v1308, 0.2
        %v1437 = vmul.f32 %v1309, 0.2
        %v1438 = vmul.f32 %v1310, 0.2
        %v1439 = vmul.f32 %v1311, 0.2
        %v1440 = vmul.f32 %v1312, 0.2
        %v1441 = vmul.f32 %v1313, 0.2
        %v1442 = vmul.f32 %v1314, 0.2
        %v1443 = vmul.f32 %v1315, 0.2
        %v1444 = vmul.f32 %v1316, 0.2
        %v1445 = vmul.f32 %v1317, 0.2
        %v1446 = vmul.f32 %v1318, 0.2
        %v1447 = vmul.f32 %v1319, 0.2
        %v1448 = vmul.f32 %v1320, 0.2
        %v1449 = vmul.f32 %v1321, 0.2
        %v1450 = vmul.f32 %v1322, 0.2
        %v1451 = vmul.f32 %v1323, 0.2
        %v1452 = vmul.f32 %v1324, 0.2
        %v1453 = vmul.f32 %v1325, 0.2
        %v1454 = vmul.f32 %v1326, 0.2
        %v1455 = vmul.f32 %v1327, 0.2
        %v1456 = vmul.f32 %v1328, 0.2
        %v1457 = vmul.f32 %v1329, 0.2
        %v1458 = vmul.f32 %v1330, 0.2
        %v1459 = vmul.f32 %v1331, 0.2
        %v1460 = vmul.f32 %v1332, 0.2
        %v1461 = vmul.f32 %v1333, 0.2
        %v1462 = vmul.f32 %v1334, 0.2
        %v1463 = vmul.f32 %v1335, 0.2
        %v1464 = vmul.f32 %v1336, 0.2
        %v1465 = vmul.f32 %v1337, 0.2
        %v1466 = vmul.f32 %v1338, 0.2
        %v1467 = vmul.f32 %v1339, 0.2
        %v1468 = vmul.f32 %v1340, 0.2
        %v1469 = vmul.f32 %v1341, 0.2
        %v1470 = vmul.f32 %v1342, 0.2
        %v1471 = vmul.f32 %v1343, 0.2
        %v1472 = vmul.f32 %v1344, 0.2
        %v1473 = vmul.f32 %v1345, 0.2
        %v1474 = vmul.f32 %v1346, 0.2
        %v1475 = vmul.f32 %v1347, 0.2
        %v1476 = vmul.f32 %v1348, 0.2
        %v1477 = vmul.f32 %v1349, 0.2
        %v1478 = vmul.f32 %v1350, 0.2
        %v1479 = vmul.f32 %v1351, 0.2
        %v1480 = vmul.f32 %v1352, 0.2
        %v1481 = vmul.f32 %v1353, 0.2
        %v1482 = vmul.f32 %v1354, 0.2
        %v1483 = vmul.f32 %v1355, 0.2
        %v1484 = vmul.f32 %v1356, 0.2
        %v1485 = vsel %vm1357, %v1293, %v1421
        %v1486 = vsel %vm1358, %v1294, %v1422
        %v1487 = vsel %vm1359, %v1295, %v1423
        %v1488 = vsel %vm1360, %v1296, %v1424
        %v1489 = vsel %vm1361, %v1297, %v1425
        %v1490 = vsel %vm1362, %v1298, %v1426
        %v1491 = vsel %vm1363, %v1299, %v1427
        %v1492 = vsel %vm1364, %v1300, %v1428
        %v1493 = vsel %vm1365, %v1301, %v1429
        %v1494 = vsel %vm1366, %v1302, %v1430
        %v1495 = vsel %vm1367, %v1303, %v1431
        %v1496 = vsel %vm1368, %v1304, %v1432
        %v1497 = vsel %vm1369, %v1305, %v1433
        %v1498 = vsel %vm1370, %v1306, %v1434
        %v1499 = vsel %vm1371, %v1307, %v1435
        %v1500 = vsel %vm1372, %v1308, %v1436
        %v1501 = vsel %vm1373, %v1309, %v1437
        %v1502 = vsel %vm1374, %v1310, %v1438
        %v1503 = vsel %vm1375, %v1311, %v1439
        %v1504 = vsel %vm1376, %v1312, %v1440
        %v1505 = vsel %vm1377, %v1313, %v1441
        %v1506 = vsel %vm1378, %v1314, %v1442
        %v1507 = vsel %vm1379, %v1315, %v1443
        %v1508 = vsel %vm1380, %v1316, %v1444
        %v1509 = vsel %vm1381, %v1317, %v1445
        %v1510 = vsel %vm1382, %v1318, %v1446
        %v1511 = vsel %vm1383, %v1319, %v1447
        %v1512 = vsel %vm1384, %v1320, %v1448
        %v1513 = vsel %vm1385, %v1321, %v1449
        %v1514 = vsel %vm1386, %v1322, %v1450
        %v1515 = vsel %vm1387, %v1323, %v1451
        %v1516 = vsel %vm1388, %v1324, %v1452
        %v1517 = vsel %vm1389, %v1325, %v1453
        %v1518 = vsel %vm1390, %v1326, %v1454
        %v1519 = vsel %vm1391, %v1327, %v1455
        %v1520 = vsel %vm1392, %v1328, %v1456
        %v1521 = vsel %vm1393, %v1329, %v1457
        %v1522 = vsel %vm1394, %v1330, %v1458
        %v1523 = vsel %vm1395, %v1331, %v1459
        %v1524 = vsel %vm1396, %v1332, %v1460
        %v1525 = vsel %vm1397, %v1333, %v1461
        %v1526 = vsel %vm1398, %v1334, %v1462
        %v1527 = vsel %vm1399, %v1335, %v1463
        %v1528 = vsel %vm1400, %v1336, %v1464
        %v1529 = vsel %vm1401, %v1337, %v1465
        %v1530 = vsel %vm1402, %v1338, %v1466
        %v1531 = vsel %vm1403, %v1339, %v1467
        %v1532 = vsel %vm1404, %v1340, %v1468
        %v1533 = vsel %vm1405, %v1341, %v1469
        %v1534 = vsel %vm1406, %v1342, %v1470
        %v1535 = vsel %vm1407, %v1343, %v1471
        %v1536 = vsel %vm1408, %v1344, %v1472
        %v1537 = vsel %vm1409, %v1345, %v1473
        %v1538 = vsel %vm1410, %v1346, %v1474
        %v1539 = vsel %vm1411, %v1347, %v1475
        %v1540 = vsel %vm1412, %v1348, %v1476
        %v1541 = vsel %vm1413, %v1349, %v1477
        %v1542 = vsel %vm1414, %v1350, %v1478
        %v1543 = vsel %vm1415, %v1351, %v1479
        %v1544 = vsel %vm1416, %v1352, %v1480
        %v1545 = vsel %vm1417, %v1353, %v1481
        %v1546 = vsel %vm1418, %v1354, %v1482
        %v1547 = vsel %vm1419, %v1355, %v1483
        %v1548 = vsel %vm1420, %v1356, %v1484
        %v1549 = vpack.c.bf16 %v1486, %v1485
        %v1550 = vpack.c.bf16 %v1488, %v1487
        %v1551 = vpack.c.bf16 %v1490, %v1489
        %v1552 = vpack.c.bf16 %v1492, %v1491
        %v1553 = vpack.c.bf16 %v1494, %v1493
        %v1554 = vpack.c.bf16 %v1496, %v1495
        %v1555 = vpack.c.bf16 %v1498, %v1497
        %v1556 = vpack.c.bf16 %v1500, %v1499
        %v1557 = vpack.c.bf16 %v1502, %v1501
        %v1558 = vpack.c.bf16 %v1504, %v1503
        %v1559 = vpack.c.bf16 %v1506, %v1505
        %v1560 = vpack.c.bf16 %v1508, %v1507
        %v1561 = vpack.c.bf16 %v1510, %v1509
        %v1562 = vpack.c.bf16 %v1512, %v1511
        %v1563 = vpack.c.bf16 %v1514, %v1513
        %v1564 = vpack.c.bf16 %v1516, %v1515
        %v1565 = vpack.c.bf16 %v1518, %v1517
        %v1566 = vpack.c.bf16 %v1520, %v1519
        %v1567 = vpack.c.bf16 %v1522, %v1521
        %v1568 = vpack.c.bf16 %v1524, %v1523
        %v1569 = vpack.c.bf16 %v1526, %v1525
        %v1570 = vpack.c.bf16 %v1528, %v1527
        %v1571 = vpack.c.bf16 %v1530, %v1529
        %v1572 = vpack.c.bf16 %v1532, %v1531
        %v1573 = vpack.c.bf16 %v1534, %v1533
        %v1574 = vpack.c.bf16 %v1536, %v1535
        %v1575 = vpack.c.bf16 %v1538, %v1537
        %v1576 = vpack.c.bf16 %v1540, %v1539
        %v1577 = vpack.c.bf16 %v1542, %v1541
        %v1578 = vpack.c.bf16 %v1544, %v1543
        %v1579 = vpack.c.bf16 %v1546, %v1545
        %v1580 = vpack.c.bf16 %v1548, %v1547
        %v1613 = vunpack.c.l.b16 %v1549
        %v1614 = vunpack.c.h.b16 %v1549
        %v1615 = vunpack.c.l.b16 %v1550
        %v1616 = vunpack.c.h.b16 %v1550
        %v1617 = vunpack.c.l.b16 %v1551
        %v1618 = vunpack.c.h.b16 %v1551
        %v1619 = vunpack.c.l.b16 %v1552
        %v1620 = vunpack.c.h.b16 %v1552
        %v1621 = vunpack.c.l.b16 %v1553
        %v1622 = vunpack.c.h.b16 %v1553
        %v1623 = vunpack.c.l.b16 %v1554
        %v1624 = vunpack.c.h.b16 %v1554
        %v1625 = vunpack.c.l.b16 %v1555
        %v1626 = vunpack.c.h.b16 %v1555
        %v1627 = vunpack.c.l.b16 %v1556
        %v1628 = vunpack.c.h.b16 %v1556
        %v1629 = vunpack.c.l.b16 %v1557
        %v1630 = vunpack.c.h.b16 %v1557
        %v1631 = vunpack.c.l.b16 %v1558
        %v1632 = vunpack.c.h.b16 %v1558
        %v1633 = vunpack.c.l.b16 %v1559
        %v1634 = vunpack.c.h.b16 %v1559
        %v1635 = vunpack.c.l.b16 %v1560
        %v1636 = vunpack.c.h.b16 %v1560
        %v1637 = vunpack.c.l.b16 %v1561
        %v1638 = vunpack.c.h.b16 %v1561
        %v1639 = vunpack.c.l.b16 %v1562
        %v1640 = vunpack.c.h.b16 %v1562
        %v1641 = vunpack.c.l.b16 %v1563
        %v1642 = vunpack.c.h.b16 %v1563
        %v1643 = vunpack.c.l.b16 %v1564
        %v1644 = vunpack.c.h.b16 %v1564
        %v1645 = vunpack.c.l.b16 %v1565
        %v1646 = vunpack.c.h.b16 %v1565
        %v1647 = vunpack.c.l.b16 %v1566
        %v1648 = vunpack.c.h.b16 %v1566
        %v1649 = vunpack.c.l.b16 %v1567
        %v1650 = vunpack.c.h.b16 %v1567
        %v1651 = vunpack.c.l.b16 %v1568
        %v1652 = vunpack.c.h.b16 %v1568
        %v1653 = vunpack.c.l.b16 %v1569
        %v1654 = vunpack.c.h.b16 %v1569
        %v1655 = vunpack.c.l.b16 %v1570
        %v1656 = vunpack.c.h.b16 %v1570
        %v1657 = vunpack.c.l.b16 %v1571
        %v1658 = vunpack.c.h.b16 %v1571
        %v1659 = vunpack.c.l.b16 %v1572
        %v1660 = vunpack.c.h.b16 %v1572
        %v1661 = vunpack.c.l.b16 %v1573
        %v1662 = vunpack.c.h.b16 %v1573
        %v1663 = vunpack.c.l.b16 %v1574
        %v1664 = vunpack.c.h.b16 %v1574
        %v1665 = vunpack.c.l.b16 %v1575
        %v1666 = vunpack.c.h.b16 %v1575
        %v1667 = vunpack.c.l.b16 %v1576
        %v1668 = vunpack.c.h.b16 %v1576
        %v1669 = vunpack.c.l.b16 %v1577
        %v1670 = vunpack.c.h.b16 %v1577
        %v1671 = vunpack.c.l.b16 %v1578
        %v1672 = vunpack.c.h.b16 %v1578
        %v1673 = vunpack.c.l.b16 %v1579
        %v1674 = vunpack.c.h.b16 %v1579
        %v1675 = vunpack.c.l.b16 %v1580
        %v1676 = vunpack.c.h.b16 %v1580
        %v1677 = vpack.c.b16 %v1613, %v1613
        %v1678 = vpack.c.b16 %v1614, %v1614
        %v1679 = vpack.c.b16 %v1615, %v1615
        %v1680 = vpack.c.b16 %v1616, %v1616
        %v1681 = vpack.c.b16 %v1617, %v1617
        %v1682 = vpack.c.b16 %v1618, %v1618
        %v1683 = vpack.c.b16 %v1619, %v1619
        %v1684 = vpack.c.b16 %v1620, %v1620
        %v1685 = vpack.c.b16 %v1621, %v1621
        %v1686 = vpack.c.b16 %v1622, %v1622
        %v1687 = vpack.c.b16 %v1623, %v1623
        %v1688 = vpack.c.b16 %v1624, %v1624
        %v1689 = vpack.c.b16 %v1625, %v1625
        %v1690 = vpack.c.b16 %v1626, %v1626
        %v1691 = vpack.c.b16 %v1627, %v1627
        %v1692 = vpack.c.b16 %v1628, %v1628
        %v1693 = vpack.c.b16 %v1629, %v1629
        %v1694 = vpack.c.b16 %v1630, %v1630
        %v1695 = vpack.c.b16 %v1631, %v1631
        %v1696 = vpack.c.b16 %v1632, %v1632
        %v1697 = vpack.c.b16 %v1633, %v1633
        %v1698 = vpack.c.b16 %v1634, %v1634
        %v1699 = vpack.c.b16 %v1635, %v1635
        %v1700 = vpack.c.b16 %v1636, %v1636
        %v1701 = vpack.c.b16 %v1637, %v1637
        %v1702 = vpack.c.b16 %v1638, %v1638
        %v1703 = vpack.c.b16 %v1639, %v1639
        %v1704 = vpack.c.b16 %v1640, %v1640
        %v1705 = vpack.c.b16 %v1641, %v1641
        %v1706 = vpack.c.b16 %v1642, %v1642
        %v1707 = vpack.c.b16 %v1643, %v1643
        %v1708 = vpack.c.b16 %v1644, %v1644
        %v1709 = vpack.c.b16 %v1645, %v1645
        %v1710 = vpack.c.b16 %v1646, %v1646
        %v1711 = vpack.c.b16 %v1647, %v1647
        %v1712 = vpack.c.b16 %v1648, %v1648
        %v1713 = vpack.c.b16 %v1649, %v1649
        %v1714 = vpack.c.b16 %v1650, %v1650
        %v1715 = vpack.c.b16 %v1651, %v1651
        %v1716 = vpack.c.b16 %v1652, %v1652
        %v1717 = vpack.c.b16 %v1653, %v1653
        %v1718 = vpack.c.b16 %v1654, %v1654
        %v1719 = vpack.c.b16 %v1655, %v1655
        %v1720 = vpack.c.b16 %v1656, %v1656
        %v1721 = vpack.c.b16 %v1657, %v1657
        %v1722 = vpack.c.b16 %v1658, %v1658
        %v1723 = vpack.c.b16 %v1659, %v1659
        %v1724 = vpack.c.b16 %v1660, %v1660
        %v1725 = vpack.c.b16 %v1661, %v1661
        %v1726 = vpack.c.b16 %v1662, %v1662
        %v1727 = vpack.c.b16 %v1663, %v1663
        %v1728 = vpack.c.b16 %v1664, %v1664
        %v1729 = vpack.c.b16 %v1665, %v1665
        %v1730 = vpack.c.b16 %v1666, %v1666
        %v1731 = vpack.c.b16 %v1667, %v1667
        %v1732 = vpack.c.b16 %v1668, %v1668
        %v1733 = vpack.c.b16 %v1669, %v1669
        %v1734 = vpack.c.b16 %v1670, %v1670
        %v1735 = vpack.c.b16 %v1671, %v1671
        %v1736 = vpack.c.b16 %v1672, %v1672
        %v1737 = vpack.c.b16 %v1673, %v1673
        %v1738 = vpack.c.b16 %v1674, %v1674
        %v1739 = vpack.c.b16 %v1675, %v1675
        %v1740 = vpack.c.b16 %v1676, %v1676
        %1805 = vst [vmem:[%s229] sm:$0xf] %v1677
        %1806 = vst [vmem:[%s229 + $0x4] sm:$0xf] %v1678
        %1807 = vst [vmem:[%s229 + $0x8] sm:$0xf] %v1679
        %1808 = vst [vmem:[%s229 + $0xc] sm:$0xf] %v1680
        %1809 = vst [vmem:[%s229 + $0x10] sm:$0xf] %v1681
        %1810 = vst [vmem:[%s229 + $0x14] sm:$0xf] %v1682
        %1811 = vst [vmem:[%s229 + $0x18] sm:$0xf] %v1683
        %1812 = vst [vmem:[%s229 + $0x1c] sm:$0xf] %v1684
        %1813 = vst [vmem:[%s229 + $0x20] sm:$0xf] %v1685
        %1814 = vst [vmem:[%s229 + $0x24] sm:$0xf] %v1686
        %1815 = vst [vmem:[%s229 + $0x28] sm:$0xf] %v1687
        %1816 = vst [vmem:[%s229 + $0x2c] sm:$0xf] %v1688
        %1817 = vst [vmem:[%s229 + $0x30] sm:$0xf] %v1689
        %1818 = vst [vmem:[%s229 + $0x34] sm:$0xf] %v1690
        %1819 = vst [vmem:[%s229 + $0x38] sm:$0xf] %v1691
        %1820 = vst [vmem:[%s229 + $0x3c] sm:$0xf] %v1692
        %1821 = vst [vmem:[%s229 + $0x40] sm:$0xf] %v1693
        %1822 = vst [vmem:[%s229 + $0x44] sm:$0xf] %v1694
        %1823 = vst [vmem:[%s229 + $0x48] sm:$0xf] %v1695
        %1824 = vst [vmem:[%s229 + $0x4c] sm:$0xf] %v1696
        %1825 = vst [vmem:[%s229 + $0x50] sm:$0xf] %v1697
        %1826 = vst [vmem:[%s229 + $0x54] sm:$0xf] %v1698
        %1827 = vst [vmem:[%s229 + $0x58] sm:$0xf] %v1699
        %1828 = vst [vmem:[%s229 + $0x5c] sm:$0xf] %v1700
        %1829 = vst [vmem:[%s229 + $0x60] sm:$0xf] %v1701
        %1830 = vst [vmem:[%s229 + $0x64] sm:$0xf] %v1702
        %1831 = vst [vmem:[%s229 + $0x68] sm:$0xf] %v1703
        %1832 = vst [vmem:[%s229 + $0x6c] sm:$0xf] %v1704
        %1833 = vst [vmem:[%s229 + $0x70] sm:$0xf] %v1705
        %1834 = vst [vmem:[%s229 + $0x74] sm:$0xf] %v1706
        %1835 = vst [vmem:[%s229 + $0x78] sm:$0xf] %v1707
        %1836 = vst [vmem:[%s229 + $0x7c] sm:$0xf] %v1708
        %1837 = vst [vmem:[%s229 + $0x80] sm:$0xf] %v1709
        %1838 = vst [vmem:[%s229 + $0x84] sm:$0xf] %v1710
        %1839 = vst [vmem:[%s229 + $0x88] sm:$0xf] %v1711
        %1840 = vst [vmem:[%s229 + $0x8c] sm:$0xf] %v1712
        %1841 = vst [vmem:[%s229 + $0x90] sm:$0xf] %v1713
        %1842 = vst [vmem:[%s229 + $0x94] sm:$0xf] %v1714
        %1843 = vst [vmem:[%s229 + $0x98] sm:$0xf] %v1715
        %1844 = vst [vmem:[%s229 + $0x9c] sm:$0xf] %v1716
        %1845 = vst [vmem:[%s229 + $0xa0] sm:$0xf] %v1717
        %1846 = vst [vmem:[%s229 + $0xa4] sm:$0xf] %v1718
        %1847 = vst [vmem:[%s229 + $0xa8] sm:$0xf] %v1719
        %1848 = vst [vmem:[%s229 + $0xac] sm:$0xf] %v1720
        %1849 = vst [vmem:[%s229 + $0xb0] sm:$0xf] %v1721
        %1850 = vst [vmem:[%s229 + $0xb4] sm:$0xf] %v1722
        %1851 = vst [vmem:[%s229 + $0xb8] sm:$0xf] %v1723
        %1852 = vst [vmem:[%s229 + $0xbc] sm:$0xf] %v1724
        %1853 = vst [vmem:[%s229 + $0xc0] sm:$0xf] %v1725
        %1854 = vst [vmem:[%s229 + $0xc4] sm:$0xf] %v1726
        %1855 = vst [vmem:[%s229 + $0xc8] sm:$0xf] %v1727
        %1856 = vst [vmem:[%s229 + $0xcc] sm:$0xf] %v1728
        %1857 = vst [vmem:[%s229 + $0xd0] sm:$0xf] %v1729
        %1858 = vst [vmem:[%s229 + $0xd4] sm:$0xf] %v1730
        %1859 = vst [vmem:[%s229 + $0xd8] sm:$0xf] %v1731
        %1860 = vst [vmem:[%s229 + $0xdc] sm:$0xf] %v1732
        %1861 = vst [vmem:[%s229 + $0xe0] sm:$0xf] %v1733
        %1862 = vst [vmem:[%s229 + $0xe4] sm:$0xf] %v1734
        %1863 = vst [vmem:[%s229 + $0xe8] sm:$0xf] %v1735
        %1864 = vst [vmem:[%s229 + $0xec] sm:$0xf] %v1736
        %1865 = vst [vmem:[%s229 + $0xf0] sm:$0xf] %v1737
        %1866 = vst [vmem:[%s229 + $0xf4] sm:$0xf] %v1738
        %1867 = vst [vmem:[%s229 + $0xf8] sm:$0xf] %v1739
        %1868 = vst [vmem:[%s229 + $0xfc] sm:$0xf] %v1740
      $region52: #{discriminator_forward.6} parent=35 // pred_fallthru
        _
      %s1869 = smul.u32 %s19, %s20
      %s1870 = smul.u32 64, %s1869
      %p1871 = scmp.lt.s32.totalorder %s1870, 63
      %s1872 = scalar_select %p1871, %s1870, 63
      %s1873 = smul.addr %s1872, 4
      %s1874 = scalar_lea.vmem %s4, %s1873
      // Predicated region
      $region53: #{discriminator_forward.6} parent=35 // pred_check
        %p1875 = pneg %p140
      $region54: #{discriminator_forward.6} parent=35 // pred_check_branch
        %1877 = sbr.rel (%p1875) target = $region56
      $region55: #{discriminator_forward.6} parent=35 // pred_region
        %s1878 = smul.u32 %s19, %s20
        %s1879 = smul.u32 64, %s1878
      $region56: #{discriminator_forward.6} parent=35 // pred_fallthru
        _
    $region36: #{discriminator_forward.6} parent=5 // pred_fallthru
      _
    %p1880 = scmp.le.s32.totalorder 2, %s10
    // Predicated region
    $region57: #{discriminator_forward.6} parent=5 // pred_check
      %p1881 = pneg %p1880
    $region58: #{discriminator_forward.6} parent=5 // pred_check_branch
      %1883 = sbr.rel (%p1881) target = $region60
    $region59: #{discriminator_forward.6} parent=5 // pred_region
      %s1884 = ssub.s32 %s10, 2
      // Predicated region
      $region61: #{discriminator_forward.6} parent=59 // pred_check
        %p1885 = pneg %p146
      $region62: #{discriminator_forward.6} parent=59 // pred_check_branch
        %1887 = sbr.rel (%p1885) target = $region64
      $region63: #{discriminator_forward.6} parent=59 // pred_region
        %s1888 = smul.u32 %s21, %s22
        %s1889 = smul.u32 64, %s1888
        %p1890 = scmp.lt.s32.totalorder %s1889, 63
        %s1891 = scalar_select %p1890, %s1889, 63
        %s1892 = smul.addr %s1891, 4
        %s1893 = scalar_lea.vmem %s4, %s1892
      $region64: #{discriminator_forward.6} parent=59 // pred_fallthru
        _
    $region60: #{discriminator_forward.6} parent=5 // pred_fallthru
      _
  $region6: #{discriminator_forward.6} parent=0 // loop_footer
    %s14 = sadd.s32 1, %s10
  $region7: #{discriminator_forward.6} parent=0 // loop_footer_branch
    %9 = sbr.rel target = $region3
  $region8: #{discriminator_forward.6} parent=0 // loop_exit
    _

// kernel: discriminator_forward.7
$region0: #{discriminator_forward.7}
  #allocation0 [shape = 'u32[]', space=smem, size = 0x4, offset = 0x4, fixed_abs, tag = 'smem constant byte address 0x4 - core index']
  #allocation1 [shape = 'u32[144,128]{1,0:T(1,128)}', space=vmem, size = 0x12000, scoped, tag = 'internal scratch']
  #allocation2 [shape = 'f32[1,128,128]{2,1,0:T(8,128)}', space=vmem, size = 0x10000, scoped, tag = 'scratch operand']
  #allocation3 [shape = 'f32[1,128]{1,0:T(1,128)}', space=vmem, size = 0x200, scoped, tag = 'scratch operand']
  #allocation4 [shape = 'f32[1,128]{1,0:T(1,128)}', space=vmem, size = 0x200, scoped, tag = 'scratch operand']
  #allocation5 [shape = 'f32[1,128]{1,0:T(1,128)}', space=vmem, size = 0x200, scoped, tag = 'scratch operand']
  #allocation6 [shape = 'f32[1,128]{1,0:T(1,128)}', space=vmem, size = 0x200, scoped, tag = 'scratch operand']
  %s0 = inlined_call_operand.vmem [shape: bf16[128,256], index: 0, kind: input, shape index: {}]
  %s1 = inlined_call_operand.vmem [shape: bf16[256,128], index: 1, kind: input, shape index: {}]
  %s2 = inlined_call_operand.vmem [shape: f32[1,128], index: 2, kind: input, shape index: {}]
  %s3 = inlined_call_operand.vmem [shape: f32[1,128], index: 3, kind: input, shape index: {}]
  %s4 = inlined_call_operand.vmem [shape: bf16[128,128], index: 4, kind: output, shape index: {}]
  %s5 = sld [smem:[#allocation0]]
  $region65: #{discriminator_forward.7} parent=0
    _
  %s7 = ssub.s32 1, %s5
  %s8 = scalar_select 0, %s7, %s5
  loop: start=0, step=1, limit=4
  $region2: #{discriminator_forward.7} parent=0 // loop_pre_header
    _
  $region3: #{discriminator_forward.7} parent=0 // loop_header
    %s10 = sphi 0, %s14
    %p11 = scmp.ge.s32.totalorder %s10, 4
    %s17 = sphi 0, %s29
    %s18 = sphi 0, %s25
    %s19 = sphi 0, %s17
    %s20 = sphi 0, %s18
    %s21 = sphi 0, %s19
    %s22 = sphi 0, %s20
    %s36 = sphi 0, %s38
    %s39 = sphi 0, %s36
    %s40 = sphi 0, %s39
    %s56 = sphi 0, %s40
    %s60 = sphi 0, %s60
    %s62 = sphi 0, %s60
    %s63 = sphi 0, %s62
    %s77 = sphi 0, %s63
    %s81 = sphi 0, %s81
    %s83 = sphi 0, %s81
    %s84 = sphi 0, %s83
    %s98 = sphi 0, %s84
    %s102 = sphi 0, %s102
    %s104 = sphi 0, %s102
    %s105 = sphi 0, %s104
    %s119 = sphi 0, %s105
    %s127 = sphi 0, %s129
    %s130 = sphi 0, %s127
    %s131 = sphi 0, %s130
    %s147 = sphi 0, %s131
  $region4: #{discriminator_forward.7} parent=0 // loop_header_branch
    %13 = sbr.rel (%p11) target = $region8
  $region5: #{discriminator_forward.7} parent=0 // loop_body
    %s15 = ssub.s32 %s10, 1
    %s16 = ssub.s32 %s10, 2
    %s23 = sadd.s32 1, %s18
    %p24 = scmp.ge.s32.totalorder %s23, 1
    %s25 = scalar_select %p24, 0, %s23
    %s26 = sadd.s32 1, %s17
    %s27 = scalar_select %p24, %s26, %s17
    %p28 = scmp.ge.s32.totalorder %s27, 2
    %s29 = scalar_select %p28, 0, %s27
    %s30 = ssub.s32 1, %s17
    %s31 = smul.u32 %s30, %s18
    %s32 = ssub.s32 1, %s29
    %s33 = smul.u32 %s32, %s25
    %s34 = ssub.s32 %s31, %s33
    %p35 = scmp.eq.s32.totalorder %s34, 0
    %s37 = sadd.s32 %s36, 1
    %s38 = scalar_select %p35, %s36, %s37
    %p41 = pneg %p35
    %p42 = scmp.eq.s32.totalorder %s10, 1
    %p43 = por %p41, %p42
    %p44 = scmp.ne.s32.totalorder %s36, %s39
    %p45 = scmp.eq.s32.totalorder %s10, 0
    %p46 = por %p44, %p45
    %p47 = scmp.ne.s32.totalorder %s36, %s39
    %p48 = scmp.eq.s32.totalorder %s15, 1
    %p49 = por %p47, %p48
    %p50 = scmp.ne.s32.totalorder %s39, %s40
    %p51 = scmp.eq.s32.totalorder %s15, 0
    %p52 = por %p50, %p51
    %p53 = scmp.ne.s32.totalorder %s39, %s40
    %p54 = scmp.eq.s32.totalorder %s16, 1
    %p55 = por %p53, %p54
    %p57 = scmp.ne.s32.totalorder %s40, %s56
    %p58 = scmp.eq.s32.totalorder %s16, 0
    %p59 = por %p57, %p58
    %s61 = sadd.s32 %s60, 1
    %p64 = scmp.eq.s32.totalorder %s10, 1
    %p65 = scmp.ne.s32.totalorder %s60, %s62
    %p66 = scmp.eq.s32.totalorder %s10, 0
    %p67 = por %p65, %p66
    %p68 = scmp.ne.s32.totalorder %s60, %s62
    %p69 = scmp.eq.s32.totalorder %s15, 1
    %p70 = por %p68, %p69
    %p71 = scmp.ne.s32.totalorder %s62, %s63
    %p72 = scmp.eq.s32.totalorder %s15, 0
    %p73 = por %p71, %p72
    %p74 = scmp.ne.s32.totalorder %s62, %s63
    %p75 = scmp.eq.s32.totalorder %s16, 1
    %p76 = por %p74, %p75
    %p78 = scmp.ne.s32.totalorder %s63, %s77
    %p79 = scmp.eq.s32.totalorder %s16, 0
    %p80 = por %p78, %p79
    %s82 = sadd.s32 %s81, 1
    %p85 = scmp.eq.s32.totalorder %s10, 1
    %p86 = scmp.ne.s32.totalorder %s81, %s83
    %p87 = scmp.eq.s32.totalorder %s10, 0
    %p88 = por %p86, %p87
    %p89 = scmp.ne.s32.totalorder %s81, %s83
    %p90 = scmp.eq.s32.totalorder %s15, 1
    %p91 = por %p89, %p90
    %p92 = scmp.ne.s32.totalorder %s83, %s84
    %p93 = scmp.eq.s32.totalorder %s15, 0
    %p94 = por %p92, %p93
    %p95 = scmp.ne.s32.totalorder %s83, %s84
    %p96 = scmp.eq.s32.totalorder %s16, 1
    %p97 = por %p95, %p96
    %p99 = scmp.ne.s32.totalorder %s84, %s98
    %p100 = scmp.eq.s32.totalorder %s16, 0
    %p101 = por %p99, %p100
    %s103 = sadd.s32 %s102, 1
    %p106 = scmp.eq.s32.totalorder %s10, 1
    %p107 = scmp.ne.s32.totalorder %s102, %s104
    %p108 = scmp.eq.s32.totalorder %s10, 0
    %p109 = por %p107, %p108
    %p110 = scmp.ne.s32.totalorder %s102, %s104
    %p111 = scmp.eq.s32.totalorder %s15, 1
    %p112 = por %p110, %p111
    %p113 = scmp.ne.s32.totalorder %s104, %s105
    %p114 = scmp.eq.s32.totalorder %s15, 0
    %p115 = por %p113, %p114
    %p116 = scmp.ne.s32.totalorder %s104, %s105
    %p117 = scmp.eq.s32.totalorder %s16, 1
    %p118 = por %p116, %p117
    %p120 = scmp.ne.s32.totalorder %s105, %s119
    %p121 = scmp.eq.s32.totalorder %s16, 0
    %p122 = por %p120, %p121
    %s123 = smul.u32 %s17, %s18
    %s124 = smul.u32 %s29, %s25
    %s125 = ssub.s32 %s123, %s124
    %p126 = scmp.eq.s32.totalorder %s125, 0
    %s128 = sadd.s32 %s127, 1
    %s129 = scalar_select %p126, %s127, %s128
    %p132 = pneg %p126
    %p133 = scmp.eq.s32.totalorder %s10, 1
    %p134 = por %p132, %p133
    %p135 = scmp.ne.s32.totalorder %s127, %s130
    %p136 = scmp.eq.s32.totalorder %s10, 0
    %p137 = por %p135, %p136
    %p138 = scmp.ne.s32.totalorder %s127, %s130
    %p139 = scmp.eq.s32.totalorder %s15, 1
    %p140 = por %p138, %p139
    %p141 = scmp.ne.s32.totalorder %s130, %s131
    %p142 = scmp.eq.s32.totalorder %s15, 0
    %p143 = por %p141, %p142
    %p144 = scmp.ne.s32.totalorder %s130, %s131
    %p145 = scmp.eq.s32.totalorder %s16, 1
    %p146 = por %p144, %p145
    %p148 = scmp.ne.s32.totalorder %s131, %s147
    %p149 = scmp.eq.s32.totalorder %s16, 0
    %p150 = por %p148, %p149
    %p151 = scmp.le.s32.totalorder 1, %s10
    %p152 = scmp.lt.s32.totalorder %s10, 3
    %p153 = pnand %p151, %p152
    %p154 = pneg %p153
    // Predicated region
    $region9: #{discriminator_forward.7} parent=5 // pred_check
      _
    $region10: #{discriminator_forward.7} parent=5 // pred_check_branch
      %156 = sbr.rel (%p153) target = $region12
    $region11: #{discriminator_forward.7} parent=5 // pred_region
      %s157 = ssub.s32 %s10, 1
      // Predicated region
      $region13: #{discriminator_forward.7} parent=11 // pred_check
        %p158 = pneg %p73
      $region14: #{discriminator_forward.7} parent=11 // pred_check_branch
        %160 = sbr.rel (%p158) target = $region16
      $region15: #{discriminator_forward.7} parent=11 // pred_region
        _
      $region16: #{discriminator_forward.7} parent=11 // pred_fallthru
        _
      // Predicated region
      $region17: #{discriminator_forward.7} parent=11 // pred_check
        %p161 = pneg %p94
      $region18: #{discriminator_forward.7} parent=11 // pred_check_branch
        %163 = sbr.rel (%p161) target = $region20
      $region19: #{discriminator_forward.7} parent=11 // pred_region
        _
      $region20: #{discriminator_forward.7} parent=11 // pred_fallthru
        _
      // Predicated region
      $region21: #{discriminator_forward.7} parent=11 // pred_check
        %p164 = pneg %p115
      $region22: #{discriminator_forward.7} parent=11 // pred_check_branch
        %166 = sbr.rel (%p164) target = $region24
      $region23: #{discriminator_forward.7} parent=11 // pred_region
        _
      $region24: #{discriminator_forward.7} parent=11 // pred_fallthru
        _
    $region12: #{discriminator_forward.7} parent=5 // pred_fallthru
      _
    %p167 = scmp.lt.s32.totalorder %s10, 2
    // Predicated region
    $region25: #{discriminator_forward.7} parent=5 // pred_check
      %p168 = pneg %p167
    $region26: #{discriminator_forward.7} parent=5 // pred_check_branch
      %170 = sbr.rel (%p168) target = $region28
    $region27: #{discriminator_forward.7} parent=5 // pred_region
      // Predicated region
      $region29: #{discriminator_forward.7} parent=27 // pred_check
        %p171 = pneg %p46
      $region30: #{discriminator_forward.7} parent=27 // pred_check_branch
        %173 = sbr.rel (%p171) target = $region32
      $region31: #{discriminator_forward.7} parent=27 // pred_region
        %s174 = ssub.s32 1, %s17
        %s175 = smul.u32 %s174, %s18
        %s176 = smul.u32 16, %s175
        %p177 = scmp.lt.s32.totalorder %s176, 15
        %s178 = scalar_select %p177, %s176, 15
        %s179 = smul.addr %s178, 2
        %s180 = smul.addr %s179, 4
        %s181 = scalar_lea.vmem %s0, %s180
        %s182 = ssub.s32 1, %s17
        %s183 = smul.u32 %s182, %s18
        %s184 = smul.u32 16, %s183
      $region32: #{discriminator_forward.7} parent=27 // pred_fallthru
        _
    $region28: #{discriminator_forward.7} parent=5 // pred_fallthru
      _
    %p185 = scmp.le.s32.totalorder 1, %s10
    %p186 = scmp.lt.s32.totalorder %s10, 3
    %p187 = pnand %p185, %p186
    %p188 = pneg %p187
    // Predicated region
    $region33: #{discriminator_forward.7} parent=5 // pred_check
      _
    $region34: #{discriminator_forward.7} parent=5 // pred_check_branch
      %190 = sbr.rel (%p187) target = $region36
    $region35: #{discriminator_forward.7} parent=5 // pred_region
      %s191 = ssub.s32 %s10, 1
      %s192 = ssub.s32 1, %s19
      %s193 = smul.u32 %s192, %s20
      %s194 = smul.u32 16, %s193
      %p195 = scmp.lt.s32.totalorder %s194, 15
      %s196 = scalar_select %p195, %s194, 15
      %s197 = smul.addr %s196, 2
      %s198 = smul.addr %s197, 4
      %s199 = scalar_lea.vmem %s0, %s198
      %p200 = pneg %p52
      %p201 = pneg %p49
      %p202 = pneg %p73
      %p203 = pneg %p70
      %p204 = pneg %p94
      %p205 = pneg %p91
      %p206 = pneg %p115
      %p207 = pneg %p112
      %p208 = pneg %p143
      %p209 = pneg %p140
      %s210 = smul.u32 %s19, %s20
      %s211 = smul.u32 16, %s210
      %p212 = scmp.lt.s32.totalorder %s211, 15
      %s213 = scalar_select %p212, %s211, 15
      %s214 = smul.addr %s213, 4
      %s215 = scalar_lea.vmem %s4, %s214
      %s216 = ssub.s32 1, %s19
      %s217 = smul.u32 %s216, %s20
      %s218 = smul.u32 16, %s217
      %p219 = scmp.lt.s32.totalorder %s218, 15
      %s220 = scalar_select %p219, %s218, 15
      %s221 = smul.addr %s220, 2
      %s222 = smul.addr %s221, 4
      %s223 = scalar_lea.vmem %s0, %s222
      %s224 = ssub.s32 1, %s19
      %s225 = smul.u32 %s224, %s20
      %s226 = smul.u32 16, %s225
      %s227 = smul.u32 %s19, %s20
      %s228 = smul.u32 16, %s227
      %p229 = scmp.lt.s32.totalorder %s228, 15
      %s230 = scalar_select %p229, %s228, 15
      %s231 = smul.addr %s230, 4
      %s232 = scalar_lea.vmem %s4, %s231
      %s233 = smul.u32 %s19, %s20
      %s234 = smul.u32 16, %s233
      %p236 = scmp.eq.s32.totalorder %s19, 0
      // Predicated region
      $region37: #{discriminator_forward.7} parent=35 // pred_check
        %p237 = pneg %p236
      $region38: #{discriminator_forward.7} parent=35 // pred_check_branch
        %239 = sbr.rel (%p237) target = $region40
      $region39: #{discriminator_forward.7} parent=35 // pred_region
        %v240 = vld [vmem:[%s223] sm:$0xff]
        %v241 = vld [vmem:[%s223 + $0x8] sm:$0xff]
        %v242 = vld [vmem:[%s223 + $0x10] sm:$0xff]
        %v243 = vld [vmem:[%s223 + $0x18] sm:$0xff]
        %v244 = vld [vmem:[%s223 + $0x20] sm:$0xff]
        %v245 = vld [vmem:[%s223 + $0x28] sm:$0xff]
        %v246 = vld [vmem:[%s223 + $0x30] sm:$0xff]
        %v247 = vld [vmem:[%s223 + $0x38] sm:$0xff]
        %v248 = vld [vmem:[%s223 + $0x40] sm:$0xff]
        %v249 = vld [vmem:[%s223 + $0x48] sm:$0xff]
        %v250 = vld [vmem:[%s223 + $0x50] sm:$0xff]
        %v251 = vld [vmem:[%s223 + $0x58] sm:$0xff]
        %v252 = vld [vmem:[%s223 + $0x60] sm:$0xff]
        %v253 = vld [vmem:[%s223 + $0x68] sm:$0xff]
        %v254 = vld [vmem:[%s223 + $0x70] sm:$0xff]
        %v255 = vld [vmem:[%s223 + $0x78] sm:$0xff]
        %v256 = vld [vmem:[%s1] sm:$0xf]
        %v257 = vld [vmem:[%s1 + $0x4] sm:$0xf]
        %v258 = vld [vmem:[%s1 + $0x8] sm:$0xf]
        %v259 = vld [vmem:[%s1 + $0xc] sm:$0xf]
        %v260 = vld [vmem:[%s1 + $0x10] sm:$0xf]
        %v261 = vld [vmem:[%s1 + $0x14] sm:$0xf]
        %v262 = vld [vmem:[%s1 + $0x18] sm:$0xf]
        %v263 = vld [vmem:[%s1 + $0x1c] sm:$0xf]
        %v264 = vld [vmem:[%s1 + $0x20] sm:$0xf]
        %v265 = vld [vmem:[%s1 + $0x24] sm:$0xf]
        %v266 = vld [vmem:[%s1 + $0x28] sm:$0xf]
        %v267 = vld [vmem:[%s1 + $0x2c] sm:$0xf]
        %v268 = vld [vmem:[%s1 + $0x30] sm:$0xf]
        %v269 = vld [vmem:[%s1 + $0x34] sm:$0xf]
        %v270 = vld [vmem:[%s1 + $0x38] sm:$0xf]
        %v271 = vld [vmem:[%s1 + $0x3c] sm:$0xf]
        %v272 = vld [vmem:[%s1 + $0x40] sm:$0xf]
        %v273 = vld [vmem:[%s1 + $0x44] sm:$0xf]
        %v274 = vld [vmem:[%s1 + $0x48] sm:$0xf]
        %v275 = vld [vmem:[%s1 + $0x4c] sm:$0xf]
        %v276 = vld [vmem:[%s1 + $0x50] sm:$0xf]
        %v277 = vld [vmem:[%s1 + $0x54] sm:$0xf]
        %v278 = vld [vmem:[%s1 + $0x58] sm:$0xf]
        %v279 = vld [vmem:[%s1 + $0x5c] sm:$0xf]
        %v280 = vld [vmem:[%s1 + $0x60] sm:$0xf]
        %v281 = vld [vmem:[%s1 + $0x64] sm:$0xf]
        %v282 = vld [vmem:[%s1 + $0x68] sm:$0xf]
        %v283 = vld [vmem:[%s1 + $0x6c] sm:$0xf]
        %v284 = vld [vmem:[%s1 + $0x70] sm:$0xf]
        %v285 = vld [vmem:[%s1 + $0x74] sm:$0xf]
        %v286 = vld [vmem:[%s1 + $0x78] sm:$0xf]
        %v287 = vld [vmem:[%s1 + $0x7c] sm:$0xf]
        %v304 = vunpack.c.l.b16 %v240
        %v305 = vunpack.c.h.b16 %v240
        %v306 = vunpack.c.l.b16 %v241
        %v307 = vunpack.c.h.b16 %v241
        %v308 = vunpack.c.l.b16 %v242
        %v309 = vunpack.c.h.b16 %v242
        %v310 = vunpack.c.l.b16 %v243
        %v311 = vunpack.c.h.b16 %v243
        %v312 = vunpack.c.l.b16 %v244
        %v313 = vunpack.c.h.b16 %v244
        %v314 = vunpack.c.l.b16 %v245
        %v315 = vunpack.c.h.b16 %v245
        %v316 = vunpack.c.l.b16 %v246
        %v317 = vunpack.c.h.b16 %v246
        %v318 = vunpack.c.l.b16 %v247
        %v319 = vunpack.c.h.b16 %v247
        %v320 = vunpack.c.l.b16 %v248
        %v321 = vunpack.c.h.b16 %v248
        %v322 = vunpack.c.l.b16 %v249
        %v323 = vunpack.c.h.b16 %v249
        %v324 = vunpack.c.l.b16 %v250
        %v325 = vunpack.c.h.b16 %v250
        %v326 = vunpack.c.l.b16 %v251
        %v327 = vunpack.c.h.b16 %v251
        %v328 = vunpack.c.l.b16 %v252
        %v329 = vunpack.c.h.b16 %v252
        %v330 = vunpack.c.l.b16 %v253
        %v331 = vunpack.c.h.b16 %v253
        %v332 = vunpack.c.l.b16 %v254
        %v333 = vunpack.c.h.b16 %v254
        %v334 = vunpack.c.l.b16 %v255
        %v335 = vunpack.c.h.b16 %v255
        %v336 = vpack.c.b16 %v306, %v304
        %v337 = vpack.c.b16 %v307, %v305
        %v338 = vpack.c.b16 %v310, %v308
        %v339 = vpack.c.b16 %v311, %v309
        %v340 = vpack.c.b16 %v314, %v312
        %v341 = vpack.c.b16 %v315, %v313
        %v342 = vpack.c.b16 %v318, %v316
        %v343 = vpack.c.b16 %v319, %v317
        %v344 = vpack.c.b16 %v322, %v320
        %v345 = vpack.c.b16 %v323, %v321
        %v346 = vpack.c.b16 %v326, %v324
        %v347 = vpack.c.b16 %v327, %v325
        %v348 = vpack.c.b16 %v330, %v328
        %v349 = vpack.c.b16 %v331, %v329
        %v350 = vpack.c.b16 %v334, %v332
        %v351 = vpack.c.b16 %v335, %v333
        %v400 = vunpack.c.l.b16 %v256
        %v401 = vunpack.c.l.b16 %v257
        %v402 = vunpack.c.l.b16 %v258
        %v403 = vunpack.c.l.b16 %v259
        %v404 = vunpack.c.l.b16 %v260
        %v405 = vunpack.c.l.b16 %v261
        %v406 = vunpack.c.l.b16 %v262
        %v407 = vunpack.c.l.b16 %v263
        %v408 = vunpack.c.l.b16 %v264
        %v409 = vunpack.c.l.b16 %v265
        %v410 = vunpack.c.l.b16 %v266
        %v411 = vunpack.c.l.b16 %v267
        %v412 = vunpack.c.l.b16 %v268
        %v413 = vunpack.c.l.b16 %v269
        %v414 = vunpack.c.l.b16 %v270
        %v415 = vunpack.c.l.b16 %v271
        %v416 = vunpack.c.l.b16 %v272
        %v417 = vunpack.c.l.b16 %v273
        %v418 = vunpack.c.l.b16 %v274
        %v419 = vunpack.c.l.b16 %v275
        %v420 = vunpack.c.l.b16 %v276
        %v421 = vunpack.c.l.b16 %v277
        %v422 = vunpack.c.l.b16 %v278
        %v423 = vunpack.c.l.b16 %v279
        %v424 = vunpack.c.l.b16 %v280
        %v425 = vunpack.c.l.b16 %v281
        %v426 = vunpack.c.l.b16 %v282
        %v427 = vunpack.c.l.b16 %v283
        %v428 = vunpack.c.l.b16 %v284
        %v429 = vunpack.c.l.b16 %v285
        %v430 = vunpack.c.l.b16 %v286
        %v431 = vunpack.c.l.b16 %v287
        %v432 = vpack.c.b16 %v401, %v400
        %v433 = vpack.c.b16 %v403, %v402
        %v434 = vpack.c.b16 %v405, %v404
        %v435 = vpack.c.b16 %v407, %v406
        %v436 = vpack.c.b16 %v409, %v408
        %v437 = vpack.c.b16 %v411, %v410
        %v438 = vpack.c.b16 %v413, %v412
        %v439 = vpack.c.b16 %v415, %v414
        %v440 = vpack.c.b16 %v417, %v416
        %v441 = vpack.c.b16 %v419, %v418
        %v442 = vpack.c.b16 %v421, %v420
        %v443 = vpack.c.b16 %v423, %v422
        %v444 = vpack.c.b16 %v425, %v424
        %v445 = vpack.c.b16 %v427, %v426
        %v446 = vpack.c.b16 %v429, %v428
        %v447 = vpack.c.b16 %v431, %v430
        %464 = vmatprep.subr.bf16.mxu0 0
        %465 = vmatpush1.bf16.msra.mxu0 %v432
        %466 = vmatprep.subr.bf16.mxu0 0
        %467 = vmatpush1.bf16.msra.mxu0 %v433
        %468 = vmatprep.subr.bf16.mxu0 0
        %469 = vmatpush1.bf16.msra.mxu0 %v434
        %470 = vmatprep.subr.bf16.mxu0 0
        %471 = vmatpush1.bf16.msra.mxu0 %v435
        %472 = vmatprep.subr.bf16.mxu0 0
        %473 = vmatpush1.bf16.msra.mxu0 %v436
        %474 = vmatprep.subr.bf16.mxu0 0
        %475 = vmatpush1.bf16.msra.mxu0 %v437
        %476 = vmatprep.subr.bf16.mxu0 0
        %477 = vmatpush1.bf16.msra.mxu0 %v438
        %478 = vmatprep.subr.bf16.mxu0 0
        %479 = vmatpush1.bf16.msra.mxu0 %v439
        %480 = vmatprep.subr.bf16.mxu0 0
        %481 = vmatpush1.bf16.msra.mxu0 %v440
        %482 = vmatprep.subr.bf16.mxu0 0
        %483 = vmatpush1.bf16.msra.mxu0 %v441
        %484 = vmatprep.subr.bf16.mxu0 0
        %485 = vmatpush1.bf16.msra.mxu0 %v442
        %486 = vmatprep.subr.bf16.mxu0 0
        %487 = vmatpush1.bf16.msra.mxu0 %v443
        %488 = vmatprep.subr.bf16.mxu0 0
        %489 = vmatpush1.bf16.msra.mxu0 %v444
        %490 = vmatprep.subr.bf16.mxu0 0
        %491 = vmatpush1.bf16.msra.mxu0 %v445
        %492 = vmatprep.subr.bf16.mxu0 0
        %493 = vmatpush1.bf16.msra.mxu0 %v446
        %494 = vmatprep.subr.bf16.mxu0 0
        %495 = vmatpush1.bf16.msra.mxu0 %v447
        %496 = vmatprep.mubr.bf16.mxu0 %v337
        %497 = vmatmul.mubr.bf16.gmra.mrb[0].mxu0 %v336
        %v498 = vpop.f32.mrb[0].mxu0
        %v499 = vadd.f32 0.0, %v498
        %v500 = vpop.f32.mrb[0].mxu0
        %v501 = vpop.f32.mrb[0].mxu0
        %v502 = vadd.f32 0.0, %v501
        %v503 = vpop.f32.mrb[0].mxu0
        %504 = vmatprep.mubr.bf16.mxu0 %v339
        %505 = vmatmul.mubr.bf16.gmra.mrb[0].mxu0 %v338
        %v506 = vpop.f32.mrb[0].mxu0
        %v507 = vadd.f32 0.0, %v506
        %v508 = vpop.f32.mrb[0].mxu0
        %v509 = vpop.f32.mrb[0].mxu0
        %v510 = vadd.f32 0.0, %v509
        %v511 = vpop.f32.mrb[0].mxu0
        %512 = vmatprep.mubr.bf16.mxu0 %v341
        %513 = vmatmul.mubr.bf16.gmra.mrb[0].mxu0 %v340
        %v514 = vpop.f32.mrb[0].mxu0
        %v515 = vadd.f32 0.0, %v514
        %v516 = vpop.f32.mrb[0].mxu0
        %v517 = vpop.f32.mrb[0].mxu0
        %v518 = vadd.f32 0.0, %v517
        %v519 = vpop.f32.mrb[0].mxu0
        %520 = vmatprep.mubr.bf16.mxu0 %v343
        %521 = vmatmul.mubr.bf16.gmra.mrb[0].mxu0 %v342
        %v522 = vpop.f32.mrb[0].mxu0
        %v523 = vadd.f32 0.0, %v522
        %v524 = vpop.f32.mrb[0].mxu0
        %v525 = vpop.f32.mrb[0].mxu0
        %v526 = vadd.f32 0.0, %v525
        %v527 = vpop.f32.mrb[0].mxu0
        %528 = vmatprep.mubr.bf16.mxu0 %v345
        %529 = vmatmul.mubr.bf16.gmra.mrb[0].mxu0 %v344
        %v530 = vpop.f32.mrb[0].mxu0
        %v531 = vadd.f32 0.0, %v530
        %v532 = vpop.f32.mrb[0].mxu0
        %v533 = vpop.f32.mrb[0].mxu0
        %v534 = vadd.f32 0.0, %v533
        %v535 = vpop.f32.mrb[0].mxu0
        %536 = vmatprep.mubr.bf16.mxu0 %v347
        %537 = vmatmul.mubr.bf16.gmra.mrb[0].mxu0 %v346
        %v538 = vpop.f32.mrb[0].mxu0
        %v539 = vadd.f32 0.0, %v538
        %v540 = vpop.f32.mrb[0].mxu0
        %v541 = vpop.f32.mrb[0].mxu0
        %v542 = vadd.f32 0.0, %v541
        %v543 = vpop.f32.mrb[0].mxu0
        %544 = vmatprep.mubr.bf16.mxu0 %v349
        %545 = vmatmul.mubr.bf16.gmra.mrb[0].mxu0 %v348
        %v546 = vpop.f32.mrb[0].mxu0
        %v547 = vadd.f32 0.0, %v546
        %v548 = vpop.f32.mrb[0].mxu0
        %v549 = vpop.f32.mrb[0].mxu0
        %v550 = vadd.f32 0.0, %v549
        %v551 = vpop.f32.mrb[0].mxu0
        %552 = vmatprep.mubr.bf16.mxu0 %v351
        %553 = vmatmul.mubr.bf16.gmra.mrb[0].mxu0 %v350
        %v554 = vpop.f32.mrb[0].mxu0
        %v555 = vadd.f32 0.0, %v554
        %v556 = vpop.f32.mrb[0].mxu0
        %v557 = vpop.f32.mrb[0].mxu0
        %v558 = vadd.f32 0.0, %v557
        %v559 = vpop.f32.mrb[0].mxu0
        %560 = vdwg.mxu0
        %s561 = smul.u32 %s20, 128
        %s562 = scalar_lea.vmem [#allocation2], %s561
        %563 = vst [vmem:[%s562] sm:$0xff] %v499
        %564 = vst [vmem:[%s562 + $0x8] sm:$0xff] %v502
        %565 = vst [vmem:[%s562 + $0x10] sm:$0xff] %v507
        %566 = vst [vmem:[%s562 + $0x18] sm:$0xff] %v510
        %567 = vst [vmem:[%s562 + $0x20] sm:$0xff] %v515
        %568 = vst [vmem:[%s562 + $0x28] sm:$0xff] %v518
        %569 = vst [vmem:[%s562 + $0x30] sm:$0xff] %v523
        %570 = vst [vmem:[%s562 + $0x38] sm:$0xff] %v526
        %571 = vst [vmem:[%s562 + $0x40] sm:$0xff] %v531
        %572 = vst [vmem:[%s562 + $0x48] sm:$0xff] %v534
        %573 = vst [vmem:[%s562 + $0x50] sm:$0xff] %v539
        %574 = vst [vmem:[%s562 + $0x58] sm:$0xff] %v542
        %575 = vst [vmem:[%s562 + $0x60] sm:$0xff] %v547
        %576 = vst [vmem:[%s562 + $0x68] sm:$0xff] %v550
        %577 = vst [vmem:[%s562 + $0x70] sm:$0xff] %v555
        %578 = vst [vmem:[%s562 + $0x78] sm:$0xff] %v558
        %p579 = scmp.eq.s32.totalorder %s20, 0
        // Predicated region
        $region41: #{discriminator_forward.7} parent=39 // pred_check
          %p580 = pneg %p579
        $region42: #{discriminator_forward.7} parent=39 // pred_check_branch
          %582 = sbr.rel (%p580) target = $region44
        $region43: #{discriminator_forward.7} parent=39 // pred_region
          %583 = vst [vmem:[#allocation3] sm:$0x1] 0.0
          %584 = vst [vmem:[#allocation4] sm:$0x1] 0.0
        $region44: #{discriminator_forward.7} parent=39 // pred_fallthru
          _
        %v585 = vld [vmem:[#allocation3] sm:$0x1]
        %v586 = vadd.f32 %v499, %v502
        %v587 = vadd.f32 %v586, %v507
        %v588 = vadd.f32 %v587, %v510
        %v589 = vadd.f32 %v588, %v515
        %v590 = vadd.f32 %v589, %v518
        %v591 = vadd.f32 %v590, %v523
        %v592 = vadd.f32 %v591, %v526
        %v593 = vadd.f32 %v592, %v531
        %v594 = vadd.f32 %v593, %v534
        %v595 = vadd.f32 %v594, %v539
        %v596 = vadd.f32 %v595, %v542
        %v597 = vadd.f32 %v596, %v547
        %v598 = vadd.f32 %v597, %v550
        %v599 = vadd.f32 %v598, %v555
        %v600 = vadd.f32 %v599, %v558
        %v601 = vrot.slane %v600, 4
        %v602 = vadd.f32 %v600, %v601
        %v603 = vrot.slane %v602, 2
        %v604 = vadd.f32 %v602, %v603
        %v605 = vrot.slane %v604, 1
        %v606 = vadd.f32 %v604, %v605
        %v607 = vadd.f32 %v585, %v606
        %608 = vst [vmem:[#allocation3] sm:$0x1] %v607
        %v609 = vld [vmem:[#allocation4] sm:$0x1]
        %v610 = vmul.f32 %v499, %v499
        %v611 = vmul.f32 %v502, %v502
        %v612 = vmul.f32 %v507, %v507
        %v613 = vmul.f32 %v510, %v510
        %v614 = vmul.f32 %v515, %v515
        %v615 = vmul.f32 %v518, %v518
        %v616 = vmul.f32 %v523, %v523
        %v617 = vmul.f32 %v526, %v526
        %v618 = vmul.f32 %v531, %v531
        %v619 = vmul.f32 %v534, %v534
        %v620 = vmul.f32 %v539, %v539
        %v621 = vmul.f32 %v542, %v542
        %v622 = vmul.f32 %v547, %v547
        %v623 = vmul.f32 %v550, %v550
        %v624 = vmul.f32 %v555, %v555
        %v625 = vmul.f32 %v558, %v558
        %v626 = vadd.f32 %v610, %v611
        %v627 = vadd.f32 %v626, %v612
        %v628 = vadd.f32 %v627, %v613
        %v629 = vadd.f32 %v628, %v614
        %v630 = vadd.f32 %v629, %v615
        %v631 = vadd.f32 %v630, %v616
        %v632 = vadd.f32 %v631, %v617
        %v633 = vadd.f32 %v632, %v618
        %v634 = vadd.f32 %v633, %v619
        %v635 = vadd.f32 %v634, %v620
        %v636 = vadd.f32 %v635, %v621
        %v637 = vadd.f32 %v636, %v622
        %v638 = vadd.f32 %v637, %v623
        %v639 = vadd.f32 %v638, %v624
        %v640 = vadd.f32 %v639, %v625
        %v641 = vrot.slane %v640, 4
        %v642 = vadd.f32 %v640, %v641
        %v643 = vrot.slane %v642, 2
        %v644 = vadd.f32 %v642, %v643
        %v645 = vrot.slane %v644, 1
        %v646 = vadd.f32 %v644, %v645
        %v647 = vadd.f32 %v609, %v646
        %648 = vst [vmem:[#allocation4] sm:$0x1] %v647
        // Predicated region
        $region45: #{discriminator_forward.7} parent=39 // pred_check
          %p649 = pneg %p579
        $region46: #{discriminator_forward.7} parent=39 // pred_check_branch
          %651 = sbr.rel (%p649) target = $region48
        $region47: #{discriminator_forward.7} parent=39 // pred_region
          %v652 = vld [vmem:[#allocation3] sm:$0x1]
          %v653 = vmul.f32 %v652, 0.0078125
          %v654 = vld [vmem:[#allocation4] sm:$0x1]
          %v655 = vmul.f32 %v654, 0.0078125
          %v656 = vmul.f32 %v653, %v653
          %v657 = vsub.f32 %v655, %v656
          %v658 = vmax.f32 %v657, 0.0
          %v659 = vld [vmem:[%s2] sm:$0x1]
          %v660 = vadd.f32 %v658, 1e-05
          %v661 = vrsqrt.pop %v660
          %v662 = vmul.f32 %v659, %v661
          %663 = vst [vmem:[#allocation5] sm:$0x1] %v662
          %v664 = vld [vmem:[%s3] sm:$0x1]
          %v665 = vmul.f32 %v653, %v662
          %v666 = vsub.f32 %v664, %v665
          %667 = vst [vmem:[#allocation6] sm:$0x1] %v666
        $region48: #{discriminator_forward.7} parent=39 // pred_fallthru
          _
      $region40: #{discriminator_forward.7} parent=35 // pred_fallthru
        _
      %p668 = scmp.eq.s32.totalorder %s19, 1
      // Predicated region
      $region49: #{discriminator_forward.7} parent=35 // pred_check
        %p669 = pneg %p668
      $region50: #{discriminator_forward.7} parent=35 // pred_check_branch
        %671 = sbr.rel (%p669) target = $region52
      $region51: #{discriminator_forward.7} parent=35 // pred_region
        %s672 = smul.u32 %s20, 128
        %s673 = scalar_lea.vmem [#allocation2], %s672
        %v674 = vld [vmem:[%s673] sm:$0xff]
        %v675 = vld [vmem:[%s673 + $0x8] sm:$0xff]
        %v676 = vld [vmem:[%s673 + $0x10] sm:$0xff]
        %v677 = vld [vmem:[%s673 + $0x18] sm:$0xff]
        %v678 = vld [vmem:[%s673 + $0x20] sm:$0xff]
        %v679 = vld [vmem:[%s673 + $0x28] sm:$0xff]
        %v680 = vld [vmem:[%s673 + $0x30] sm:$0xff]
        %v681 = vld [vmem:[%s673 + $0x38] sm:$0xff]
        %v682 = vld [vmem:[%s673 + $0x40] sm:$0xff]
        %v683 = vld [vmem:[%s673 + $0x48] sm:$0xff]
        %v684 = vld [vmem:[%s673 + $0x50] sm:$0xff]
        %v685 = vld [vmem:[%s673 + $0x58] sm:$0xff]
        %v686 = vld [vmem:[%s673 + $0x60] sm:$0xff]
        %v687 = vld [vmem:[%s673 + $0x68] sm:$0xff]
        %v688 = vld [vmem:[%s673 + $0x70] sm:$0xff]
        %v689 = vld [vmem:[%s673 + $0x78] sm:$0xff]
        %v690 = vld [vmem:[#allocation5] sm:$0x1]
        %v692 = vlaneseq
        %v693 = vshrl.u32 %v692, 7
        %v694 = vsub.s32 0, %v693
        %v695 = vrot.slane %v690, %v694
        %v697 = vmul.f32 %v674, %v695
        %v698 = vmul.f32 %v675, %v695
        %v699 = vmul.f32 %v676, %v695
        %v700 = vmul.f32 %v677, %v695
        %v701 = vmul.f32 %v678, %v695
        %v702 = vmul.f32 %v679, %v695
        %v703 = vmul.f32 %v680, %v695
        %v704 = vmul.f32 %v681, %v695
        %v705 = vmul.f32 %v682, %v695
        %v706 = vmul.f32 %v683, %v695
        %v707 = vmul.f32 %v684, %v695
        %v708 = vmul.f32 %v685, %v695
        %v709 = vmul.f32 %v686, %v695
        %v710 = vmul.f32 %v687, %v695
        %v711 = vmul.f32 %v688, %v695
        %v712 = vmul.f32 %v689, %v695
        %v713 = vld [vmem:[#allocation6] sm:$0x1]
        %v715 = vlaneseq
        %v716 = vshrl.u32 %v715, 7
        %v717 = vsub.s32 0, %v716
        %v718 = vrot.slane %v713, %v717
        %v720 = vadd.f32 %v697, %v718
        %v721 = vadd.f32 %v698, %v718
        %v722 = vadd.f32 %v699, %v718
        %v723 = vadd.f32 %v700, %v718
        %v724 = vadd.f32 %v701, %v718
        %v725 = vadd.f32 %v702, %v718
        %v726 = vadd.f32 %v703, %v718
        %v727 = vadd.f32 %v704, %v718
        %v728 = vadd.f32 %v705, %v718
        %v729 = vadd.f32 %v706, %v718
        %v730 = vadd.f32 %v707, %v718
        %v731 = vadd.f32 %v708, %v718
        %v732 = vadd.f32 %v709, %v718
        %v733 = vadd.f32 %v710, %v718
        %v734 = vadd.f32 %v711, %v718
        %v735 = vadd.f32 %v712, %v718
        %vm736 = vcmp.gt.f32.partialorder %v720, 0.0
        %vm737 = vcmp.gt.f32.partialorder %v721, 0.0
        %vm738 = vcmp.gt.f32.partialorder %v722, 0.0
        %vm739 = vcmp.gt.f32.partialorder %v723, 0.0
        %vm740 = vcmp.gt.f32.partialorder %v724, 0.0
        %vm741 = vcmp.gt.f32.partialorder %v725, 0.0
        %vm742 = vcmp.gt.f32.partialorder %v726, 0.0
        %vm743 = vcmp.gt.f32.partialorder %v727, 0.0
        %vm744 = vcmp.gt.f32.partialorder %v728, 0.0
        %vm745 = vcmp.gt.f32.partialorder %v729, 0.0
        %vm746 = vcmp.gt.f32.partialorder %v730, 0.0
        %vm747 = vcmp.gt.f32.partialorder %v731, 0.0
        %vm748 = vcmp.gt.f32.partialorder %v732, 0.0
        %vm749 = vcmp.gt.f32.partialorder %v733, 0.0
        %vm750 = vcmp.gt.f32.partialorder %v734, 0.0
        %vm751 = vcmp.gt.f32.partialorder %v735, 0.0
        %v752 = vmul.f32 %v720, 0.2
        %v753 = vmul.f32 %v721, 0.2
        %v754 = vmul.f32 %v722, 0.2
        %v755 = vmul.f32 %v723, 0.2
        %v756 = vmul.f32 %v724, 0.2
        %v757 = vmul.f32 %v725, 0.2
        %v758 = vmul.f32 %v726, 0.2
        %v759 = vmul.f32 %v727, 0.2
        %v760 = vmul.f32 %v728, 0.2
        %v761 = vmul.f32 %v729, 0.2
        %v762 = vmul.f32 %v730, 0.2
        %v763 = vmul.f32 %v731, 0.2
        %v764 = vmul.f32 %v732, 0.2
        %v765 = vmul.f32 %v733, 0.2
        %v766 = vmul.f32 %v734, 0.2
        %v767 = vmul.f32 %v735, 0.2
        %v768 = vsel %vm736, %v720, %v752
        %v769 = vsel %vm737, %v721, %v753
        %v770 = vsel %vm738, %v722, %v754
        %v771 = vsel %vm739, %v723, %v755
        %v772 = vsel %vm740, %v724, %v756
        %v773 = vsel %vm741, %v725, %v757
        %v774 = vsel %vm742, %v726, %v758
        %v775 = vsel %vm743, %v727, %v759
        %v776 = vsel %vm744, %v728, %v760
        %v777 = vsel %vm745, %v729, %v761
        %v778 = vsel %vm746, %v730, %v762
        %v779 = vsel %vm747, %v731, %v763
        %v780 = vsel %vm748, %v732, %v764
        %v781 = vsel %vm749, %v733, %v765
        %v782 = vsel %vm750, %v734, %v766
        %v783 = vsel %vm751, %v735, %v767
        %v784 = vpack.c.bf16 %v769, %v768
        %v785 = vpack.c.bf16 %v771, %v770
        %v786 = vpack.c.bf16 %v773, %v772
        %v787 = vpack.c.bf16 %v775, %v774
        %v788 = vpack.c.bf16 %v777, %v776
        %v789 = vpack.c.bf16 %v779, %v778
        %v790 = vpack.c.bf16 %v781, %v780
        %v791 = vpack.c.bf16 %v783, %v782
        %v800 = vunpack.c.l.b16 %v784
        %v801 = vunpack.c.h.b16 %v784
        %v802 = vunpack.c.l.b16 %v785
        %v803 = vunpack.c.h.b16 %v785
        %v804 = vunpack.c.l.b16 %v786
        %v805 = vunpack.c.h.b16 %v786
        %v806 = vunpack.c.l.b16 %v787
        %v807 = vunpack.c.h.b16 %v787
        %v808 = vunpack.c.l.b16 %v788
        %v809 = vunpack.c.h.b16 %v788
        %v810 = vunpack.c.l.b16 %v789
        %v811 = vunpack.c.h.b16 %v789
        %v812 = vunpack.c.l.b16 %v790
        %v813 = vunpack.c.h.b16 %v790
        %v814 = vunpack.c.l.b16 %v791
        %v815 = vunpack.c.h.b16 %v791
        %v816 = vpack.c.b16 %v800, %v800
        %v817 = vpack.c.b16 %v801, %v801
        %v818 = vpack.c.b16 %v802, %v802
        %v819 = vpack.c.b16 %v803, %v803
        %v820 = vpack.c.b16 %v804, %v804
        %v821 = vpack.c.b16 %v805, %v805
        %v822 = vpack.c.b16 %v806, %v806
        %v823 = vpack.c.b16 %v807, %v807
        %v824 = vpack.c.b16 %v808, %v808
        %v825 = vpack.c.b16 %v809, %v809
        %v826 = vpack.c.b16 %v810, %v810
        %v827 = vpack.c.b16 %v811, %v811
        %v828 = vpack.c.b16 %v812, %v812
        %v829 = vpack.c.b16 %v813, %v813
        %v830 = vpack.c.b16 %v814, %v814
        %v831 = vpack.c.b16 %v815, %v815
        %848 = vst [vmem:[%s232] sm:$0xf] %v816
        %849 = vst [vmem:[%s232 + $0x4] sm:$0xf] %v817
        %850 = vst [vmem:[%s232 + $0x8] sm:$0xf] %v818
        %851 = vst [vmem:[%s232 + $0xc] sm:$0xf] %v819
        %852 = vst [vmem:[%s232 + $0x10] sm:$0xf] %v820
        %853 = vst [vmem:[%s232 + $0x14] sm:$0xf] %v821
        %854 = vst [vmem:[%s232 + $0x18] sm:$0xf] %v822
        %855 = vst [vmem:[%s232 + $0x1c] sm:$0xf] %v823
        %856 = vst [vmem:[%s232 + $0x20] sm:$0xf] %v824
        %857 = vst [vmem:[%s232 + $0x24] sm:$0xf] %v825
        %858 = vst [vmem:[%s232 + $0x28] sm:$0xf] %v826
        %859 = vst [vmem:[%s232 + $0x2c] sm:$0xf] %v827
        %860 = vst [vmem:[%s232 + $0x30] sm:$0xf] %v828
        %861 = vst [vmem:[%s232 + $0x34] sm:$0xf] %v829
        %862 = vst [vmem:[%s232 + $0x38] sm:$0xf] %v830
        %863 = vst [vmem:[%s232 + $0x3c] sm:$0xf] %v831
      $region52: #{discriminator_forward.7} parent=35 // pred_fallthru
        _
      %s864 = smul.u32 %s19, %s20
      %s865 = smul.u32 16, %s864
      %p866 = scmp.lt.s32.totalorder %s865, 15
      %s867 = scalar_select %p866, %s865, 15
      %s868 = smul.addr %s867, 4
      %s869 = scalar_lea.vmem %s4, %s868
      // Predicated region
      $region53: #{discriminator_forward.7} parent=35 // pred_check
        %p870 = pneg %p140
      $region54: #{discriminator_forward.7} parent=35 // pred_check_branch
        %872 = sbr.rel (%p870) target = $region56
      $region55: #{discriminator_forward.7} parent=35 // pred_region
        %s873 = smul.u32 %s19, %s20
        %s874 = smul.u32 16, %s873
      $region56: #{discriminator_forward.7} parent=35 // pred_fallthru
        _
    $region36: #{discriminator_forward.7} parent=5 // pred_fallthru
      _
    %p875 = scmp.le.s32.totalorder 2, %s10
    // Predicated region
    $region57: #{discriminator_forward.7} parent=5 // pred_check
      %p876 = pneg %p875
    $region58: #{discriminator_forward.7} parent=5 // pred_check_branch
      %878 = sbr.rel (%p876) target = $region60
    $region59: #{discriminator_forward.7} parent=5 // pred_region
      %s879 = ssub.s32 %s10, 2
      // Predicated region
      $region61: #{discriminator_forward.7} parent=59 // pred_check
        %p880 = pneg %p146
      $region62: #{discriminator_forward.7} parent=59 // pred_check_branch
        %882 = sbr.rel (%p880) target = $region64
      $region63: #{discriminator_forward.7} parent=59 // pred_region
        %s883 = smul.u32 %s21, %s22
        %s884 = smul.u32 16, %s883
        %p885 = scmp.lt.s32.totalorder %s884, 15
        %s886 = scalar_select %p885, %s884, 15
        %s887 = smul.addr %s886, 4
        %s888 = scalar_lea.vmem %s4, %s887
      $region64: #{discriminator_forward.7} parent=59 // pred_fallthru
        _
    $region60: #{discriminator_forward.7} parent=5 // pred_fallthru
      _
  $region6: #{discriminator_forward.7} parent=0 // loop_footer
    %s14 = sadd.s32 1, %s10
  $region7: #{discriminator_forward.7} parent=0 // loop_footer_branch
    %9 = sbr.rel target = $region3
  $region8: #{discriminator_forward.7} parent=0 // loop_exit
    _

// kernel: discriminator_forward.9
$region0: #{discriminator_forward.9}
  #allocation0 [shape = 'u32[]', space=smem, size = 0x4, offset = 0x4, fixed_abs, tag = 'smem constant byte address 0x4 - core index']
  #allocation1 [shape = 'u32[144,128]{1,0:T(1,128)}', space=vmem, size = 0x12000, scoped, tag = 'internal scratch']
  #allocation2 [shape = 'f32[1,1]{1,0:T(1,128)S(1)}', space=vmem, size = 0x200, scoped, tag = 'scoped memory for discriminator_forward.9']
  %s0 = inlined_call_operand.vmem [shape: bf16[2,1024], index: 0, kind: input, shape index: {}]
  %s1 = inlined_call_operand.vmem [shape: f32[1,1024], index: 1, kind: input, shape index: {}]
  %s2 = inlined_call_operand.<no memory space> [shape: f32[1,1], index: 2, kind: input, shape index: {}]
  %s3 = inlined_call_operand.vmem [shape: f32[2,1], index: 3, kind: output, shape index: {}]
  %s4 = sld [smem:[#allocation0]]
  $region22: #{discriminator_forward.9} parent=0
    _
  %s6 = ssub.s32 1, %s4
  %s7 = scalar_select 0, %s6, %s4
  %v8 = vstv %s2
  %9 = vst [vmem:[#allocation2] sm:$0x1] %v8
  // Predicated region
  $region2: #{discriminator_forward.9} parent=0 // pred_check
    _
  $region3: #{discriminator_forward.9} parent=0 // pred_check_branch
    %11 = sbr.rel (0) target = $region5
  $region4: #{discriminator_forward.9} parent=0 // pred_region
    _
  $region5: #{discriminator_forward.9} parent=0 // pred_fallthru
    _
  // Predicated region
  $region6: #{discriminator_forward.9} parent=0 // pred_check
    _
  $region7: #{discriminator_forward.9} parent=0 // pred_check_branch
    %13 = sbr.rel (0) target = $region9
  $region8: #{discriminator_forward.9} parent=0 // pred_region
    _
  $region9: #{discriminator_forward.9} parent=0 // pred_fallthru
    _
  // Predicated region
  $region10: #{discriminator_forward.9} parent=0 // pred_check
    _
  $region11: #{discriminator_forward.9} parent=0 // pred_check_branch
    %15 = sbr.rel (0) target = $region13
  $region12: #{discriminator_forward.9} parent=0 // pred_region
    _
  $region13: #{discriminator_forward.9} parent=0 // pred_fallthru
    _
  %v16 = vld [vmem:[%s0] sm:$0xff]
  %v17 = vunpack.c.l.bf16 %v16
  %v18 = vunpack.c.h.bf16 %v16
  %v19 = vld [vmem:[%s1] sm:$0xff]
  %v21 = vlaneseq
  %v22 = vshrl.u32 %v21, 7
  %v23 = vsub.s32 0, %v22
  %v24 = vrot.slane %v19, %v23
  %v25 = vlaneseq
  %v26 = vshrl.u32 %v25, 7
  %v27 = vsub.s32 1, %v26
  %v28 = vrot.slane %v19, %v27
  %v29 = vlaneseq
  %v30 = vshrl.u32 %v29, 7
  %v31 = vsub.s32 2, %v30
  %v32 = vrot.slane %v19, %v31
  %v33 = vlaneseq
  %v34 = vshrl.u32 %v33, 7
  %v35 = vsub.s32 3, %v34
  %v36 = vrot.slane %v19, %v35
  %v37 = vlaneseq
  %v38 = vshrl.u32 %v37, 7
  %v39 = vsub.s32 4, %v38
  %v40 = vrot.slane %v19, %v39
  %v41 = vlaneseq
  %v42 = vshrl.u32 %v41, 7
  %v43 = vsub.s32 5, %v42
  %v44 = vrot.slane %v19, %v43
  %v45 = vlaneseq
  %v46 = vshrl.u32 %v45, 7
  %v47 = vsub.s32 6, %v46
  %v48 = vrot.slane %v19, %v47
  %v49 = vlaneseq
  %v50 = vshrl.u32 %v49, 7
  %v51 = vsub.s32 7, %v50
  %v52 = vrot.slane %v19, %v51
  %v53 = vcombine.low %v24, %v28
  %v54 = vcombine.low %v32, %v36
  %v56 = vunpack.c.l.s4 1983009808
  %v57 = vunpack.c.0.s8 %v56
  %v58 = vlaneseq
  %v59 = vshrl.u32 %v58, 7
  %v60 = vsub.s32 %v57, %v59
  %v61 = vrot.slane %v53, %v60
  %v63 = vunpack.c.l.s4 1983009808
  %v64 = vunpack.c.0.s8 %v63
  %v65 = vlaneseq
  %v66 = vshrl.u32 %v65, 7
  %v67 = vsub.s32 %v64, %v66
  %v68 = vrot.slane %v54, %v67
  %v69 = vcombine.low %v61, %v68
  %v70 = vcombine.low %v40, %v44
  %v71 = vcombine.low %v48, %v52
  %v73 = vunpack.c.l.s4 1983009808
  %v74 = vunpack.c.0.s8 %v73
  %v75 = vlaneseq
  %v76 = vshrl.u32 %v75, 7
  %v77 = vsub.s32 %v74, %v76
  %v78 = vrot.slane %v70, %v77
  %v80 = vunpack.c.l.s4 1983009808
  %v81 = vunpack.c.0.s8 %v80
  %v82 = vlaneseq
  %v83 = vshrl.u32 %v82, 7
  %v84 = vsub.s32 %v81, %v83
  %v85 = vrot.slane %v71, %v84
  %v86 = vcombine.low %v78, %v85
  %v89 = vmul.f32 %v17, %v69
  %v90 = vmul.f32 %v18, %v86
  %v93 = vcombine.high %v89, %v89
  %v95 = vunpack.c.l.s4 1983009808
  %v96 = vunpack.c.0.s8 %v95
  %v97 = vlaneseq
  %v98 = vshrl.u32 %v97, 7
  %v99 = vsub.s32 %v96, %v98
  %v100 = vrot.slane %v89, %v99
  %v102 = vunpack.c.l.s4 1983009808
  %v103 = vunpack.c.0.s8 %v102
  %v104 = vlaneseq
  %v105 = vshrl.u32 %v104, 7
  %v106 = vsub.s32 %v103, %v105
  %v107 = vrot.slane %v93, %v106
  %v108 = vcombine.high %v100, %v100
  %v109 = vcombine.high %v107, %v107
  %v110 = vcombine.high %v90, %v90
  %v112 = vunpack.c.l.s4 1983009808
  %v113 = vunpack.c.0.s8 %v112
  %v114 = vlaneseq
  %v115 = vshrl.u32 %v114, 7
  %v116 = vsub.s32 %v113, %v115
  %v117 = vrot.slane %v90, %v116
  %v119 = vunpack.c.l.s4 1983009808
  %v120 = vunpack.c.0.s8 %v119
  %v121 = vlaneseq
  %v122 = vshrl.u32 %v121, 7
  %v123 = vsub.s32 %v120, %v122
  %v124 = vrot.slane %v110, %v123
  %v125 = vcombine.high %v117, %v117
  %v126 = vcombine.high %v124, %v124
  %vm135 = vcmask 1041408
  %v136 = vsel %vm135, %v100, 0.0
  %v137 = vsel %vm135, %v108, 0.0
  %v138 = vadd.f32 %v136, %v137
  %v139 = vsel %vm135, %v107, 0.0
  %v140 = vadd.f32 %v138, %v139
  %v141 = vsel %vm135, %v109, 0.0
  %v142 = vadd.f32 %v140, %v141
  %v143 = vsel %vm135, %v117, 0.0
  %v144 = vadd.f32 %v142, %v143
  %v145 = vsel %vm135, %v125, 0.0
  %v146 = vadd.f32 %v144, %v145
  %v147 = vsel %vm135, %v124, 0.0
  %v148 = vadd.f32 %v146, %v147
  %v149 = vsel %vm135, %v126, 0.0
  %v150 = vadd.f32 %v148, %v149
  %151 = vadd.xlane.f32.xlu0 %v150
  %v152 = vpop.xlane.xlu0 %151
  %v153 = vld [vmem:[#allocation2] sm:$0x1]
  %v155 = vlaneseq
  %v156 = vshrl.u32 %v155, 7
  %v157 = vsub.s32 0, %v156
  %v158 = vrot.slane %v153, %v157
  %v160 = vadd.f32 %v152, %v158
  %vm161 = vcmask 1024
  %162 = vst.msk [vmem:[%s3] sm:$0x3] %vm161, %v160
  // Predicated region
  $region14: #{discriminator_forward.9} parent=0 // pred_check
    _
  $region15: #{discriminator_forward.9} parent=0 // pred_check_branch
    %164 = sbr.rel (0) target = $region17
  $region16: #{discriminator_forward.9} parent=0 // pred_region
    _
  $region17: #{discriminator_forward.9} parent=0 // pred_fallthru
    _
  // Predicated region
  $region18: #{discriminator_forward.9} parent=0 // pred_check
    _
  $region19: #{discriminator_forward.9} parent=0 // pred_check_branch
    %166 = sbr.rel (0) target = $region21
  $region20: #{discriminator_forward.9} parent=0 // pred_region
    _
  $region21: #{discriminator_forward.9} parent=0 // pred_fallthru
    _

// kernel: discriminator_forward.8
$region0: #{discriminator_forward.8}
  #allocation0 [shape = 'u32[]', space=smem, size = 0x4, offset = 0x4, fixed_abs, tag = 'smem constant byte address 0x4 - core index']
  #allocation1 [shape = 'u32[144,128]{1,0:T(1,128)}', space=vmem, size = 0x12000, scoped, tag = 'internal scratch']
  #allocation2 [shape = 'f32[1,32,128]{2,1,0:T(8,128)}', space=vmem, size = 0x4000, scoped, tag = 'scratch operand']
  #allocation3 [shape = 'f32[1,128]{1,0:T(1,128)}', space=vmem, size = 0x200, scoped, tag = 'scratch operand']
  #allocation4 [shape = 'f32[1,128]{1,0:T(1,128)}', space=vmem, size = 0x200, scoped, tag = 'scratch operand']
  #allocation5 [shape = 'f32[1,128]{1,0:T(1,128)}', space=vmem, size = 0x200, scoped, tag = 'scratch operand']
  #allocation6 [shape = 'f32[1,128]{1,0:T(1,128)}', space=vmem, size = 0x200, scoped, tag = 'scratch operand']
  %s0 = inlined_call_operand.vmem [shape: bf16[32,512], index: 0, kind: input, shape index: {}]
  %s1 = inlined_call_operand.vmem [shape: bf16[512,128], index: 1, kind: input, shape index: {}]
  %s2 = inlined_call_operand.vmem [shape: f32[1,128], index: 2, kind: input, shape index: {}]
  %s3 = inlined_call_operand.vmem [shape: f32[1,128], index: 3, kind: input, shape index: {}]
  %s4 = inlined_call_operand.vmem [shape: bf16[32,128], index: 4, kind: output, shape index: {}]
  %s5 = sld [smem:[#allocation0]]
  $region65: #{discriminator_forward.8} parent=0
    _
  %s7 = ssub.s32 1, %s5
  %s8 = scalar_select 0, %s7, %s5
  loop: start=0, step=1, limit=4
  $region2: #{discriminator_forward.8} parent=0 // loop_pre_header
    _
  $region3: #{discriminator_forward.8} parent=0 // loop_header
    %s10 = sphi 0, %s14
    %p11 = scmp.ge.s32.totalorder %s10, 4
    %s17 = sphi 0, %s29
    %s18 = sphi 0, %s25
    %s19 = sphi 0, %s17
    %s20 = sphi 0, %s18
    %s21 = sphi 0, %s19
    %s22 = sphi 0, %s20
    %s36 = sphi 0, %s38
    %s39 = sphi 0, %s36
    %s40 = sphi 0, %s39
    %s56 = sphi 0, %s40
    %s60 = sphi 0, %s60
    %s62 = sphi 0, %s60
    %s63 = sphi 0, %s62
    %s77 = sphi 0, %s63
    %s81 = sphi 0, %s81
    %s83 = sphi 0, %s81
    %s84 = sphi 0, %s83
    %s98 = sphi 0, %s84
    %s102 = sphi 0, %s102
    %s104 = sphi 0, %s102
    %s105 = sphi 0, %s104
    %s119 = sphi 0, %s105
    %s127 = sphi 0, %s129
    %s130 = sphi 0, %s127
    %s131 = sphi 0, %s130
    %s147 = sphi 0, %s131
  $region4: #{discriminator_forward.8} parent=0 // loop_header_branch
    %13 = sbr.rel (%p11) target = $region8
  $region5: #{discriminator_forward.8} parent=0 // loop_body
    %s15 = ssub.s32 %s10, 1
    %s16 = ssub.s32 %s10, 2
    %s23 = sadd.s32 1, %s18
    %p24 = scmp.ge.s32.totalorder %s23, 1
    %s25 = scalar_select %p24, 0, %s23
    %s26 = sadd.s32 1, %s17
    %s27 = scalar_select %p24, %s26, %s17
    %p28 = scmp.ge.s32.totalorder %s27, 2
    %s29 = scalar_select %p28, 0, %s27
    %s30 = ssub.s32 1, %s17
    %s31 = smul.u32 %s30, %s18
    %s32 = ssub.s32 1, %s29
    %s33 = smul.u32 %s32, %s25
    %s34 = ssub.s32 %s31, %s33
    %p35 = scmp.eq.s32.totalorder %s34, 0
    %s37 = sadd.s32 %s36, 1
    %s38 = scalar_select %p35, %s36, %s37
    %p41 = pneg %p35
    %p42 = scmp.eq.s32.totalorder %s10, 1
    %p43 = por %p41, %p42
    %p44 = scmp.ne.s32.totalorder %s36, %s39
    %p45 = scmp.eq.s32.totalorder %s10, 0
    %p46 = por %p44, %p45
    %p47 = scmp.ne.s32.totalorder %s36, %s39
    %p48 = scmp.eq.s32.totalorder %s15, 1
    %p49 = por %p47, %p48
    %p50 = scmp.ne.s32.totalorder %s39, %s40
    %p51 = scmp.eq.s32.totalorder %s15, 0
    %p52 = por %p50, %p51
    %p53 = scmp.ne.s32.totalorder %s39, %s40
    %p54 = scmp.eq.s32.totalorder %s16, 1
    %p55 = por %p53, %p54
    %p57 = scmp.ne.s32.totalorder %s40, %s56
    %p58 = scmp.eq.s32.totalorder %s16, 0
    %p59 = por %p57, %p58
    %s61 = sadd.s32 %s60, 1
    %p64 = scmp.eq.s32.totalorder %s10, 1
    %p65 = scmp.ne.s32.totalorder %s60, %s62
    %p66 = scmp.eq.s32.totalorder %s10, 0
    %p67 = por %p65, %p66
    %p68 = scmp.ne.s32.totalorder %s60, %s62
    %p69 = scmp.eq.s32.totalorder %s15, 1
    %p70 = por %p68, %p69
    %p71 = scmp.ne.s32.totalorder %s62, %s63
    %p72 = scmp.eq.s32.totalorder %s15, 0
    %p73 = por %p71, %p72
    %p74 = scmp.ne.s32.totalorder %s62, %s63
    %p75 = scmp.eq.s32.totalorder %s16, 1
    %p76 = por %p74, %p75
    %p78 = scmp.ne.s32.totalorder %s63, %s77
    %p79 = scmp.eq.s32.totalorder %s16, 0
    %p80 = por %p78, %p79
    %s82 = sadd.s32 %s81, 1
    %p85 = scmp.eq.s32.totalorder %s10, 1
    %p86 = scmp.ne.s32.totalorder %s81, %s83
    %p87 = scmp.eq.s32.totalorder %s10, 0
    %p88 = por %p86, %p87
    %p89 = scmp.ne.s32.totalorder %s81, %s83
    %p90 = scmp.eq.s32.totalorder %s15, 1
    %p91 = por %p89, %p90
    %p92 = scmp.ne.s32.totalorder %s83, %s84
    %p93 = scmp.eq.s32.totalorder %s15, 0
    %p94 = por %p92, %p93
    %p95 = scmp.ne.s32.totalorder %s83, %s84
    %p96 = scmp.eq.s32.totalorder %s16, 1
    %p97 = por %p95, %p96
    %p99 = scmp.ne.s32.totalorder %s84, %s98
    %p100 = scmp.eq.s32.totalorder %s16, 0
    %p101 = por %p99, %p100
    %s103 = sadd.s32 %s102, 1
    %p106 = scmp.eq.s32.totalorder %s10, 1
    %p107 = scmp.ne.s32.totalorder %s102, %s104
    %p108 = scmp.eq.s32.totalorder %s10, 0
    %p109 = por %p107, %p108
    %p110 = scmp.ne.s32.totalorder %s102, %s104
    %p111 = scmp.eq.s32.totalorder %s15, 1
    %p112 = por %p110, %p111
    %p113 = scmp.ne.s32.totalorder %s104, %s105
    %p114 = scmp.eq.s32.totalorder %s15, 0
    %p115 = por %p113, %p114
    %p116 = scmp.ne.s32.totalorder %s104, %s105
    %p117 = scmp.eq.s32.totalorder %s16, 1
    %p118 = por %p116, %p117
    %p120 = scmp.ne.s32.totalorder %s105, %s119
    %p121 = scmp.eq.s32.totalorder %s16, 0
    %p122 = por %p120, %p121
    %s123 = smul.u32 %s17, %s18
    %s124 = smul.u32 %s29, %s25
    %s125 = ssub.s32 %s123, %s124
    %p126 = scmp.eq.s32.totalorder %s125, 0
    %s128 = sadd.s32 %s127, 1
    %s129 = scalar_select %p126, %s127, %s128
    %p132 = pneg %p126
    %p133 = scmp.eq.s32.totalorder %s10, 1
    %p134 = por %p132, %p133
    %p135 = scmp.ne.s32.totalorder %s127, %s130
    %p136 = scmp.eq.s32.totalorder %s10, 0
    %p137 = por %p135, %p136
    %p138 = scmp.ne.s32.totalorder %s127, %s130
    %p139 = scmp.eq.s32.totalorder %s15, 1
    %p140 = por %p138, %p139
    %p141 = scmp.ne.s32.totalorder %s130, %s131
    %p142 = scmp.eq.s32.totalorder %s15, 0
    %p143 = por %p141, %p142
    %p144 = scmp.ne.s32.totalorder %s130, %s131
    %p145 = scmp.eq.s32.totalorder %s16, 1
    %p146 = por %p144, %p145
    %p148 = scmp.ne.s32.totalorder %s131, %s147
    %p149 = scmp.eq.s32.totalorder %s16, 0
    %p150 = por %p148, %p149
    %p151 = scmp.le.s32.totalorder 1, %s10
    %p152 = scmp.lt.s32.totalorder %s10, 3
    %p153 = pnand %p151, %p152
    %p154 = pneg %p153
    // Predicated region
    $region9: #{discriminator_forward.8} parent=5 // pred_check
      _
    $region10: #{discriminator_forward.8} parent=5 // pred_check_branch
      %156 = sbr.rel (%p153) target = $region12
    $region11: #{discriminator_forward.8} parent=5 // pred_region
      %s157 = ssub.s32 %s10, 1
      // Predicated region
      $region13: #{discriminator_forward.8} parent=11 // pred_check
        %p158 = pneg %p73
      $region14: #{discriminator_forward.8} parent=11 // pred_check_branch
        %160 = sbr.rel (%p158) target = $region16
      $region15: #{discriminator_forward.8} parent=11 // pred_region
        _
      $region16: #{discriminator_forward.8} parent=11 // pred_fallthru
        _
      // Predicated region
      $region17: #{discriminator_forward.8} parent=11 // pred_check
        %p161 = pneg %p94
      $region18: #{discriminator_forward.8} parent=11 // pred_check_branch
        %163 = sbr.rel (%p161) target = $region20
      $region19: #{discriminator_forward.8} parent=11 // pred_region
        _
      $region20: #{discriminator_forward.8} parent=11 // pred_fallthru
        _
      // Predicated region
      $region21: #{discriminator_forward.8} parent=11 // pred_check
        %p164 = pneg %p115
      $region22: #{discriminator_forward.8} parent=11 // pred_check_branch
        %166 = sbr.rel (%p164) target = $region24
      $region23: #{discriminator_forward.8} parent=11 // pred_region
        _
      $region24: #{discriminator_forward.8} parent=11 // pred_fallthru
        _
    $region12: #{discriminator_forward.8} parent=5 // pred_fallthru
      _
    %p167 = scmp.lt.s32.totalorder %s10, 2
    // Predicated region
    $region25: #{discriminator_forward.8} parent=5 // pred_check
      %p168 = pneg %p167
    $region26: #{discriminator_forward.8} parent=5 // pred_check_branch
      %170 = sbr.rel (%p168) target = $region28
    $region27: #{discriminator_forward.8} parent=5 // pred_region
      // Predicated region
      $region29: #{discriminator_forward.8} parent=27 // pred_check
        %p171 = pneg %p46
      $region30: #{discriminator_forward.8} parent=27 // pred_check_branch
        %173 = sbr.rel (%p171) target = $region32
      $region31: #{discriminator_forward.8} parent=27 // pred_region
        %s174 = ssub.s32 1, %s17
        %s175 = smul.u32 %s174, %s18
        %s176 = smul.u32 4, %s175
        %p177 = scmp.lt.s32.totalorder %s176, 3
        %s178 = scalar_select %p177, %s176, 3
        %s179 = smul.addr %s178, 4
        %s180 = smul.addr %s179, 4
        %s181 = scalar_lea.vmem %s0, %s180
        %s182 = ssub.s32 1, %s17
        %s183 = smul.u32 %s182, %s18
        %s184 = smul.u32 4, %s183
      $region32: #{discriminator_forward.8} parent=27 // pred_fallthru
        _
    $region28: #{discriminator_forward.8} parent=5 // pred_fallthru
      _
    %p185 = scmp.le.s32.totalorder 1, %s10
    %p186 = scmp.lt.s32.totalorder %s10, 3
    %p187 = pnand %p185, %p186
    %p188 = pneg %p187
    // Predicated region
    $region33: #{discriminator_forward.8} parent=5 // pred_check
      _
    $region34: #{discriminator_forward.8} parent=5 // pred_check_branch
      %190 = sbr.rel (%p187) target = $region36
    $region35: #{discriminator_forward.8} parent=5 // pred_region
      %s191 = ssub.s32 %s10, 1
      %s192 = ssub.s32 1, %s19
      %s193 = smul.u32 %s192, %s20
      %s194 = smul.u32 4, %s193
      %p195 = scmp.lt.s32.totalorder %s194, 3
      %s196 = scalar_select %p195, %s194, 3
      %s197 = smul.addr %s196, 4
      %s198 = smul.addr %s197, 4
      %s199 = scalar_lea.vmem %s0, %s198
      %p200 = pneg %p52
      %p201 = pneg %p49
      %p202 = pneg %p73
      %p203 = pneg %p70
      %p204 = pneg %p94
      %p205 = pneg %p91
      %p206 = pneg %p115
      %p207 = pneg %p112
      %p208 = pneg %p143
      %p209 = pneg %p140
      %s210 = smul.u32 %s19, %s20
      %s211 = smul.u32 4, %s210
      %p212 = scmp.lt.s32.totalorder %s211, 3
      %s213 = scalar_select %p212, %s211, 3
      %s214 = smul.addr %s213, 4
      %s215 = scalar_lea.vmem %s4, %s214
      %s216 = ssub.s32 1, %s19
      %s217 = smul.u32 %s216, %s20
      %s218 = smul.u32 4, %s217
      %p219 = scmp.lt.s32.totalorder %s218, 3
      %s220 = scalar_select %p219, %s218, 3
      %s221 = smul.addr %s220, 4
      %s222 = smul.addr %s221, 4
      %s223 = scalar_lea.vmem %s0, %s222
      %s224 = ssub.s32 1, %s19
      %s225 = smul.u32 %s224, %s20
      %s226 = smul.u32 4, %s225
      %s227 = smul.u32 %s19, %s20
      %s228 = smul.u32 4, %s227
      %p229 = scmp.lt.s32.totalorder %s228, 3
      %s230 = scalar_select %p229, %s228, 3
      %s231 = smul.addr %s230, 4
      %s232 = scalar_lea.vmem %s4, %s231
      %s233 = smul.u32 %s19, %s20
      %s234 = smul.u32 4, %s233
      %p236 = scmp.eq.s32.totalorder %s19, 0
      // Predicated region
      $region37: #{discriminator_forward.8} parent=35 // pred_check
        %p237 = pneg %p236
      $region38: #{discriminator_forward.8} parent=35 // pred_check_branch
        %239 = sbr.rel (%p237) target = $region40
      $region39: #{discriminator_forward.8} parent=35 // pred_region
        %v240 = vld [vmem:[%s223] sm:$0xff]
        %v241 = vld [vmem:[%s223 + $0x8] sm:$0xff]
        %v242 = vld [vmem:[%s223 + $0x10] sm:$0xff]
        %v243 = vld [vmem:[%s223 + $0x18] sm:$0xff]
        %v244 = vld [vmem:[%s223 + $0x20] sm:$0xff]
        %v245 = vld [vmem:[%s223 + $0x28] sm:$0xff]
        %v246 = vld [vmem:[%s223 + $0x30] sm:$0xff]
        %v247 = vld [vmem:[%s223 + $0x38] sm:$0xff]
        %v248 = vld [vmem:[%s1] sm:$0xf]
        %v249 = vld [vmem:[%s1 + $0x4] sm:$0xf]
        %v250 = vld [vmem:[%s1 + $0x8] sm:$0xf]
        %v251 = vld [vmem:[%s1 + $0xc] sm:$0xf]
        %v252 = vld [vmem:[%s1 + $0x10] sm:$0xf]
        %v253 = vld [vmem:[%s1 + $0x14] sm:$0xf]
        %v254 = vld [vmem:[%s1 + $0x18] sm:$0xf]
        %v255 = vld [vmem:[%s1 + $0x1c] sm:$0xf]
        %v256 = vld [vmem:[%s1 + $0x20] sm:$0xf]
        %v257 = vld [vmem:[%s1 + $0x24] sm:$0xf]
        %v258 = vld [vmem:[%s1 + $0x28] sm:$0xf]
        %v259 = vld [vmem:[%s1 + $0x2c] sm:$0xf]
        %v260 = vld [vmem:[%s1 + $0x30] sm:$0xf]
        %v261 = vld [vmem:[%s1 + $0x34] sm:$0xf]
        %v262 = vld [vmem:[%s1 + $0x38] sm:$0xf]
        %v263 = vld [vmem:[%s1 + $0x3c] sm:$0xf]
        %v264 = vld [vmem:[%s1 + $0x40] sm:$0xf]
        %v265 = vld [vmem:[%s1 + $0x44] sm:$0xf]
        %v266 = vld [vmem:[%s1 + $0x48] sm:$0xf]
        %v267 = vld [vmem:[%s1 + $0x4c] sm:$0xf]
        %v268 = vld [vmem:[%s1 + $0x50] sm:$0xf]
        %v269 = vld [vmem:[%s1 + $0x54] sm:$0xf]
        %v270 = vld [vmem:[%s1 + $0x58] sm:$0xf]
        %v271 = vld [vmem:[%s1 + $0x5c] sm:$0xf]
        %v272 = vld [vmem:[%s1 + $0x60] sm:$0xf]
        %v273 = vld [vmem:[%s1 + $0x64] sm:$0xf]
        %v274 = vld [vmem:[%s1 + $0x68] sm:$0xf]
        %v275 = vld [vmem:[%s1 + $0x6c] sm:$0xf]
        %v276 = vld [vmem:[%s1 + $0x70] sm:$0xf]
        %v277 = vld [vmem:[%s1 + $0x74] sm:$0xf]
        %v278 = vld [vmem:[%s1 + $0x78] sm:$0xf]
        %v279 = vld [vmem:[%s1 + $0x7c] sm:$0xf]
        %v280 = vld [vmem:[%s1 + $0x80] sm:$0xf]
        %v281 = vld [vmem:[%s1 + $0x84] sm:$0xf]
        %v282 = vld [vmem:[%s1 + $0x88] sm:$0xf]
        %v283 = vld [vmem:[%s1 + $0x8c] sm:$0xf]
        %v284 = vld [vmem:[%s1 + $0x90] sm:$0xf]
        %v285 = vld [vmem:[%s1 + $0x94] sm:$0xf]
        %v286 = vld [vmem:[%s1 + $0x98] sm:$0xf]
        %v287 = vld [vmem:[%s1 + $0x9c] sm:$0xf]
        %v288 = vld [vmem:[%s1 + $0xa0] sm:$0xf]
        %v289 = vld [vmem:[%s1 + $0xa4] sm:$0xf]
        %v290 = vld [vmem:[%s1 + $0xa8] sm:$0xf]
        %v291 = vld [vmem:[%s1 + $0xac] sm:$0xf]
        %v292 = vld [vmem:[%s1 + $0xb0] sm:$0xf]
        %v293 = vld [vmem:[%s1 + $0xb4] sm:$0xf]
        %v294 = vld [vmem:[%s1 + $0xb8] sm:$0xf]
        %v295 = vld [vmem:[%s1 + $0xbc] sm:$0xf]
        %v296 = vld [vmem:[%s1 + $0xc0] sm:$0xf]
        %v297 = vld [vmem:[%s1 + $0xc4] sm:$0xf]
        %v298 = vld [vmem:[%s1 + $0xc8] sm:$0xf]
        %v299 = vld [vmem:[%s1 + $0xcc] sm:$0xf]
        %v300 = vld [vmem:[%s1 + $0xd0] sm:$0xf]
        %v301 = vld [vmem:[%s1 + $0xd4] sm:$0xf]
        %v302 = vld [vmem:[%s1 + $0xd8] sm:$0xf]
        %v303 = vld [vmem:[%s1 + $0xdc] sm:$0xf]
        %v304 = vld [vmem:[%s1 + $0xe0] sm:$0xf]
        %v305 = vld [vmem:[%s1 + $0xe4] sm:$0xf]
        %v306 = vld [vmem:[%s1 + $0xe8] sm:$0xf]
        %v307 = vld [vmem:[%s1 + $0xec] sm:$0xf]
        %v308 = vld [vmem:[%s1 + $0xf0] sm:$0xf]
        %v309 = vld [vmem:[%s1 + $0xf4] sm:$0xf]
        %v310 = vld [vmem:[%s1 + $0xf8] sm:$0xf]
        %v311 = vld [vmem:[%s1 + $0xfc] sm:$0xf]
        %v320 = vunpack.c.l.b16 %v240
        %v321 = vunpack.c.h.b16 %v240
        %v322 = vunpack.c.l.b16 %v241
        %v323 = vunpack.c.h.b16 %v241
        %v324 = vunpack.c.l.b16 %v242
        %v325 = vunpack.c.h.b16 %v242
        %v326 = vunpack.c.l.b16 %v243
        %v327 = vunpack.c.h.b16 %v243
        %v328 = vunpack.c.l.b16 %v244
        %v329 = vunpack.c.h.b16 %v244
        %v330 = vunpack.c.l.b16 %v245
        %v331 = vunpack.c.h.b16 %v245
        %v332 = vunpack.c.l.b16 %v246
        %v333 = vunpack.c.h.b16 %v246
        %v334 = vunpack.c.l.b16 %v247
        %v335 = vunpack.c.h.b16 %v247
        %v336 = vpack.c.b16 %v324, %v320
        %v337 = vpack.c.b16 %v325, %v321
        %v338 = vpack.c.b16 %v326, %v322
        %v339 = vpack.c.b16 %v327, %v323
        %v340 = vpack.c.b16 %v332, %v328
        %v341 = vpack.c.b16 %v333, %v329
        %v342 = vpack.c.b16 %v334, %v330
        %v343 = vpack.c.b16 %v335, %v331
        %v416 = vunpack.c.l.b16 %v248
        %v417 = vunpack.c.l.b16 %v249
        %v418 = vunpack.c.l.b16 %v250
        %v419 = vunpack.c.l.b16 %v251
        %v420 = vunpack.c.l.b16 %v252
        %v421 = vunpack.c.l.b16 %v253
        %v422 = vunpack.c.l.b16 %v254
        %v423 = vunpack.c.l.b16 %v255
        %v424 = vunpack.c.l.b16 %v256
        %v425 = vunpack.c.l.b16 %v257
        %v426 = vunpack.c.l.b16 %v258
        %v427 = vunpack.c.l.b16 %v259
        %v428 = vunpack.c.l.b16 %v260
        %v429 = vunpack.c.l.b16 %v261
        %v430 = vunpack.c.l.b16 %v262
        %v431 = vunpack.c.l.b16 %v263
        %v432 = vunpack.c.l.b16 %v264
        %v433 = vunpack.c.l.b16 %v265
        %v434 = vunpack.c.l.b16 %v266
        %v435 = vunpack.c.l.b16 %v267
        %v436 = vunpack.c.l.b16 %v268
        %v437 = vunpack.c.l.b16 %v269
        %v438 = vunpack.c.l.b16 %v270
        %v439 = vunpack.c.l.b16 %v271
        %v440 = vunpack.c.l.b16 %v272
        %v441 = vunpack.c.l.b16 %v273
        %v442 = vunpack.c.l.b16 %v274
        %v443 = vunpack.c.l.b16 %v275
        %v444 = vunpack.c.l.b16 %v276
        %v445 = vunpack.c.l.b16 %v277
        %v446 = vunpack.c.l.b16 %v278
        %v447 = vunpack.c.l.b16 %v279
        %v448 = vunpack.c.l.b16 %v280
        %v449 = vunpack.c.l.b16 %v281
        %v450 = vunpack.c.l.b16 %v282
        %v451 = vunpack.c.l.b16 %v283
        %v452 = vunpack.c.l.b16 %v284
        %v453 = vunpack.c.l.b16 %v285
        %v454 = vunpack.c.l.b16 %v286
        %v455 = vunpack.c.l.b16 %v287
        %v456 = vunpack.c.l.b16 %v288
        %v457 = vunpack.c.l.b16 %v289
        %v458 = vunpack.c.l.b16 %v290
        %v459 = vunpack.c.l.b16 %v291
        %v460 = vunpack.c.l.b16 %v292
        %v461 = vunpack.c.l.b16 %v293
        %v462 = vunpack.c.l.b16 %v294
        %v463 = vunpack.c.l.b16 %v295
        %v464 = vunpack.c.l.b16 %v296
        %v465 = vunpack.c.l.b16 %v297
        %v466 = vunpack.c.l.b16 %v298
        %v467 = vunpack.c.l.b16 %v299
        %v468 = vunpack.c.l.b16 %v300
        %v469 = vunpack.c.l.b16 %v301
        %v470 = vunpack.c.l.b16 %v302
        %v471 = vunpack.c.l.b16 %v303
        %v472 = vunpack.c.l.b16 %v304
        %v473 = vunpack.c.l.b16 %v305
        %v474 = vunpack.c.l.b16 %v306
        %v475 = vunpack.c.l.b16 %v307
        %v476 = vunpack.c.l.b16 %v308
        %v477 = vunpack.c.l.b16 %v309
        %v478 = vunpack.c.l.b16 %v310
        %v479 = vunpack.c.l.b16 %v311
        %v480 = vpack.c.b16 %v417, %v416
        %v481 = vpack.c.b16 %v419, %v418
        %v482 = vpack.c.b16 %v421, %v420
        %v483 = vpack.c.b16 %v423, %v422
        %v484 = vpack.c.b16 %v425, %v424
        %v485 = vpack.c.b16 %v427, %v426
        %v486 = vpack.c.b16 %v429, %v428
        %v487 = vpack.c.b16 %v431, %v430
        %v488 = vpack.c.b16 %v433, %v432
        %v489 = vpack.c.b16 %v435, %v434
        %v490 = vpack.c.b16 %v437, %v436
        %v491 = vpack.c.b16 %v439, %v438
        %v492 = vpack.c.b16 %v441, %v440
        %v493 = vpack.c.b16 %v443, %v442
        %v494 = vpack.c.b16 %v445, %v444
        %v495 = vpack.c.b16 %v447, %v446
        %v496 = vpack.c.b16 %v449, %v448
        %v497 = vpack.c.b16 %v451, %v450
        %v498 = vpack.c.b16 %v453, %v452
        %v499 = vpack.c.b16 %v455, %v454
        %v500 = vpack.c.b16 %v457, %v456
        %v501 = vpack.c.b16 %v459, %v458
        %v502 = vpack.c.b16 %v461, %v460
        %v503 = vpack.c.b16 %v463, %v462
        %v504 = vpack.c.b16 %v465, %v464
        %v505 = vpack.c.b16 %v467, %v466
        %v506 = vpack.c.b16 %v469, %v468
        %v507 = vpack.c.b16 %v471, %v470
        %v508 = vpack.c.b16 %v473, %v472
        %v509 = vpack.c.b16 %v475, %v474
        %v510 = vpack.c.b16 %v477, %v476
        %v511 = vpack.c.b16 %v479, %v478
        %544 = vmatprep.subr.bf16.mxu0 0
        %545 = vmatpush1.bf16.msra.mxu0 %v480
        %546 = vmatprep.subr.bf16.mxu0 0
        %547 = vmatpush1.bf16.msra.mxu0 %v481
        %548 = vmatprep.subr.bf16.mxu0 0
        %549 = vmatpush1.bf16.msra.mxu0 %v482
        %550 = vmatprep.subr.bf16.mxu0 0
        %551 = vmatpush1.bf16.msra.mxu0 %v483
        %552 = vmatprep.subr.bf16.mxu0 0
        %553 = vmatpush1.bf16.msra.mxu0 %v484
        %554 = vmatprep.subr.bf16.mxu0 0
        %555 = vmatpush1.bf16.msra.mxu0 %v485
        %556 = vmatprep.subr.bf16.mxu0 0
        %557 = vmatpush1.bf16.msra.mxu0 %v486
        %558 = vmatprep.subr.bf16.mxu0 0
        %559 = vmatpush1.bf16.msra.mxu0 %v487
        %560 = vmatprep.subr.bf16.mxu0 0
        %561 = vmatpush1.bf16.msra.mxu0 %v488
        %562 = vmatprep.subr.bf16.mxu0 0
        %563 = vmatpush1.bf16.msra.mxu0 %v489
        %564 = vmatprep.subr.bf16.mxu0 0
        %565 = vmatpush1.bf16.msra.mxu0 %v490
        %566 = vmatprep.subr.bf16.mxu0 0
        %567 = vmatpush1.bf16.msra.mxu0 %v491
        %568 = vmatprep.subr.bf16.mxu0 0
        %569 = vmatpush1.bf16.msra.mxu0 %v492
        %570 = vmatprep.subr.bf16.mxu0 0
        %571 = vmatpush1.bf16.msra.mxu0 %v493
        %572 = vmatprep.subr.bf16.mxu0 0
        %573 = vmatpush1.bf16.msra.mxu0 %v494
        %574 = vmatprep.subr.bf16.mxu0 0
        %575 = vmatpush1.bf16.msra.mxu0 %v495
        %576 = vmatprep.mubr.bf16.mxu0 %v337
        %577 = vmatmul.mubr.bf16.gmra.mrb[0].mxu0 %v336
        %v578 = vpop.f32.mrb[0].mxu0
        %v579 = vadd.f32 0.0, %v578
        %v580 = vpop.f32.mrb[0].mxu0
        %v581 = vpop.f32.mrb[0].mxu0
        %v582 = vadd.f32 0.0, %v581
        %v583 = vpop.f32.mrb[0].mxu0
        %584 = vmatprep.mubr.bf16.mxu0 %v341
        %585 = vmatmul.mubr.bf16.gmra.mrb[0].mxu0 %v340
        %v586 = vpop.f32.mrb[0].mxu0
        %v587 = vadd.f32 0.0, %v586
        %v588 = vpop.f32.mrb[0].mxu0
        %v589 = vpop.f32.mrb[0].mxu0
        %v590 = vadd.f32 0.0, %v589
        %v591 = vpop.f32.mrb[0].mxu0
        %592 = vdwg.mxu0
        %593 = vmatprep.subr.bf16.mxu0 0
        %594 = vmatpush1.bf16.msra.mxu0 %v496
        %595 = vmatprep.subr.bf16.mxu0 0
        %596 = vmatpush1.bf16.msra.mxu0 %v497
        %597 = vmatprep.subr.bf16.mxu0 0
        %598 = vmatpush1.bf16.msra.mxu0 %v498
        %599 = vmatprep.subr.bf16.mxu0 0
        %600 = vmatpush1.bf16.msra.mxu0 %v499
        %601 = vmatprep.subr.bf16.mxu0 0
        %602 = vmatpush1.bf16.msra.mxu0 %v500
        %603 = vmatprep.subr.bf16.mxu0 0
        %604 = vmatpush1.bf16.msra.mxu0 %v501
        %605 = vmatprep.subr.bf16.mxu0 0
        %606 = vmatpush1.bf16.msra.mxu0 %v502
        %607 = vmatprep.subr.bf16.mxu0 0
        %608 = vmatpush1.bf16.msra.mxu0 %v503
        %609 = vmatprep.subr.bf16.mxu0 0
        %610 = vmatpush1.bf16.msra.mxu0 %v504
        %611 = vmatprep.subr.bf16.mxu0 0
        %612 = vmatpush1.bf16.msra.mxu0 %v505
        %613 = vmatprep.subr.bf16.mxu0 0
        %614 = vmatpush1.bf16.msra.mxu0 %v506
        %615 = vmatprep.subr.bf16.mxu0 0
        %616 = vmatpush1.bf16.msra.mxu0 %v507
        %617 = vmatprep.subr.bf16.mxu0 0
        %618 = vmatpush1.bf16.msra.mxu0 %v508
        %619 = vmatprep.subr.bf16.mxu0 0
        %620 = vmatpush1.bf16.msra.mxu0 %v509
        %621 = vmatprep.subr.bf16.mxu0 0
        %622 = vmatpush1.bf16.msra.mxu0 %v510
        %623 = vmatprep.subr.bf16.mxu0 0
        %624 = vmatpush1.bf16.msra.mxu0 %v511
        %625 = vmatprep.mubr.bf16.mxu0 %v339
        %626 = vmatmul.mubr.bf16.gmra.mrb[0].mxu0 %v338
        %v627 = vpop.f32.mrb[0].mxu0
        %v628 = vadd.f32 %v579, %v627
        %v629 = vpop.f32.mrb[0].mxu0
        %v630 = vpop.f32.mrb[0].mxu0
        %v631 = vadd.f32 %v582, %v630
        %v632 = vpop.f32.mrb[0].mxu0
        %633 = vmatprep.mubr.bf16.mxu0 %v343
        %634 = vmatmul.mubr.bf16.gmra.mrb[0].mxu0 %v342
        %v635 = vpop.f32.mrb[0].mxu0
        %v636 = vadd.f32 %v587, %v635
        %v637 = vpop.f32.mrb[0].mxu0
        %v638 = vpop.f32.mrb[0].mxu0
        %v639 = vadd.f32 %v590, %v638
        %v640 = vpop.f32.mrb[0].mxu0
        %641 = vdwg.mxu0
        %s642 = smul.u32 %s20, 32
        %s643 = scalar_lea.vmem [#allocation2], %s642
        %644 = vst [vmem:[%s643] sm:$0xff] %v628
        %645 = vst [vmem:[%s643 + $0x8] sm:$0xff] %v631
        %646 = vst [vmem:[%s643 + $0x10] sm:$0xff] %v636
        %647 = vst [vmem:[%s643 + $0x18] sm:$0xff] %v639
        %p648 = scmp.eq.s32.totalorder %s20, 0
        // Predicated region
        $region41: #{discriminator_forward.8} parent=39 // pred_check
          %p649 = pneg %p648
        $region42: #{discriminator_forward.8} parent=39 // pred_check_branch
          %651 = sbr.rel (%p649) target = $region44
        $region43: #{discriminator_forward.8} parent=39 // pred_region
          %652 = vst [vmem:[#allocation3] sm:$0x1] 0.0
          %653 = vst [vmem:[#allocation4] sm:$0x1] 0.0
        $region44: #{discriminator_forward.8} parent=39 // pred_fallthru
          _
        %v654 = vld [vmem:[#allocation3] sm:$0x1]
        %v655 = vadd.f32 %v628, %v631
        %v656 = vadd.f32 %v655, %v636
        %v657 = vadd.f32 %v656, %v639
        %v658 = vrot.slane %v657, 4
        %v659 = vadd.f32 %v657, %v658
        %v660 = vrot.slane %v659, 2
        %v661 = vadd.f32 %v659, %v660
        %v662 = vrot.slane %v661, 1
        %v663 = vadd.f32 %v661, %v662
        %v664 = vadd.f32 %v654, %v663
        %665 = vst [vmem:[#allocation3] sm:$0x1] %v664
        %v666 = vld [vmem:[#allocation4] sm:$0x1]
        %v667 = vmul.f32 %v628, %v628
        %v668 = vmul.f32 %v631, %v631
        %v669 = vmul.f32 %v636, %v636
        %v670 = vmul.f32 %v639, %v639
        %v671 = vadd.f32 %v667, %v668
        %v672 = vadd.f32 %v671, %v669
        %v673 = vadd.f32 %v672, %v670
        %v674 = vrot.slane %v673, 4
        %v675 = vadd.f32 %v673, %v674
        %v676 = vrot.slane %v675, 2
        %v677 = vadd.f32 %v675, %v676
        %v678 = vrot.slane %v677, 1
        %v679 = vadd.f32 %v677, %v678
        %v680 = vadd.f32 %v666, %v679
        %681 = vst [vmem:[#allocation4] sm:$0x1] %v680
        // Predicated region
        $region45: #{discriminator_forward.8} parent=39 // pred_check
          %p682 = pneg %p648
        $region46: #{discriminator_forward.8} parent=39 // pred_check_branch
          %684 = sbr.rel (%p682) target = $region48
        $region47: #{discriminator_forward.8} parent=39 // pred_region
          %v685 = vld [vmem:[#allocation3] sm:$0x1]
          %v686 = vmul.f32 %v685, 0.03125
          %v687 = vld [vmem:[#allocation4] sm:$0x1]
          %v688 = vmul.f32 %v687, 0.03125
          %v689 = vmul.f32 %v686, %v686
          %v690 = vsub.f32 %v688, %v689
          %v691 = vmax.f32 %v690, 0.0
          %v692 = vld [vmem:[%s2] sm:$0x1]
          %v693 = vadd.f32 %v691, 1e-05
          %v694 = vrsqrt.pop %v693
          %v695 = vmul.f32 %v692, %v694
          %696 = vst [vmem:[#allocation5] sm:$0x1] %v695
          %v697 = vld [vmem:[%s3] sm:$0x1]
          %v698 = vmul.f32 %v686, %v695
          %v699 = vsub.f32 %v697, %v698
          %700 = vst [vmem:[#allocation6] sm:$0x1] %v699
        $region48: #{discriminator_forward.8} parent=39 // pred_fallthru
          _
      $region40: #{discriminator_forward.8} parent=35 // pred_fallthru
        _
      %p701 = scmp.eq.s32.totalorder %s19, 1
      // Predicated region
      $region49: #{discriminator_forward.8} parent=35 // pred_check
        %p702 = pneg %p701
      $region50: #{discriminator_forward.8} parent=35 // pred_check_branch
        %704 = sbr.rel (%p702) target = $region52
      $region51: #{discriminator_forward.8} parent=35 // pred_region
        %s705 = smul.u32 %s20, 32
        %s706 = scalar_lea.vmem [#allocation2], %s705
        %v707 = vld [vmem:[%s706] sm:$0xff]
        %v708 = vld [vmem:[%s706 + $0x8] sm:$0xff]
        %v709 = vld [vmem:[%s706 + $0x10] sm:$0xff]
        %v710 = vld [vmem:[%s706 + $0x18] sm:$0xff]
        %v711 = vld [vmem:[#allocation5] sm:$0x1]
        %v713 = vlaneseq
        %v714 = vshrl.u32 %v713, 7
        %v715 = vsub.s32 0, %v714
        %v716 = vrot.slane %v711, %v715
        %v718 = vmul.f32 %v707, %v716
        %v719 = vmul.f32 %v708, %v716
        %v720 = vmul.f32 %v709, %v716
        %v721 = vmul.f32 %v710, %v716
        %v722 = vld [vmem:[#allocation6] sm:$0x1]
        %v724 = vlaneseq
        %v725 = vshrl.u32 %v724, 7
        %v726 = vsub.s32 0, %v725
        %v727 = vrot.slane %v722, %v726
        %v729 = vadd.f32 %v718, %v727
        %v730 = vadd.f32 %v719, %v727
        %v731 = vadd.f32 %v720, %v727
        %v732 = vadd.f32 %v721, %v727
        %vm733 = vcmp.gt.f32.partialorder %v729, 0.0
        %vm734 = vcmp.gt.f32.partialorder %v730, 0.0
        %vm735 = vcmp.gt.f32.partialorder %v731, 0.0
        %vm736 = vcmp.gt.f32.partialorder %v732, 0.0
        %v737 = vmul.f32 %v729, 0.2
        %v738 = vmul.f32 %v730, 0.2
        %v739 = vmul.f32 %v731, 0.2
        %v740 = vmul.f32 %v732, 0.2
        %v741 = vsel %vm733, %v729, %v737
        %v742 = vsel %vm734, %v730, %v738
        %v743 = vsel %vm735, %v731, %v739
        %v744 = vsel %vm736, %v732, %v740
        %v745 = vpack.c.bf16 %v742, %v741
        %v746 = vpack.c.bf16 %v744, %v743
        %v749 = vunpack.c.l.b16 %v745
        %v750 = vunpack.c.h.b16 %v745
        %v751 = vunpack.c.l.b16 %v746
        %v752 = vunpack.c.h.b16 %v746
        %v753 = vpack.c.b16 %v749, %v749
        %v754 = vpack.c.b16 %v750, %v750
        %v755 = vpack.c.b16 %v751, %v751
        %v756 = vpack.c.b16 %v752, %v752
        %761 = vst [vmem:[%s232] sm:$0xf] %v753
        %762 = vst [vmem:[%s232 + $0x4] sm:$0xf] %v754
        %763 = vst [vmem:[%s232 + $0x8] sm:$0xf] %v755
        %764 = vst [vmem:[%s232 + $0xc] sm:$0xf] %v756
      $region52: #{discriminator_forward.8} parent=35 // pred_fallthru
        _
      %s765 = smul.u32 %s19, %s20
      %s766 = smul.u32 4, %s765
      %p767 = scmp.lt.s32.totalorder %s766, 3
      %s768 = scalar_select %p767, %s766, 3
      %s769 = smul.addr %s768, 4
      %s770 = scalar_lea.vmem %s4, %s769
      // Predicated region
      $region53: #{discriminator_forward.8} parent=35 // pred_check
        %p771 = pneg %p140
      $region54: #{discriminator_forward.8} parent=35 // pred_check_branch
        %773 = sbr.rel (%p771) target = $region56
      $region55: #{discriminator_forward.8} parent=35 // pred_region
        %s774 = smul.u32 %s19, %s20
        %s775 = smul.u32 4, %s774
      $region56: #{discriminator_forward.8} parent=35 // pred_fallthru
        _
    $region36: #{discriminator_forward.8} parent=5 // pred_fallthru
      _
    %p776 = scmp.le.s32.totalorder 2, %s10
    // Predicated region
    $region57: #{discriminator_forward.8} parent=5 // pred_check
      %p777 = pneg %p776
    $region58: #{discriminator_forward.8} parent=5 // pred_check_branch
      %779 = sbr.rel (%p777) target = $region60
    $region59: #{discriminator_forward.8} parent=5 // pred_region
      %s780 = ssub.s32 %s10, 2
      // Predicated region
      $region61: #{discriminator_forward.8} parent=59 // pred_check
        %p781 = pneg %p146
      $region62: #{discriminator_forward.8} parent=59 // pred_check_branch
        %783 = sbr.rel (%p781) target = $region64
      $region63: #{discriminator_forward.8} parent=59 // pred_region
        %s784 = smul.u32 %s21, %s22
        %s785 = smul.u32 4, %s784
        %p786 = scmp.lt.s32.totalorder %s785, 3
        %s787 = scalar_select %p786, %s785, 3
        %s788 = smul.addr %s787, 4
        %s789 = scalar_lea.vmem %s4, %s788
      $region64: #{discriminator_forward.8} parent=59 // pred_fallthru
        _
    $region60: #{discriminator_forward.8} parent=5 // pred_fallthru
      _
  $region6: #{discriminator_forward.8} parent=0 // loop_footer
    %s14 = sadd.s32 1, %s10
  $region7: #{discriminator_forward.8} parent=0 // loop_footer_branch
    %9 = sbr.rel target = $region3
  $region8: #{discriminator_forward.8} parent=0 // loop_exit
    _

</llo_original>
